<compile_context>
chip_gen: v7x
topology: tpu7x:2x2x1
jax: 0.10.0
libtpu: 0.0.40
codegen_flags: <defaults>
</compile_context>

<pallas_src>
import jax
import jax.numpy as jnp
from jax.experimental import pallas as pl
from jax.experimental.pallas import tpu as pltpu

BN_EPS = 1e-5


def transformer_kernel(
    x_ref,          # (B, N, C)        f32 input, channels-last
    c1w_ref,        # (C, C)           bf16 conv1 weight, (Cin, Cout)
    c2w_ref,        # (C, C)           bf16 conv2 weight, (Cin, Cout)
    bn1g_ref,       # (1, C) f32
    bn1b_ref,       # (1, C) f32
    bn2g_ref,       # (1, C) f32
    bn2b_ref,       # (1, C) f32
    wqv_ref,        # (4, C, C + C//4) bf16 fused [v | q/k] projection weights
    vb_ref,         # (4, 1, C)        f32 v conv bias
    tw_ref,         # (4, C, C)        bf16 trans conv weight
    tb_ref,         # (4, 1, C)        f32 trans conv bias
    ang_ref,        # (4, 1, C)        f32 after_norm gamma
    anb_ref,        # (4, 1, C)        f32 after_norm beta
    out_ref,        # (B*N, 4*C)       f32 lane-dense packed [x1 x2 x3 x4]
):
    B, N, C = x_ref.shape
    C4 = wqv_ref.shape[2] - C
    BN = B * N

    def bn_relu(y, gamma, beta):
        # Training-mode BatchNorm1d over the (B*N) extent, folded into a single
        # per-channel scale/shift, with the ReLU fused in.
        mean = jnp.mean(y, axis=0, keepdims=True)
        var = jnp.mean(y * y, axis=0, keepdims=True) - mean * mean
        scale = gamma * jax.lax.rsqrt(var + BN_EPS)
        shift = beta - mean * scale
        return jnp.maximum(y * scale + shift, 0.0)

    def mm(a_f32, w_bf16):
        # bf16 MXU operands, f32 accumulation.
        return jnp.dot(a_f32.astype(jnp.bfloat16), w_bf16,
                       preferred_element_type=jnp.float32)

    x2d = x_ref[...].reshape(BN, C)

    # conv1 -> bn1 -> relu ; conv2 -> bn2 -> relu
    cur = bn_relu(mm(x2d, c1w_ref[...]), bn1g_ref[...], bn1b_ref[...])
    cur = bn_relu(mm(cur, c2w_ref[...]), bn2g_ref[...], bn2b_ref[...])

    outs = []
    for l in range(4):  # sa1..sa4 (static unroll; outputs packed at the end)
        # Fused [v | q/k] projection: one MXU pass instead of two.
        pv = mm(cur, wqv_ref[l])                                # (B*N, C + C4)
        v = (pv[:, :C] + vb_ref[l]).reshape(B, N, C)            # f32
        q = pv[:, C:].astype(jnp.bfloat16).reshape(B, N, C4)

        # energy[b,i,j] = q_i . q_j  -- exactly symmetric.
        energy = jnp.einsum("bid,bjd->bij", q, q,
                            preferred_element_type=jnp.float32)  # (B, N, N)

        # softmax(dim=-1) followed by the extra dim=1 normalization.  Using a
        # per-batch max keeps S = exp(E - m) symmetric, so
        #   A[i,j]     = S[i,j] / r_i,            r_i = sum_j S[i,j]
        #   attn[i,j]  = A[i,j] / (1e-9 + c_j),   c_j = sum_i S[j,i] / r_i
        #   x_r[j,:]   = sum_i attn[i,j] v[i,:] = (S @ (v / r))[j,:] / (1e-9 + c_j)
        # i.e. no transposed matmul and both divisions become EUP reciprocals.
        m = jnp.max(jnp.max(energy, axis=-1, keepdims=True), axis=-2,
                    keepdims=True)                               # (B, 1, 1)
        s = jnp.exp(energy - m)                                  # (B, N, N)
        r_col = jnp.sum(s, axis=-1, keepdims=True)               # (B, N, 1)  r_i
        r_row = jnp.sum(s, axis=1, keepdims=True)                # (B, 1, N)  r_j
        rho_col = pl.reciprocal(r_col, approx=True)
        rho_row = pl.reciprocal(r_row, approx=True)

        u = (v * rho_col).astype(jnp.bfloat16)                   # v / r
        num = jnp.einsum("bij,bjc->bic", s.astype(jnp.bfloat16), u,
                         preferred_element_type=jnp.float32)     # (B, N, C)
        csum = jnp.sum(s * rho_row, axis=-1, keepdims=True)      # (B, N, 1)
        x_r = num * pl.reciprocal(1e-9 + csum, approx=True)
        x_r2 = x_r.reshape(BN, C)

        # trans_conv(x - x_r) -> after_norm -> relu, then residual add.
        t = mm(cur - x_r2, tw_ref[l]) + tb_ref[l]
        cur = cur + bn_relu(t, ang_ref[l], anb_ref[l])
        outs.append(cur)

    # Single lane-dense store: last dim 4*C (=128 for C=32) -> unmasked vst.
    out_ref[...] = jnp.concatenate(outs, axis=-1)


def transformer_forward(x_ncl, P):
    """x_ncl: (B, C, N) float32 (PyTorch NCL layout). Returns (B, 4*C, N)."""
    B, C, N = x_ncl.shape
    C4 = C // 4
    x_bnc = jnp.transpose(x_ncl, (0, 2, 1))  # channels-last for the kernel

    bf16 = jnp.bfloat16
    c1w = P["conv1_w"].T.astype(bf16)
    c2w = P["conv2_w"].T.astype(bf16)
    # Fused per-layer [v | q/k] projection weights, (4, C, C + C//4), bf16.
    wqv = jnp.stack([
        jnp.concatenate([P[f"sa{l}_v_w"].T, P[f"sa{l}_qk_w"].T], axis=1)
        for l in range(4)]).astype(bf16)
    vb = jnp.stack([P[f"sa{l}_v_b"][None, :] for l in range(4)])
    tw = jnp.stack([P[f"sa{l}_t_w"].T for l in range(4)]).astype(bf16)
    tb = jnp.stack([P[f"sa{l}_t_b"][None, :] for l in range(4)])
    ang = jnp.stack([P[f"sa{l}_an_g"][None, :] for l in range(4)])
    anb = jnp.stack([P[f"sa{l}_an_b"][None, :] for l in range(4)])
    bn1g, bn1b = P["bn1_g"][None, :], P["bn1_b"][None, :]
    bn2g, bn2b = P["bn2_g"][None, :], P["bn2_b"][None, :]

    args = (x_bnc, c1w, c2w, bn1g, bn1b, bn2g, bn2b, wqv, vb, tw, tb, ang, anb)

    BN = B * N
    flops = (2 * 2 * BN * C * C                          # conv1, conv2
             + 4 * (2 * BN * C * (C + C4)                # fused [v | q/k] proj
                    + 2 * B * N * N * C4                 # energy
                    + 2 * B * N * N * C                  # S @ (v/r)
                    + 2 * BN * C * C))                   # trans conv
    bytes_accessed = sum(int(a.size) * a.dtype.itemsize for a in args) \
        + BN * 4 * C * 4
    cost = pl.CostEstimate(flops=int(flops),
                           transcendentals=int(4 * B * N * N),
                           bytes_accessed=int(bytes_accessed))

    out2d = pl.pallas_call(
        transformer_kernel,
        out_shape=jax.ShapeDtypeStruct((BN, 4 * C), jnp.float32),
        in_specs=[pl.BlockSpec(memory_space=pltpu.MemorySpace.VMEM)
                  for _ in range(len(args))],
        out_specs=pl.BlockSpec(memory_space=pltpu.MemorySpace.VMEM),
        compiler_params=pltpu.CompilerParams(vmem_limit_bytes=64 * 1024 * 1024),
        cost_estimate=cost,
    )(*args)

    # (B*N, 4*C) -> (B, N, 4*C) -> (B, 4*C, N)  == torch.cat((x1,x2,x3,x4), dim=1)
    return jnp.transpose(out2d.reshape(B, N, 4 * C), (0, 2, 1))


# ----------------------- plain-JAX f32 reference (NCL layout) -------------------
_PREC = jax.lax.Precision.HIGHEST


def _conv1d(x, w_oi, b=None):
    y = jnp.einsum("oc,bcn->bon", w_oi, x, precision=_PREC)
    if b is not None:
        y = y + b[None, :, None]
    return y


def _bn(x, g, b):
    mean = jnp.mean(x, axis=(0, 2), keepdims=True)
    var = jnp.mean((x - mean) ** 2, axis=(0, 2), keepdims=True)
    return (x - mean) / jnp.sqrt(var + BN_EPS) * g[None, :, None] + b[None, :, None]


def _attention_ref(x, qk_w, v_w, v_b, t_w, t_b, g, b):
    q = jnp.einsum("dc,bcn->bdn", qk_w, x, precision=_PREC)    # (B, C4, N)
    x_q = jnp.transpose(q, (0, 2, 1))
    x_k = q
    energy = jnp.einsum("bnd,bdm->bnm", x_q, x_k, precision=_PREC)
    attn = jax.nn.softmax(energy, axis=-1)
    attn = attn / (1e-9 + jnp.sum(attn, axis=1, keepdims=True))
    x_v = _conv1d(x, v_w, v_b)
    x_r = jnp.einsum("bcn,bnm->bcm", x_v, attn, precision=_PREC)
    x_r = jax.nn.relu(_bn(_conv1d(x - x_r, t_w, t_b), g, b))
    return x + x_r


def transformer_reference(x_ncl, P):
    y = jax.nn.relu(_bn(_conv1d(x_ncl, P["conv1_w"]), P["bn1_g"], P["bn1_b"]))
    y = jax.nn.relu(_bn(_conv1d(y, P["conv2_w"]), P["bn2_g"], P["bn2_b"]))
    outs, cur = [], y
    for l in range(4):
        cur = _attention_ref(cur, P[f"sa{l}_qk_w"], P[f"sa{l}_v_w"], P[f"sa{l}_v_b"],
                             P[f"sa{l}_t_w"], P[f"sa{l}_t_b"],
                             P[f"sa{l}_an_g"], P[f"sa{l}_an_b"])
        outs.append(cur)
    return jnp.concatenate(outs, axis=1)


# ---------------------------------- main ----------------------------------------
def init_params(key, C):
    C4 = C // 4
    P = {}
    ks = iter(jax.random.split(key, 64))
    P["conv1_w"] = 0.1 * jax.random.normal(next(ks), (C, C), jnp.float32)
    P["conv2_w"] = 0.1 * jax.random.normal(next(ks), (C, C), jnp.float32)
    for name in ("bn1", "bn2"):
        P[f"{name}_g"] = 1.0 + 0.05 * jax.random.normal(next(ks), (C,), jnp.float32)
        P[f"{name}_b"] = 0.05 * jax.random.normal(next(ks), (C,), jnp.float32)
    for l in range(4):
        P[f"sa{l}_qk_w"] = 0.1 * jax.random.normal(next(ks), (C4, C), jnp.float32)
        P[f"sa{l}_v_w"] = 0.1 * jax.random.normal(next(ks), (C, C), jnp.float32)
        P[f"sa{l}_v_b"] = 0.05 * jax.random.normal(next(ks), (C,), jnp.float32)
        P[f"sa{l}_t_w"] = 0.1 * jax.random.normal(next(ks), (C, C), jnp.float32)
        P[f"sa{l}_t_b"] = 0.05 * jax.random.normal(next(ks), (C,), jnp.float32)
        P[f"sa{l}_an_g"] = 1.0 + 0.05 * jax.random.normal(next(ks), (C,), jnp.float32)
        P[f"sa{l}_an_b"] = 0.05 * jax.random.normal(next(ks), (C,), jnp.float32)
    return P


if __name__ == "__main__":
    B, C, N = 2, 32, 16  # small shapes (channels=32 -> C//4=8), x: (B, C, N)
    key = jax.random.PRNGKey(0)
    kx, kp = jax.random.split(key)
    x = jax.random.normal(kx, (B, C, N), jnp.float32)
    params = init_params(kp, C)

    out = jax.block_until_ready(transformer_forward(x, params))
    ref = jax.block_until_ready(transformer_reference(x, params))

    assert out.shape == (B, 4 * C, N), out.shape
    assert bool(jnp.all(jnp.isfinite(out)))
    # bf16 MXU operands + approx reciprocals vs. the f32 HIGHEST reference:
    # check normalized max error with comfortable headroom.
    max_err = float(jnp.max(jnp.abs(out - ref)))
    scale = max(1.0, float(jnp.max(jnp.abs(ref))))
    assert max_err / scale < 5e-2, f"normalized max error: {max_err / scale}"

    print("KERNEL_OK")
</pallas_src>

<mosaic_0001>
module attributes {stable_mosaic.version = 11 : i64} {
  func.func @transformer_kernel(%arg0: memref<2x16x32xf32, #tpu.memory_space<vmem>>, %arg1: memref<32x32xbf16, #tpu.memory_space<vmem>>, %arg2: memref<32x32xbf16, #tpu.memory_space<vmem>>, %arg3: memref<1x32xf32, #tpu.memory_space<vmem>>, %arg4: memref<1x32xf32, #tpu.memory_space<vmem>>, %arg5: memref<1x32xf32, #tpu.memory_space<vmem>>, %arg6: memref<1x32xf32, #tpu.memory_space<vmem>>, %arg7: memref<4x32x40xbf16, #tpu.memory_space<vmem>>, %arg8: memref<4x1x32xf32, #tpu.memory_space<vmem>>, %arg9: memref<4x32x32xbf16, #tpu.memory_space<vmem>>, %arg10: memref<4x1x32xf32, #tpu.memory_space<vmem>>, %arg11: memref<4x1x32xf32, #tpu.memory_space<vmem>>, %arg12: memref<4x1x32xf32, #tpu.memory_space<vmem>>, %arg13: memref<32x128xf32, #tpu.memory_space<vmem>>) attributes {dimension_semantics = [], scalar_prefetch = 0 : i64, scratch_operands = 0 : i64, tpu.core_type = #tpu.core_type<tc>} {
    %c0 = arith.constant 0 : index
    %c0_0 = arith.constant 0 : index
    %c0_1 = arith.constant 0 : index
    %0 = vector.load %arg0[%c0, %c0_0, %c0_1] : memref<2x16x32xf32, #tpu.memory_space<vmem>>, vector<2x16x32xf32>
    %1 = vector.shape_cast %0 : vector<2x16x32xf32> to vector<32x32xf32>
    %c0_2 = arith.constant 0 : index
    %c0_3 = arith.constant 0 : index
    %2 = vector.load %arg1[%c0_2, %c0_3] : memref<32x32xbf16, #tpu.memory_space<vmem>>, vector<32x32xbf16>
    %3 = arith.truncf %1 : vector<32x32xf32> to vector<32x32xbf16>
    %cst = arith.constant dense<0.000000e+00> : vector<32x32xf32>
    %4 = tpu.matmul %3, %2, %cst {dimension_numbers = #tpu.dot_dimension_numbers<[1], [0], [0], [1], [0, 0, 1, 1], [], []>} : vector<32x32xbf16>, vector<32x32xbf16>, vector<32x32xf32> -> vector<32x32xf32>
    %c0_4 = arith.constant 0 : index
    %c0_5 = arith.constant 0 : index
    %5 = vector.load %arg3[%c0_4, %c0_5] : memref<1x32xf32, #tpu.memory_space<vmem>>, vector<1x32xf32>
    %c0_6 = arith.constant 0 : index
    %c0_7 = arith.constant 0 : index
    %6 = vector.load %arg4[%c0_6, %c0_7] : memref<1x32xf32, #tpu.memory_space<vmem>>, vector<1x32xf32>
    %cst_8 = arith.constant dense<0.000000e+00> : vector<32xf32>
    %7 = vector.multi_reduction <add>, %4, %cst_8 [0] : vector<32x32xf32> to vector<32xf32>
    %8 = vector.shape_cast %7 : vector<32xf32> to vector<1x32xf32>
    %cst_9 = arith.constant 3.200000e+01 : f32
    %9 = vector.broadcast %cst_9 : f32 to vector<1x32xf32>
    %10 = arith.divf %8, %9 : vector<1x32xf32>
    %11 = arith.mulf %4, %4 : vector<32x32xf32>
    %cst_10 = arith.constant dense<0.000000e+00> : vector<32xf32>
    %12 = vector.multi_reduction <add>, %11, %cst_10 [0] : vector<32x32xf32> to vector<32xf32>
    %13 = vector.shape_cast %12 : vector<32xf32> to vector<1x32xf32>
    %cst_11 = arith.constant 3.200000e+01 : f32
    %14 = vector.broadcast %cst_11 : f32 to vector<1x32xf32>
    %15 = arith.divf %13, %14 : vector<1x32xf32>
    %16 = arith.mulf %10, %10 : vector<1x32xf32>
    %17 = arith.subf %15, %16 : vector<1x32xf32>
    %cst_12 = arith.constant 9.99999974E-6 : f32
    %18 = vector.broadcast %cst_12 : f32 to vector<1x32xf32>
    %19 = arith.addf %17, %18 : vector<1x32xf32>
    %20 = math.rsqrt %19 : vector<1x32xf32>
    %21 = arith.mulf %5, %20 : vector<1x32xf32>
    %22 = arith.mulf %10, %21 : vector<1x32xf32>
    %23 = arith.subf %6, %22 : vector<1x32xf32>
    %24 = vector.broadcast %21 : vector<1x32xf32> to vector<32x32xf32>
    %25 = arith.mulf %4, %24 : vector<32x32xf32>
    %26 = vector.broadcast %23 : vector<1x32xf32> to vector<32x32xf32>
    %27 = arith.addf %25, %26 : vector<32x32xf32>
    %cst_13 = arith.constant 0.000000e+00 : f32
    %28 = vector.broadcast %cst_13 : f32 to vector<32x32xf32>
    %29 = arith.maximumf %27, %28 : vector<32x32xf32>
    %c0_14 = arith.constant 0 : index
    %c0_15 = arith.constant 0 : index
    %30 = vector.load %arg2[%c0_14, %c0_15] : memref<32x32xbf16, #tpu.memory_space<vmem>>, vector<32x32xbf16>
    %31 = arith.truncf %29 : vector<32x32xf32> to vector<32x32xbf16>
    %cst_16 = arith.constant dense<0.000000e+00> : vector<32x32xf32>
    %32 = tpu.matmul %31, %30, %cst_16 {dimension_numbers = #tpu.dot_dimension_numbers<[1], [0], [0], [1], [0, 0, 1, 1], [], []>} : vector<32x32xbf16>, vector<32x32xbf16>, vector<32x32xf32> -> vector<32x32xf32>
    %c0_17 = arith.constant 0 : index
    %c0_18 = arith.constant 0 : index
    %33 = vector.load %arg5[%c0_17, %c0_18] : memref<1x32xf32, #tpu.memory_space<vmem>>, vector<1x32xf32>
    %c0_19 = arith.constant 0 : index
    %c0_20 = arith.constant 0 : index
    %34 = vector.load %arg6[%c0_19, %c0_20] : memref<1x32xf32, #tpu.memory_space<vmem>>, vector<1x32xf32>
    %cst_21 = arith.constant dense<0.000000e+00> : vector<32xf32>
    %35 = vector.multi_reduction <add>, %32, %cst_21 [0] : vector<32x32xf32> to vector<32xf32>
    %36 = vector.shape_cast %35 : vector<32xf32> to vector<1x32xf32>
    %cst_22 = arith.constant 3.200000e+01 : f32
    %37 = vector.broadcast %cst_22 : f32 to vector<1x32xf32>
    %38 = arith.divf %36, %37 : vector<1x32xf32>
    %39 = arith.mulf %32, %32 : vector<32x32xf32>
    %cst_23 = arith.constant dense<0.000000e+00> : vector<32xf32>
    %40 = vector.multi_reduction <add>, %39, %cst_23 [0] : vector<32x32xf32> to vector<32xf32>
    %41 = vector.shape_cast %40 : vector<32xf32> to vector<1x32xf32>
    %cst_24 = arith.constant 3.200000e+01 : f32
    %42 = vector.broadcast %cst_24 : f32 to vector<1x32xf32>
    %43 = arith.divf %41, %42 : vector<1x32xf32>
    %44 = arith.mulf %38, %38 : vector<1x32xf32>
    %45 = arith.subf %43, %44 : vector<1x32xf32>
    %cst_25 = arith.constant 9.99999974E-6 : f32
    %46 = vector.broadcast %cst_25 : f32 to vector<1x32xf32>
    %47 = arith.addf %45, %46 : vector<1x32xf32>
    %48 = math.rsqrt %47 : vector<1x32xf32>
    %49 = arith.mulf %33, %48 : vector<1x32xf32>
    %50 = arith.mulf %38, %49 : vector<1x32xf32>
    %51 = arith.subf %34, %50 : vector<1x32xf32>
    %52 = vector.broadcast %49 : vector<1x32xf32> to vector<32x32xf32>
    %53 = arith.mulf %32, %52 : vector<32x32xf32>
    %54 = vector.broadcast %51 : vector<1x32xf32> to vector<32x32xf32>
    %55 = arith.addf %53, %54 : vector<32x32xf32>
    %cst_26 = arith.constant 0.000000e+00 : f32
    %56 = vector.broadcast %cst_26 : f32 to vector<32x32xf32>
    %57 = arith.maximumf %55, %56 : vector<32x32xf32>
    %c0_27 = arith.constant 0 : index
    %c0_28 = arith.constant 0 : index
    %c0_29 = arith.constant 0 : index
    %58 = vector.load %arg7[%c0_27, %c0_28, %c0_29] : memref<4x32x40xbf16, #tpu.memory_space<vmem>>, vector<1x32x40xbf16>
    %59 = vector.shape_cast %58 : vector<1x32x40xbf16> to vector<32x40xbf16>
    %60 = arith.truncf %57 : vector<32x32xf32> to vector<32x32xbf16>
    %cst_30 = arith.constant dense<0.000000e+00> : vector<32x40xf32>
    %61 = tpu.matmul %60, %59, %cst_30 {dimension_numbers = #tpu.dot_dimension_numbers<[1], [0], [0], [1], [0, 0, 1, 1], [], []>} : vector<32x32xbf16>, vector<32x40xbf16>, vector<32x40xf32> -> vector<32x40xf32>
    %62 = vector.extract_strided_slice %61 {offsets = [0, 0], sizes = [32, 32], strides = [1, 1]} : vector<32x40xf32> to vector<32x32xf32>
    %c0_31 = arith.constant 0 : index
    %c0_32 = arith.constant 0 : index
    %c0_33 = arith.constant 0 : index
    %63 = vector.load %arg8[%c0_31, %c0_32, %c0_33] : memref<4x1x32xf32, #tpu.memory_space<vmem>>, vector<1x1x32xf32>
    %64 = vector.shape_cast %63 : vector<1x1x32xf32> to vector<1x32xf32>
    %65 = vector.broadcast %64 : vector<1x32xf32> to vector<32x32xf32>
    %66 = arith.addf %62, %65 : vector<32x32xf32>
    %67 = vector.shape_cast %66 : vector<32x32xf32> to vector<2x16x32xf32>
    %68 = vector.extract_strided_slice %61 {offsets = [0, 32], sizes = [32, 8], strides = [1, 1]} : vector<32x40xf32> to vector<32x8xf32>
    %69 = arith.truncf %68 : vector<32x8xf32> to vector<32x8xbf16>
    %70 = vector.shape_cast %69 : vector<32x8xbf16> to vector<2x16x8xbf16>
    "tpu.trace_start"() <{level = 10 : i32, message = "bid,bjd->bij"}> : () -> ()
    %cst_34 = arith.constant dense<0.000000e+00> : vector<2x16x16xf32>
    %71 = tpu.matmul %70, %70, %cst_34 {dimension_numbers = #tpu.dot_dimension_numbers<[2], [2], [1], [1], [0, 0, 0, 1, 1, 1], [0], [0]>} : vector<2x16x8xbf16>, vector<2x16x8xbf16>, vector<2x16x16xf32> -> vector<2x16x16xf32>
    "tpu.trace_stop"() : () -> ()
    %cst_35 = arith.constant dense<0xFF800000> : vector<2x16xf32>
    %72 = vector.multi_reduction <maximumf>, %71, %cst_35 [2] : vector<2x16x16xf32> to vector<2x16xf32>
    %73 = vector.shape_cast %72 : vector<2x16xf32> to vector<2x16x1xf32>
    %cst_36 = arith.constant dense<0xFF800000> : vector<2x1xf32>
    %74 = vector.multi_reduction <maximumf>, %73, %cst_36 [1] : vector<2x16x1xf32> to vector<2x1xf32>
    %75 = vector.shape_cast %74 : vector<2x1xf32> to vector<2x1x1xf32>
    %76 = vector.broadcast %75 : vector<2x1x1xf32> to vector<2x16x16xf32>
    %77 = arith.subf %71, %76 : vector<2x16x16xf32>
    %78 = math.exp %77 : vector<2x16x16xf32>
    %cst_37 = arith.constant dense<0.000000e+00> : vector<2x16xf32>
    %79 = vector.multi_reduction <add>, %78, %cst_37 [2] : vector<2x16x16xf32> to vector<2x16xf32>
    %80 = vector.shape_cast %79 : vector<2x16xf32> to vector<2x16x1xf32>
    %cst_38 = arith.constant dense<0.000000e+00> : vector<2x16xf32>
    %81 = vector.multi_reduction <add>, %78, %cst_38 [1] : vector<2x16x16xf32> to vector<2x16xf32>
    %82 = vector.shape_cast %81 : vector<2x16xf32> to vector<2x1x16xf32>
    %83 = tpu.reciprocal %80 {approx = true} : vector<2x16x1xf32> -> vector<2x16x1xf32>
    %84 = tpu.reciprocal %82 {approx = true} : vector<2x1x16xf32> -> vector<2x1x16xf32>
    %85 = vector.broadcast %83 : vector<2x16x1xf32> to vector<2x16x32xf32>
    %86 = arith.mulf %67, %85 : vector<2x16x32xf32>
    %87 = arith.truncf %86 : vector<2x16x32xf32> to vector<2x16x32xbf16>
    %88 = arith.truncf %78 : vector<2x16x16xf32> to vector<2x16x16xbf16>
    "tpu.trace_start"() <{level = 10 : i32, message = "bij,bjc->bic"}> : () -> ()
    %cst_39 = arith.constant dense<0.000000e+00> : vector<2x16x32xf32>
    %89 = tpu.matmul %88, %87, %cst_39 {dimension_numbers = #tpu.dot_dimension_numbers<[2], [1], [1], [2], [0, 0, 0, 1, 1, 2], [0], [0]>} : vector<2x16x16xbf16>, vector<2x16x32xbf16>, vector<2x16x32xf32> -> vector<2x16x32xf32>
    "tpu.trace_stop"() : () -> ()
    %90 = vector.broadcast %84 : vector<2x1x16xf32> to vector<2x16x16xf32>
    %91 = arith.mulf %78, %90 : vector<2x16x16xf32>
    %cst_40 = arith.constant dense<0.000000e+00> : vector<2x16xf32>
    %92 = vector.multi_reduction <add>, %91, %cst_40 [2] : vector<2x16x16xf32> to vector<2x16xf32>
    %93 = vector.shape_cast %92 : vector<2x16xf32> to vector<2x16x1xf32>
    %cst_41 = arith.constant 9.99999971E-10 : f32
    %94 = vector.broadcast %cst_41 : f32 to vector<2x16x1xf32>
    %95 = arith.addf %94, %93 : vector<2x16x1xf32>
    %96 = tpu.reciprocal %95 {approx = true} : vector<2x16x1xf32> -> vector<2x16x1xf32>
    %97 = vector.broadcast %96 : vector<2x16x1xf32> to vector<2x16x32xf32>
    %98 = arith.mulf %89, %97 : vector<2x16x32xf32>
    %99 = vector.shape_cast %98 : vector<2x16x32xf32> to vector<32x32xf32>
    %100 = arith.subf %57, %99 : vector<32x32xf32>
    %c0_42 = arith.constant 0 : index
    %c0_43 = arith.constant 0 : index
    %c0_44 = arith.constant 0 : index
    %101 = vector.load %arg9[%c0_42, %c0_43, %c0_44] : memref<4x32x32xbf16, #tpu.memory_space<vmem>>, vector<1x32x32xbf16>
    %102 = vector.shape_cast %101 : vector<1x32x32xbf16> to vector<32x32xbf16>
    %103 = arith.truncf %100 : vector<32x32xf32> to vector<32x32xbf16>
    %cst_45 = arith.constant dense<0.000000e+00> : vector<32x32xf32>
    %104 = tpu.matmul %103, %102, %cst_45 {dimension_numbers = #tpu.dot_dimension_numbers<[1], [0], [0], [1], [0, 0, 1, 1], [], []>} : vector<32x32xbf16>, vector<32x32xbf16>, vector<32x32xf32> -> vector<32x32xf32>
    %c0_46 = arith.constant 0 : index
    %c0_47 = arith.constant 0 : index
    %c0_48 = arith.constant 0 : index
    %105 = vector.load %arg10[%c0_46, %c0_47, %c0_48] : memref<4x1x32xf32, #tpu.memory_space<vmem>>, vector<1x1x32xf32>
    %106 = vector.shape_cast %105 : vector<1x1x32xf32> to vector<1x32xf32>
    %107 = vector.broadcast %106 : vector<1x32xf32> to vector<32x32xf32>
    %108 = arith.addf %104, %107 : vector<32x32xf32>
    %c0_49 = arith.constant 0 : index
    %c0_50 = arith.constant 0 : index
    %c0_51 = arith.constant 0 : index
    %109 = vector.load %arg11[%c0_49, %c0_50, %c0_51] : memref<4x1x32xf32, #tpu.memory_space<vmem>>, vector<1x1x32xf32>
    %110 = vector.shape_cast %109 : vector<1x1x32xf32> to vector<1x32xf32>
    %c0_52 = arith.constant 0 : index
    %c0_53 = arith.constant 0 : index
    %c0_54 = arith.constant 0 : index
    %111 = vector.load %arg12[%c0_52, %c0_53, %c0_54] : memref<4x1x32xf32, #tpu.memory_space<vmem>>, vector<1x1x32xf32>
    %112 = vector.shape_cast %111 : vector<1x1x32xf32> to vector<1x32xf32>
    %cst_55 = arith.constant dense<0.000000e+00> : vector<32xf32>
    %113 = vector.multi_reduction <add>, %108, %cst_55 [0] : vector<32x32xf32> to vector<32xf32>
    %114 = vector.shape_cast %113 : vector<32xf32> to vector<1x32xf32>
    %cst_56 = arith.constant 3.200000e+01 : f32
    %115 = vector.broadcast %cst_56 : f32 to vector<1x32xf32>
    %116 = arith.divf %114, %115 : vector<1x32xf32>
    %117 = arith.mulf %108, %108 : vector<32x32xf32>
    %cst_57 = arith.constant dense<0.000000e+00> : vector<32xf32>
    %118 = vector.multi_reduction <add>, %117, %cst_57 [0] : vector<32x32xf32> to vector<32xf32>
    %119 = vector.shape_cast %118 : vector<32xf32> to vector<1x32xf32>
    %cst_58 = arith.constant 3.200000e+01 : f32
    %120 = vector.broadcast %cst_58 : f32 to vector<1x32xf32>
    %121 = arith.divf %119, %120 : vector<1x32xf32>
    %122 = arith.mulf %116, %116 : vector<1x32xf32>
    %123 = arith.subf %121, %122 : vector<1x32xf32>
    %cst_59 = arith.constant 9.99999974E-6 : f32
    %124 = vector.broadcast %cst_59 : f32 to vector<1x32xf32>
    %125 = arith.addf %123, %124 : vector<1x32xf32>
    %126 = math.rsqrt %125 : vector<1x32xf32>
    %127 = arith.mulf %110, %126 : vector<1x32xf32>
    %128 = arith.mulf %116, %127 : vector<1x32xf32>
    %129 = arith.subf %112, %128 : vector<1x32xf32>
    %130 = vector.broadcast %127 : vector<1x32xf32> to vector<32x32xf32>
    %131 = arith.mulf %108, %130 : vector<32x32xf32>
    %132 = vector.broadcast %129 : vector<1x32xf32> to vector<32x32xf32>
    %133 = arith.addf %131, %132 : vector<32x32xf32>
    %cst_60 = arith.constant 0.000000e+00 : f32
    %134 = vector.broadcast %cst_60 : f32 to vector<32x32xf32>
    %135 = arith.maximumf %133, %134 : vector<32x32xf32>
    %136 = arith.addf %57, %135 : vector<32x32xf32>
    %c1 = arith.constant 1 : index
    %c0_61 = arith.constant 0 : index
    %c0_62 = arith.constant 0 : index
    %137 = vector.load %arg7[%c1, %c0_61, %c0_62] : memref<4x32x40xbf16, #tpu.memory_space<vmem>>, vector<1x32x40xbf16>
    %138 = vector.shape_cast %137 : vector<1x32x40xbf16> to vector<32x40xbf16>
    %139 = arith.truncf %136 : vector<32x32xf32> to vector<32x32xbf16>
    %cst_63 = arith.constant dense<0.000000e+00> : vector<32x40xf32>
    %140 = tpu.matmul %139, %138, %cst_63 {dimension_numbers = #tpu.dot_dimension_numbers<[1], [0], [0], [1], [0, 0, 1, 1], [], []>} : vector<32x32xbf16>, vector<32x40xbf16>, vector<32x40xf32> -> vector<32x40xf32>
    %141 = vector.extract_strided_slice %140 {offsets = [0, 0], sizes = [32, 32], strides = [1, 1]} : vector<32x40xf32> to vector<32x32xf32>
    %c1_64 = arith.constant 1 : index
    %c0_65 = arith.constant 0 : index
    %c0_66 = arith.constant 0 : index
    %142 = vector.load %arg8[%c1_64, %c0_65, %c0_66] : memref<4x1x32xf32, #tpu.memory_space<vmem>>, vector<1x1x32xf32>
    %143 = vector.shape_cast %142 : vector<1x1x32xf32> to vector<1x32xf32>
    %144 = vector.broadcast %143 : vector<1x32xf32> to vector<32x32xf32>
    %145 = arith.addf %141, %144 : vector<32x32xf32>
    %146 = vector.shape_cast %145 : vector<32x32xf32> to vector<2x16x32xf32>
    %147 = vector.extract_strided_slice %140 {offsets = [0, 32], sizes = [32, 8], strides = [1, 1]} : vector<32x40xf32> to vector<32x8xf32>
    %148 = arith.truncf %147 : vector<32x8xf32> to vector<32x8xbf16>
    %149 = vector.shape_cast %148 : vector<32x8xbf16> to vector<2x16x8xbf16>
    "tpu.trace_start"() <{level = 10 : i32, message = "bid,bjd->bij"}> : () -> ()
    %cst_67 = arith.constant dense<0.000000e+00> : vector<2x16x16xf32>
    %150 = tpu.matmul %149, %149, %cst_67 {dimension_numbers = #tpu.dot_dimension_numbers<[2], [2], [1], [1], [0, 0, 0, 1, 1, 1], [0], [0]>} : vector<2x16x8xbf16>, vector<2x16x8xbf16>, vector<2x16x16xf32> -> vector<2x16x16xf32>
    "tpu.trace_stop"() : () -> ()
    %cst_68 = arith.constant dense<0xFF800000> : vector<2x16xf32>
    %151 = vector.multi_reduction <maximumf>, %150, %cst_68 [2] : vector<2x16x16xf32> to vector<2x16xf32>
    %152 = vector.shape_cast %151 : vector<2x16xf32> to vector<2x16x1xf32>
    %cst_69 = arith.constant dense<0xFF800000> : vector<2x1xf32>
    %153 = vector.multi_reduction <maximumf>, %152, %cst_69 [1] : vector<2x16x1xf32> to vector<2x1xf32>
    %154 = vector.shape_cast %153 : vector<2x1xf32> to vector<2x1x1xf32>
    %155 = vector.broadcast %154 : vector<2x1x1xf32> to vector<2x16x16xf32>
    %156 = arith.subf %150, %155 : vector<2x16x16xf32>
    %157 = math.exp %156 : vector<2x16x16xf32>
    %cst_70 = arith.constant dense<0.000000e+00> : vector<2x16xf32>
    %158 = vector.multi_reduction <add>, %157, %cst_70 [2] : vector<2x16x16xf32> to vector<2x16xf32>
    %159 = vector.shape_cast %158 : vector<2x16xf32> to vector<2x16x1xf32>
    %cst_71 = arith.constant dense<0.000000e+00> : vector<2x16xf32>
    %160 = vector.multi_reduction <add>, %157, %cst_71 [1] : vector<2x16x16xf32> to vector<2x16xf32>
    %161 = vector.shape_cast %160 : vector<2x16xf32> to vector<2x1x16xf32>
    %162 = tpu.reciprocal %159 {approx = true} : vector<2x16x1xf32> -> vector<2x16x1xf32>
    %163 = tpu.reciprocal %161 {approx = true} : vector<2x1x16xf32> -> vector<2x1x16xf32>
    %164 = vector.broadcast %162 : vector<2x16x1xf32> to vector<2x16x32xf32>
    %165 = arith.mulf %146, %164 : vector<2x16x32xf32>
    %166 = arith.truncf %165 : vector<2x16x32xf32> to vector<2x16x32xbf16>
    %167 = arith.truncf %157 : vector<2x16x16xf32> to vector<2x16x16xbf16>
    "tpu.trace_start"() <{level = 10 : i32, message = "bij,bjc->bic"}> : () -> ()
    %cst_72 = arith.constant dense<0.000000e+00> : vector<2x16x32xf32>
    %168 = tpu.matmul %167, %166, %cst_72 {dimension_numbers = #tpu.dot_dimension_numbers<[2], [1], [1], [2], [0, 0, 0, 1, 1, 2], [0], [0]>} : vector<2x16x16xbf16>, vector<2x16x32xbf16>, vector<2x16x32xf32> -> vector<2x16x32xf32>
    "tpu.trace_stop"() : () -> ()
    %169 = vector.broadcast %163 : vector<2x1x16xf32> to vector<2x16x16xf32>
    %170 = arith.mulf %157, %169 : vector<2x16x16xf32>
    %cst_73 = arith.constant dense<0.000000e+00> : vector<2x16xf32>
    %171 = vector.multi_reduction <add>, %170, %cst_73 [2] : vector<2x16x16xf32> to vector<2x16xf32>
    %172 = vector.shape_cast %171 : vector<2x16xf32> to vector<2x16x1xf32>
    %cst_74 = arith.constant 9.99999971E-10 : f32
    %173 = vector.broadcast %cst_74 : f32 to vector<2x16x1xf32>
    %174 = arith.addf %173, %172 : vector<2x16x1xf32>
    %175 = tpu.reciprocal %174 {approx = true} : vector<2x16x1xf32> -> vector<2x16x1xf32>
    %176 = vector.broadcast %175 : vector<2x16x1xf32> to vector<2x16x32xf32>
    %177 = arith.mulf %168, %176 : vector<2x16x32xf32>
    %178 = vector.shape_cast %177 : vector<2x16x32xf32> to vector<32x32xf32>
    %179 = arith.subf %136, %178 : vector<32x32xf32>
    %c1_75 = arith.constant 1 : index
    %c0_76 = arith.constant 0 : index
    %c0_77 = arith.constant 0 : index
    %180 = vector.load %arg9[%c1_75, %c0_76, %c0_77] : memref<4x32x32xbf16, #tpu.memory_space<vmem>>, vector<1x32x32xbf16>
    %181 = vector.shape_cast %180 : vector<1x32x32xbf16> to vector<32x32xbf16>
    %182 = arith.truncf %179 : vector<32x32xf32> to vector<32x32xbf16>
    %cst_78 = arith.constant dense<0.000000e+00> : vector<32x32xf32>
    %183 = tpu.matmul %182, %181, %cst_78 {dimension_numbers = #tpu.dot_dimension_numbers<[1], [0], [0], [1], [0, 0, 1, 1], [], []>} : vector<32x32xbf16>, vector<32x32xbf16>, vector<32x32xf32> -> vector<32x32xf32>
    %c1_79 = arith.constant 1 : index
    %c0_80 = arith.constant 0 : index
    %c0_81 = arith.constant 0 : index
    %184 = vector.load %arg10[%c1_79, %c0_80, %c0_81] : memref<4x1x32xf32, #tpu.memory_space<vmem>>, vector<1x1x32xf32>
    %185 = vector.shape_cast %184 : vector<1x1x32xf32> to vector<1x32xf32>
    %186 = vector.broadcast %185 : vector<1x32xf32> to vector<32x32xf32>
    %187 = arith.addf %183, %186 : vector<32x32xf32>
    %c1_82 = arith.constant 1 : index
    %c0_83 = arith.constant 0 : index
    %c0_84 = arith.constant 0 : index
    %188 = vector.load %arg11[%c1_82, %c0_83, %c0_84] : memref<4x1x32xf32, #tpu.memory_space<vmem>>, vector<1x1x32xf32>
    %189 = vector.shape_cast %188 : vector<1x1x32xf32> to vector<1x32xf32>
    %c1_85 = arith.constant 1 : index
    %c0_86 = arith.constant 0 : index
    %c0_87 = arith.constant 0 : index
    %190 = vector.load %arg12[%c1_85, %c0_86, %c0_87] : memref<4x1x32xf32, #tpu.memory_space<vmem>>, vector<1x1x32xf32>
    %191 = vector.shape_cast %190 : vector<1x1x32xf32> to vector<1x32xf32>
    %cst_88 = arith.constant dense<0.000000e+00> : vector<32xf32>
    %192 = vector.multi_reduction <add>, %187, %cst_88 [0] : vector<32x32xf32> to vector<32xf32>
    %193 = vector.shape_cast %192 : vector<32xf32> to vector<1x32xf32>
    %cst_89 = arith.constant 3.200000e+01 : f32
    %194 = vector.broadcast %cst_89 : f32 to vector<1x32xf32>
    %195 = arith.divf %193, %194 : vector<1x32xf32>
    %196 = arith.mulf %187, %187 : vector<32x32xf32>
    %cst_90 = arith.constant dense<0.000000e+00> : vector<32xf32>
    %197 = vector.multi_reduction <add>, %196, %cst_90 [0] : vector<32x32xf32> to vector<32xf32>
    %198 = vector.shape_cast %197 : vector<32xf32> to vector<1x32xf32>
    %cst_91 = arith.constant 3.200000e+01 : f32
    %199 = vector.broadcast %cst_91 : f32 to vector<1x32xf32>
    %200 = arith.divf %198, %199 : vector<1x32xf32>
    %201 = arith.mulf %195, %195 : vector<1x32xf32>
    %202 = arith.subf %200, %201 : vector<1x32xf32>
    %cst_92 = arith.constant 9.99999974E-6 : f32
    %203 = vector.broadcast %cst_92 : f32 to vector<1x32xf32>
    %204 = arith.addf %202, %203 : vector<1x32xf32>
    %205 = math.rsqrt %204 : vector<1x32xf32>
    %206 = arith.mulf %189, %205 : vector<1x32xf32>
    %207 = arith.mulf %195, %206 : vector<1x32xf32>
    %208 = arith.subf %191, %207 : vector<1x32xf32>
    %209 = vector.broadcast %206 : vector<1x32xf32> to vector<32x32xf32>
    %210 = arith.mulf %187, %209 : vector<32x32xf32>
    %211 = vector.broadcast %208 : vector<1x32xf32> to vector<32x32xf32>
    %212 = arith.addf %210, %211 : vector<32x32xf32>
    %cst_93 = arith.constant 0.000000e+00 : f32
    %213 = vector.broadcast %cst_93 : f32 to vector<32x32xf32>
    %214 = arith.maximumf %212, %213 : vector<32x32xf32>
    %215 = arith.addf %136, %214 : vector<32x32xf32>
    %c2 = arith.constant 2 : index
    %c0_94 = arith.constant 0 : index
    %c0_95 = arith.constant 0 : index
    %216 = vector.load %arg7[%c2, %c0_94, %c0_95] : memref<4x32x40xbf16, #tpu.memory_space<vmem>>, vector<1x32x40xbf16>
    %217 = vector.shape_cast %216 : vector<1x32x40xbf16> to vector<32x40xbf16>
    %218 = arith.truncf %215 : vector<32x32xf32> to vector<32x32xbf16>
    %cst_96 = arith.constant dense<0.000000e+00> : vector<32x40xf32>
    %219 = tpu.matmul %218, %217, %cst_96 {dimension_numbers = #tpu.dot_dimension_numbers<[1], [0], [0], [1], [0, 0, 1, 1], [], []>} : vector<32x32xbf16>, vector<32x40xbf16>, vector<32x40xf32> -> vector<32x40xf32>
    %220 = vector.extract_strided_slice %219 {offsets = [0, 0], sizes = [32, 32], strides = [1, 1]} : vector<32x40xf32> to vector<32x32xf32>
    %c2_97 = arith.constant 2 : index
    %c0_98 = arith.constant 0 : index
    %c0_99 = arith.constant 0 : index
    %221 = vector.load %arg8[%c2_97, %c0_98, %c0_99] : memref<4x1x32xf32, #tpu.memory_space<vmem>>, vector<1x1x32xf32>
    %222 = vector.shape_cast %221 : vector<1x1x32xf32> to vector<1x32xf32>
    %223 = vector.broadcast %222 : vector<1x32xf32> to vector<32x32xf32>
    %224 = arith.addf %220, %223 : vector<32x32xf32>
    %225 = vector.shape_cast %224 : vector<32x32xf32> to vector<2x16x32xf32>
    %226 = vector.extract_strided_slice %219 {offsets = [0, 32], sizes = [32, 8], strides = [1, 1]} : vector<32x40xf32> to vector<32x8xf32>
    %227 = arith.truncf %226 : vector<32x8xf32> to vector<32x8xbf16>
    %228 = vector.shape_cast %227 : vector<32x8xbf16> to vector<2x16x8xbf16>
    "tpu.trace_start"() <{level = 10 : i32, message = "bid,bjd->bij"}> : () -> ()
    %cst_100 = arith.constant dense<0.000000e+00> : vector<2x16x16xf32>
    %229 = tpu.matmul %228, %228, %cst_100 {dimension_numbers = #tpu.dot_dimension_numbers<[2], [2], [1], [1], [0, 0, 0, 1, 1, 1], [0], [0]>} : vector<2x16x8xbf16>, vector<2x16x8xbf16>, vector<2x16x16xf32> -> vector<2x16x16xf32>
    "tpu.trace_stop"() : () -> ()
    %cst_101 = arith.constant dense<0xFF800000> : vector<2x16xf32>
    %230 = vector.multi_reduction <maximumf>, %229, %cst_101 [2] : vector<2x16x16xf32> to vector<2x16xf32>
    %231 = vector.shape_cast %230 : vector<2x16xf32> to vector<2x16x1xf32>
    %cst_102 = arith.constant dense<0xFF800000> : vector<2x1xf32>
    %232 = vector.multi_reduction <maximumf>, %231, %cst_102 [1] : vector<2x16x1xf32> to vector<2x1xf32>
    %233 = vector.shape_cast %232 : vector<2x1xf32> to vector<2x1x1xf32>
    %234 = vector.broadcast %233 : vector<2x1x1xf32> to vector<2x16x16xf32>
    %235 = arith.subf %229, %234 : vector<2x16x16xf32>
    %236 = math.exp %235 : vector<2x16x16xf32>
    %cst_103 = arith.constant dense<0.000000e+00> : vector<2x16xf32>
    %237 = vector.multi_reduction <add>, %236, %cst_103 [2] : vector<2x16x16xf32> to vector<2x16xf32>
    %238 = vector.shape_cast %237 : vector<2x16xf32> to vector<2x16x1xf32>
    %cst_104 = arith.constant dense<0.000000e+00> : vector<2x16xf32>
    %239 = vector.multi_reduction <add>, %236, %cst_104 [1] : vector<2x16x16xf32> to vector<2x16xf32>
    %240 = vector.shape_cast %239 : vector<2x16xf32> to vector<2x1x16xf32>
    %241 = tpu.reciprocal %238 {approx = true} : vector<2x16x1xf32> -> vector<2x16x1xf32>
    %242 = tpu.reciprocal %240 {approx = true} : vector<2x1x16xf32> -> vector<2x1x16xf32>
    %243 = vector.broadcast %241 : vector<2x16x1xf32> to vector<2x16x32xf32>
    %244 = arith.mulf %225, %243 : vector<2x16x32xf32>
    %245 = arith.truncf %244 : vector<2x16x32xf32> to vector<2x16x32xbf16>
    %246 = arith.truncf %236 : vector<2x16x16xf32> to vector<2x16x16xbf16>
    "tpu.trace_start"() <{level = 10 : i32, message = "bij,bjc->bic"}> : () -> ()
    %cst_105 = arith.constant dense<0.000000e+00> : vector<2x16x32xf32>
    %247 = tpu.matmul %246, %245, %cst_105 {dimension_numbers = #tpu.dot_dimension_numbers<[2], [1], [1], [2], [0, 0, 0, 1, 1, 2], [0], [0]>} : vector<2x16x16xbf16>, vector<2x16x32xbf16>, vector<2x16x32xf32> -> vector<2x16x32xf32>
    "tpu.trace_stop"() : () -> ()
    %248 = vector.broadcast %242 : vector<2x1x16xf32> to vector<2x16x16xf32>
    %249 = arith.mulf %236, %248 : vector<2x16x16xf32>
    %cst_106 = arith.constant dense<0.000000e+00> : vector<2x16xf32>
    %250 = vector.multi_reduction <add>, %249, %cst_106 [2] : vector<2x16x16xf32> to vector<2x16xf32>
    %251 = vector.shape_cast %250 : vector<2x16xf32> to vector<2x16x1xf32>
    %cst_107 = arith.constant 9.99999971E-10 : f32
    %252 = vector.broadcast %cst_107 : f32 to vector<2x16x1xf32>
    %253 = arith.addf %252, %251 : vector<2x16x1xf32>
    %254 = tpu.reciprocal %253 {approx = true} : vector<2x16x1xf32> -> vector<2x16x1xf32>
    %255 = vector.broadcast %254 : vector<2x16x1xf32> to vector<2x16x32xf32>
    %256 = arith.mulf %247, %255 : vector<2x16x32xf32>
    %257 = vector.shape_cast %256 : vector<2x16x32xf32> to vector<32x32xf32>
    %258 = arith.subf %215, %257 : vector<32x32xf32>
    %c2_108 = arith.constant 2 : index
    %c0_109 = arith.constant 0 : index
    %c0_110 = arith.constant 0 : index
    %259 = vector.load %arg9[%c2_108, %c0_109, %c0_110] : memref<4x32x32xbf16, #tpu.memory_space<vmem>>, vector<1x32x32xbf16>
    %260 = vector.shape_cast %259 : vector<1x32x32xbf16> to vector<32x32xbf16>
    %261 = arith.truncf %258 : vector<32x32xf32> to vector<32x32xbf16>
    %cst_111 = arith.constant dense<0.000000e+00> : vector<32x32xf32>
    %262 = tpu.matmul %261, %260, %cst_111 {dimension_numbers = #tpu.dot_dimension_numbers<[1], [0], [0], [1], [0, 0, 1, 1], [], []>} : vector<32x32xbf16>, vector<32x32xbf16>, vector<32x32xf32> -> vector<32x32xf32>
    %c2_112 = arith.constant 2 : index
    %c0_113 = arith.constant 0 : index
    %c0_114 = arith.constant 0 : index
    %263 = vector.load %arg10[%c2_112, %c0_113, %c0_114] : memref<4x1x32xf32, #tpu.memory_space<vmem>>, vector<1x1x32xf32>
    %264 = vector.shape_cast %263 : vector<1x1x32xf32> to vector<1x32xf32>
    %265 = vector.broadcast %264 : vector<1x32xf32> to vector<32x32xf32>
    %266 = arith.addf %262, %265 : vector<32x32xf32>
    %c2_115 = arith.constant 2 : index
    %c0_116 = arith.constant 0 : index
    %c0_117 = arith.constant 0 : index
    %267 = vector.load %arg11[%c2_115, %c0_116, %c0_117] : memref<4x1x32xf32, #tpu.memory_space<vmem>>, vector<1x1x32xf32>
    %268 = vector.shape_cast %267 : vector<1x1x32xf32> to vector<1x32xf32>
    %c2_118 = arith.constant 2 : index
    %c0_119 = arith.constant 0 : index
    %c0_120 = arith.constant 0 : index
    %269 = vector.load %arg12[%c2_118, %c0_119, %c0_120] : memref<4x1x32xf32, #tpu.memory_space<vmem>>, vector<1x1x32xf32>
    %270 = vector.shape_cast %269 : vector<1x1x32xf32> to vector<1x32xf32>
    %cst_121 = arith.constant dense<0.000000e+00> : vector<32xf32>
    %271 = vector.multi_reduction <add>, %266, %cst_121 [0] : vector<32x32xf32> to vector<32xf32>
    %272 = vector.shape_cast %271 : vector<32xf32> to vector<1x32xf32>
    %cst_122 = arith.constant 3.200000e+01 : f32
    %273 = vector.broadcast %cst_122 : f32 to vector<1x32xf32>
    %274 = arith.divf %272, %273 : vector<1x32xf32>
    %275 = arith.mulf %266, %266 : vector<32x32xf32>
    %cst_123 = arith.constant dense<0.000000e+00> : vector<32xf32>
    %276 = vector.multi_reduction <add>, %275, %cst_123 [0] : vector<32x32xf32> to vector<32xf32>
    %277 = vector.shape_cast %276 : vector<32xf32> to vector<1x32xf32>
    %cst_124 = arith.constant 3.200000e+01 : f32
    %278 = vector.broadcast %cst_124 : f32 to vector<1x32xf32>
    %279 = arith.divf %277, %278 : vector<1x32xf32>
    %280 = arith.mulf %274, %274 : vector<1x32xf32>
    %281 = arith.subf %279, %280 : vector<1x32xf32>
    %cst_125 = arith.constant 9.99999974E-6 : f32
    %282 = vector.broadcast %cst_125 : f32 to vector<1x32xf32>
    %283 = arith.addf %281, %282 : vector<1x32xf32>
    %284 = math.rsqrt %283 : vector<1x32xf32>
    %285 = arith.mulf %268, %284 : vector<1x32xf32>
    %286 = arith.mulf %274, %285 : vector<1x32xf32>
    %287 = arith.subf %270, %286 : vector<1x32xf32>
    %288 = vector.broadcast %285 : vector<1x32xf32> to vector<32x32xf32>
    %289 = arith.mulf %266, %288 : vector<32x32xf32>
    %290 = vector.broadcast %287 : vector<1x32xf32> to vector<32x32xf32>
    %291 = arith.addf %289, %290 : vector<32x32xf32>
    %cst_126 = arith.constant 0.000000e+00 : f32
    %292 = vector.broadcast %cst_126 : f32 to vector<32x32xf32>
    %293 = arith.maximumf %291, %292 : vector<32x32xf32>
    %294 = arith.addf %215, %293 : vector<32x32xf32>
    %c3 = arith.constant 3 : index
    %c0_127 = arith.constant 0 : index
    %c0_128 = arith.constant 0 : index
    %295 = vector.load %arg7[%c3, %c0_127, %c0_128] : memref<4x32x40xbf16, #tpu.memory_space<vmem>>, vector<1x32x40xbf16>
    %296 = vector.shape_cast %295 : vector<1x32x40xbf16> to vector<32x40xbf16>
    %297 = arith.truncf %294 : vector<32x32xf32> to vector<32x32xbf16>
    %cst_129 = arith.constant dense<0.000000e+00> : vector<32x40xf32>
    %298 = tpu.matmul %297, %296, %cst_129 {dimension_numbers = #tpu.dot_dimension_numbers<[1], [0], [0], [1], [0, 0, 1, 1], [], []>} : vector<32x32xbf16>, vector<32x40xbf16>, vector<32x40xf32> -> vector<32x40xf32>
    %299 = vector.extract_strided_slice %298 {offsets = [0, 0], sizes = [32, 32], strides = [1, 1]} : vector<32x40xf32> to vector<32x32xf32>
    %c3_130 = arith.constant 3 : index
    %c0_131 = arith.constant 0 : index
    %c0_132 = arith.constant 0 : index
    %300 = vector.load %arg8[%c3_130, %c0_131, %c0_132] : memref<4x1x32xf32, #tpu.memory_space<vmem>>, vector<1x1x32xf32>
    %301 = vector.shape_cast %300 : vector<1x1x32xf32> to vector<1x32xf32>
    %302 = vector.broadcast %301 : vector<1x32xf32> to vector<32x32xf32>
    %303 = arith.addf %299, %302 : vector<32x32xf32>
    %304 = vector.shape_cast %303 : vector<32x32xf32> to vector<2x16x32xf32>
    %305 = vector.extract_strided_slice %298 {offsets = [0, 32], sizes = [32, 8], strides = [1, 1]} : vector<32x40xf32> to vector<32x8xf32>
    %306 = arith.truncf %305 : vector<32x8xf32> to vector<32x8xbf16>
    %307 = vector.shape_cast %306 : vector<32x8xbf16> to vector<2x16x8xbf16>
    "tpu.trace_start"() <{level = 10 : i32, message = "bid,bjd->bij"}> : () -> ()
    %cst_133 = arith.constant dense<0.000000e+00> : vector<2x16x16xf32>
    %308 = tpu.matmul %307, %307, %cst_133 {dimension_numbers = #tpu.dot_dimension_numbers<[2], [2], [1], [1], [0, 0, 0, 1, 1, 1], [0], [0]>} : vector<2x16x8xbf16>, vector<2x16x8xbf16>, vector<2x16x16xf32> -> vector<2x16x16xf32>
    "tpu.trace_stop"() : () -> ()
    %cst_134 = arith.constant dense<0xFF800000> : vector<2x16xf32>
    %309 = vector.multi_reduction <maximumf>, %308, %cst_134 [2] : vector<2x16x16xf32> to vector<2x16xf32>
    %310 = vector.shape_cast %309 : vector<2x16xf32> to vector<2x16x1xf32>
    %cst_135 = arith.constant dense<0xFF800000> : vector<2x1xf32>
    %311 = vector.multi_reduction <maximumf>, %310, %cst_135 [1] : vector<2x16x1xf32> to vector<2x1xf32>
    %312 = vector.shape_cast %311 : vector<2x1xf32> to vector<2x1x1xf32>
    %313 = vector.broadcast %312 : vector<2x1x1xf32> to vector<2x16x16xf32>
    %314 = arith.subf %308, %313 : vector<2x16x16xf32>
    %315 = math.exp %314 : vector<2x16x16xf32>
    %cst_136 = arith.constant dense<0.000000e+00> : vector<2x16xf32>
    %316 = vector.multi_reduction <add>, %315, %cst_136 [2] : vector<2x16x16xf32> to vector<2x16xf32>
    %317 = vector.shape_cast %316 : vector<2x16xf32> to vector<2x16x1xf32>
    %cst_137 = arith.constant dense<0.000000e+00> : vector<2x16xf32>
    %318 = vector.multi_reduction <add>, %315, %cst_137 [1] : vector<2x16x16xf32> to vector<2x16xf32>
    %319 = vector.shape_cast %318 : vector<2x16xf32> to vector<2x1x16xf32>
    %320 = tpu.reciprocal %317 {approx = true} : vector<2x16x1xf32> -> vector<2x16x1xf32>
    %321 = tpu.reciprocal %319 {approx = true} : vector<2x1x16xf32> -> vector<2x1x16xf32>
    %322 = vector.broadcast %320 : vector<2x16x1xf32> to vector<2x16x32xf32>
    %323 = arith.mulf %304, %322 : vector<2x16x32xf32>
    %324 = arith.truncf %323 : vector<2x16x32xf32> to vector<2x16x32xbf16>
    %325 = arith.truncf %315 : vector<2x16x16xf32> to vector<2x16x16xbf16>
    "tpu.trace_start"() <{level = 10 : i32, message = "bij,bjc->bic"}> : () -> ()
    %cst_138 = arith.constant dense<0.000000e+00> : vector<2x16x32xf32>
    %326 = tpu.matmul %325, %324, %cst_138 {dimension_numbers = #tpu.dot_dimension_numbers<[2], [1], [1], [2], [0, 0, 0, 1, 1, 2], [0], [0]>} : vector<2x16x16xbf16>, vector<2x16x32xbf16>, vector<2x16x32xf32> -> vector<2x16x32xf32>
    "tpu.trace_stop"() : () -> ()
    %327 = vector.broadcast %321 : vector<2x1x16xf32> to vector<2x16x16xf32>
    %328 = arith.mulf %315, %327 : vector<2x16x16xf32>
    %cst_139 = arith.constant dense<0.000000e+00> : vector<2x16xf32>
    %329 = vector.multi_reduction <add>, %328, %cst_139 [2] : vector<2x16x16xf32> to vector<2x16xf32>
    %330 = vector.shape_cast %329 : vector<2x16xf32> to vector<2x16x1xf32>
    %cst_140 = arith.constant 9.99999971E-10 : f32
    %331 = vector.broadcast %cst_140 : f32 to vector<2x16x1xf32>
    %332 = arith.addf %331, %330 : vector<2x16x1xf32>
    %333 = tpu.reciprocal %332 {approx = true} : vector<2x16x1xf32> -> vector<2x16x1xf32>
    %334 = vector.broadcast %333 : vector<2x16x1xf32> to vector<2x16x32xf32>
    %335 = arith.mulf %326, %334 : vector<2x16x32xf32>
    %336 = vector.shape_cast %335 : vector<2x16x32xf32> to vector<32x32xf32>
    %337 = arith.subf %294, %336 : vector<32x32xf32>
    %c3_141 = arith.constant 3 : index
    %c0_142 = arith.constant 0 : index
    %c0_143 = arith.constant 0 : index
    %338 = vector.load %arg9[%c3_141, %c0_142, %c0_143] : memref<4x32x32xbf16, #tpu.memory_space<vmem>>, vector<1x32x32xbf16>
    %339 = vector.shape_cast %338 : vector<1x32x32xbf16> to vector<32x32xbf16>
    %340 = arith.truncf %337 : vector<32x32xf32> to vector<32x32xbf16>
    %cst_144 = arith.constant dense<0.000000e+00> : vector<32x32xf32>
    %341 = tpu.matmul %340, %339, %cst_144 {dimension_numbers = #tpu.dot_dimension_numbers<[1], [0], [0], [1], [0, 0, 1, 1], [], []>} : vector<32x32xbf16>, vector<32x32xbf16>, vector<32x32xf32> -> vector<32x32xf32>
    %c3_145 = arith.constant 3 : index
    %c0_146 = arith.constant 0 : index
    %c0_147 = arith.constant 0 : index
    %342 = vector.load %arg10[%c3_145, %c0_146, %c0_147] : memref<4x1x32xf32, #tpu.memory_space<vmem>>, vector<1x1x32xf32>
    %343 = vector.shape_cast %342 : vector<1x1x32xf32> to vector<1x32xf32>
    %344 = vector.broadcast %343 : vector<1x32xf32> to vector<32x32xf32>
    %345 = arith.addf %341, %344 : vector<32x32xf32>
    %c3_148 = arith.constant 3 : index
    %c0_149 = arith.constant 0 : index
    %c0_150 = arith.constant 0 : index
    %346 = vector.load %arg11[%c3_148, %c0_149, %c0_150] : memref<4x1x32xf32, #tpu.memory_space<vmem>>, vector<1x1x32xf32>
    %347 = vector.shape_cast %346 : vector<1x1x32xf32> to vector<1x32xf32>
    %c3_151 = arith.constant 3 : index
    %c0_152 = arith.constant 0 : index
    %c0_153 = arith.constant 0 : index
    %348 = vector.load %arg12[%c3_151, %c0_152, %c0_153] : memref<4x1x32xf32, #tpu.memory_space<vmem>>, vector<1x1x32xf32>
    %349 = vector.shape_cast %348 : vector<1x1x32xf32> to vector<1x32xf32>
    %cst_154 = arith.constant dense<0.000000e+00> : vector<32xf32>
    %350 = vector.multi_reduction <add>, %345, %cst_154 [0] : vector<32x32xf32> to vector<32xf32>
    %351 = vector.shape_cast %350 : vector<32xf32> to vector<1x32xf32>
    %cst_155 = arith.constant 3.200000e+01 : f32
    %352 = vector.broadcast %cst_155 : f32 to vector<1x32xf32>
    %353 = arith.divf %351, %352 : vector<1x32xf32>
    %354 = arith.mulf %345, %345 : vector<32x32xf32>
    %cst_156 = arith.constant dense<0.000000e+00> : vector<32xf32>
    %355 = vector.multi_reduction <add>, %354, %cst_156 [0] : vector<32x32xf32> to vector<32xf32>
    %356 = vector.shape_cast %355 : vector<32xf32> to vector<1x32xf32>
    %cst_157 = arith.constant 3.200000e+01 : f32
    %357 = vector.broadcast %cst_157 : f32 to vector<1x32xf32>
    %358 = arith.divf %356, %357 : vector<1x32xf32>
    %359 = arith.mulf %353, %353 : vector<1x32xf32>
    %360 = arith.subf %358, %359 : vector<1x32xf32>
    %cst_158 = arith.constant 9.99999974E-6 : f32
    %361 = vector.broadcast %cst_158 : f32 to vector<1x32xf32>
    %362 = arith.addf %360, %361 : vector<1x32xf32>
    %363 = math.rsqrt %362 : vector<1x32xf32>
    %364 = arith.mulf %347, %363 : vector<1x32xf32>
    %365 = arith.mulf %353, %364 : vector<1x32xf32>
    %366 = arith.subf %349, %365 : vector<1x32xf32>
    %367 = vector.broadcast %364 : vector<1x32xf32> to vector<32x32xf32>
    %368 = arith.mulf %345, %367 : vector<32x32xf32>
    %369 = vector.broadcast %366 : vector<1x32xf32> to vector<32x32xf32>
    %370 = arith.addf %368, %369 : vector<32x32xf32>
    %cst_159 = arith.constant 0.000000e+00 : f32
    %371 = vector.broadcast %cst_159 : f32 to vector<32x32xf32>
    %372 = arith.maximumf %370, %371 : vector<32x32xf32>
    %373 = arith.addf %294, %372 : vector<32x32xf32>
    %374 = tpu.concatenate %136, %215, %294, %373 in 1 : vector<32x32xf32>, vector<32x32xf32>, vector<32x32xf32>, vector<32x32xf32> -> vector<32x128xf32>
    %c0_160 = arith.constant 0 : index
    %c0_161 = arith.constant 0 : index
    %375 = vector.load %arg13[%c0_160, %c0_161] : memref<32x128xf32, #tpu.memory_space<vmem>>, vector<32x128xf32>
    tpu.vector_store %arg13[%c0_160, %c0_161], %374 {strides = array<i32>} : memref<32x128xf32, #tpu.memory_space<vmem>>, vector<32x128xf32>,
    return
  }
}

</mosaic_0001>

<llo_original>
// kernel: tpu_custom_call.1
$region0: #{tpu_custom_call.1}
  #allocation0 [shape = 'u32[]', space=smem, size = 0x4, offset = 0x4, fixed_abs, tag = 'smem constant byte address 0x4 - core index']
  #allocation1 [shape = 'u32[144,128]{1,0:T(1,128)}', space=vmem, size = 0x12000, scoped, tag = 'internal scratch']
  %s0 = inlined_call_operand.hbm [shape: f32[2,16,32], index: 0, kind: input, shape index: {}]
  %s1 = inlined_call_operand.hbm [shape: bf16[32,32], index: 1, kind: input, shape index: {}]
  %s2 = inlined_call_operand.hbm [shape: bf16[32,32], index: 2, kind: input, shape index: {}]
  %s3 = inlined_call_operand.hbm [shape: f32[1,32], index: 3, kind: input, shape index: {}]
  %s4 = inlined_call_operand.hbm [shape: f32[1,32], index: 4, kind: input, shape index: {}]
  %s5 = inlined_call_operand.hbm [shape: f32[1,32], index: 5, kind: input, shape index: {}]
  %s6 = inlined_call_operand.hbm [shape: f32[1,32], index: 6, kind: input, shape index: {}]
  %s7 = inlined_call_operand.hbm [shape: bf16[4,32,40], index: 7, kind: input, shape index: {}]
  %s8 = inlined_call_operand.hbm [shape: f32[4,1,32], index: 8, kind: input, shape index: {}]
  %s9 = inlined_call_operand.hbm [shape: bf16[4,32,32], index: 9, kind: input, shape index: {}]
  %s10 = inlined_call_operand.hbm [shape: f32[4,1,32], index: 10, kind: input, shape index: {}]
  %s11 = inlined_call_operand.hbm [shape: f32[4,1,32], index: 11, kind: input, shape index: {}]
  %s12 = inlined_call_operand.hbm [shape: f32[4,1,32], index: 12, kind: input, shape index: {}]
  %s13 = inlined_call_operand.hbm [shape: f32[32,128], index: 13, kind: output, shape index: {}]
  %s14 = sld [smem:[#allocation0]]
  $region114: #{tpu_custom_call.1} parent=0
    _
  %s16 = ssub.s32 1, %s14
  %s17 = scalar_select 0, %s16, %s14
  $region1: #{tpu_custom_call.1} parent=0
    #allocation2 [shape = 'u8[16384]{0}', space=vmem, size = 0x4000, scoped, tag = 'input window, operand 0, single buffered']
    #allocation3 [shape = 's32[1]{0}', space=sflag, size = 0x4, scoped, tag = 'scoped memory for tpu_custom_call.1']
    #allocation4 [shape = 's32[1]{0}', space=sflag, size = 0x4, scoped, tag = 'scoped memory for tpu_custom_call.1']
    #allocation5 [shape = 'u8[8192]{0}', space=vmem, size = 0x2000, scoped, tag = 'input window, operand 1, single buffered']
    #allocation6 [shape = 's32[1]{0}', space=sflag, size = 0x4, scoped, tag = 'scoped memory for tpu_custom_call.1']
    #allocation7 [shape = 'u8[8192]{0}', space=vmem, size = 0x2000, scoped, tag = 'input window, operand 2, single buffered']
    #allocation8 [shape = 'u8[512]{0}', space=vmem, size = 0x400, scoped, tag = 'input window, operand 3, single buffered']
    #allocation9 [shape = 's32[1]{0}', space=sflag, size = 0x4, scoped, tag = 'scoped memory for tpu_custom_call.1']
    #allocation10 [shape = 'u8[512]{0}', space=vmem, size = 0x400, scoped, tag = 'input window, operand 4, single buffered']
    #allocation11 [shape = 'u8[512]{0}', space=vmem, size = 0x400, scoped, tag = 'input window, operand 5, single buffered']
    #allocation12 [shape = 's32[1]{0}', space=sflag, size = 0x4, scoped, tag = 'scoped memory for tpu_custom_call.1']
    #allocation13 [shape = 'u8[512]{0}', space=vmem, size = 0x400, scoped, tag = 'input window, operand 6, single buffered']
    #allocation14 [shape = 'u8[32768]{0}', space=vmem, size = 0x8000, scoped, tag = 'input window, operand 7, single buffered']
    #allocation15 [shape = 's32[1]{0}', space=sflag, size = 0x4, scoped, tag = 'scoped memory for tpu_custom_call.1']
    #allocation16 [shape = 'u8[2048]{0}', space=vmem, size = 0x800, scoped, tag = 'input window, operand 8, single buffered']
    #allocation17 [shape = 'u8[32768]{0}', space=vmem, size = 0x8000, scoped, tag = 'input window, operand 9, single buffered']
    #allocation18 [shape = 's32[1]{0}', space=sflag, size = 0x4, scoped, tag = 'scoped memory for tpu_custom_call.1']
    #allocation19 [shape = 'u8[2048]{0}', space=vmem, size = 0x800, scoped, tag = 'input window, operand 10, single buffered']
    #allocation20 [shape = 'u8[2048]{0}', space=vmem, size = 0x800, scoped, tag = 'input window, operand 11, single buffered']
    #allocation21 [shape = 's32[1]{0}', space=sflag, size = 0x4, scoped, tag = 'scoped memory for tpu_custom_call.1']
    #allocation22 [shape = 'u8[2048]{0}', space=vmem, size = 0x800, scoped, tag = 'input window, operand 12, single buffered']
    #allocation23 [shape = 'u8[16384]{0}', space=vmem, size = 0x4000, scoped, tag = 'output window, operand 0, single buffered']
    %18 = vsyncpa [#allocation3], 0
    %19 = vsyncpa [#allocation6], 0
    %20 = vsyncpa [#allocation9], 0
    %21 = vsyncpa [#allocation12], 0
    %22 = vsyncpa [#allocation15], 0
    %23 = vsyncpa [#allocation18], 0
    %24 = vsyncpa [#allocation21], 0
    %25 = vsyncpa [#allocation4], 0
    // Predicated region
    $region2: #{tpu_custom_call.1} parent=1 // pred_check
      _
    $region3: #{tpu_custom_call.1} parent=1 // pred_check_branch
      %27 = sbr.rel (0) target = $region5
    $region4: #{tpu_custom_call.1} parent=1 // pred_region
      %s29 = ssub.s32 512, 512
      %30 = vsyncadd [#allocation3], %s29
      %s31 = sshll.u32 [#allocation2], 4
      %s32 = int_to_ptr.vmem [resolvable:$true] %s31
      %37 = dma.hbm_to_vmem [thread:$0]  %s0, 512, %s32, [#allocation3], 128, 128, 8
    $region5: #{tpu_custom_call.1} parent=1 // pred_fallthru
      _
    // Predicated region
    $region6: #{tpu_custom_call.1} parent=1 // pred_check
      _
    $region7: #{tpu_custom_call.1} parent=1 // pred_check_branch
      %39 = sbr.rel (0) target = $region9
    $region8: #{tpu_custom_call.1} parent=1 // pred_region
      %s41 = ssub.s32 256, 256
      %42 = vsyncadd [#allocation6], %s41
      %s43 = sshll.u32 [#allocation5], 4
      %s44 = int_to_ptr.vmem [resolvable:$true] %s43
      %49 = dma.hbm_to_vmem [thread:$0]  %s1, 256, %s44, [#allocation6], 64, 64, 4
    $region9: #{tpu_custom_call.1} parent=1 // pred_fallthru
      _
    // Predicated region
    $region10: #{tpu_custom_call.1} parent=1 // pred_check
      _
    $region11: #{tpu_custom_call.1} parent=1 // pred_check_branch
      %51 = sbr.rel (0) target = $region13
    $region12: #{tpu_custom_call.1} parent=1 // pred_region
      %s53 = ssub.s32 256, 256
      %54 = vsyncadd [#allocation6], %s53
      %s55 = sshll.u32 [#allocation7], 4
      %s56 = int_to_ptr.vmem [resolvable:$true] %s55
      %61 = dma.hbm_to_vmem [thread:$0]  %s2, 256, %s56, [#allocation6], 64, 64, 4
    $region13: #{tpu_custom_call.1} parent=1 // pred_fallthru
      _
    // Predicated region
    $region14: #{tpu_custom_call.1} parent=1 // pred_check
      _
    $region15: #{tpu_custom_call.1} parent=1 // pred_check_branch
      %63 = sbr.rel (0) target = $region17
    $region16: #{tpu_custom_call.1} parent=1 // pred_region
      %s65 = ssub.s32 16, 16
      %66 = vsyncadd [#allocation9], %s65
      %s68 = sshll.u32 [#allocation8], 4
      %s69 = int_to_ptr.vmem [resolvable:$true] %s68
      %71 = dma.hbm_to_vmem [thread:$0]  %s3, 16, %s69, [#allocation9]
    $region17: #{tpu_custom_call.1} parent=1 // pred_fallthru
      _
    // Predicated region
    $region18: #{tpu_custom_call.1} parent=1 // pred_check
      _
    $region19: #{tpu_custom_call.1} parent=1 // pred_check_branch
      %73 = sbr.rel (0) target = $region21
    $region20: #{tpu_custom_call.1} parent=1 // pred_region
      %s75 = ssub.s32 16, 16
      %76 = vsyncadd [#allocation9], %s75
      %s78 = sshll.u32 [#allocation10], 4
      %s79 = int_to_ptr.vmem [resolvable:$true] %s78
      %81 = dma.hbm_to_vmem [thread:$0]  %s4, 16, %s79, [#allocation9]
    $region21: #{tpu_custom_call.1} parent=1 // pred_fallthru
      _
    // Predicated region
    $region22: #{tpu_custom_call.1} parent=1 // pred_check
      _
    $region23: #{tpu_custom_call.1} parent=1 // pred_check_branch
      %83 = sbr.rel (0) target = $region25
    $region24: #{tpu_custom_call.1} parent=1 // pred_region
      %s85 = ssub.s32 16, 16
      %86 = vsyncadd [#allocation12], %s85
      %s88 = sshll.u32 [#allocation11], 4
      %s89 = int_to_ptr.vmem [resolvable:$true] %s88
      %91 = dma.hbm_to_vmem [thread:$0]  %s5, 16, %s89, [#allocation12]
    $region25: #{tpu_custom_call.1} parent=1 // pred_fallthru
      _
    // Predicated region
    $region26: #{tpu_custom_call.1} parent=1 // pred_check
      _
    $region27: #{tpu_custom_call.1} parent=1 // pred_check_branch
      %93 = sbr.rel (0) target = $region29
    $region28: #{tpu_custom_call.1} parent=1 // pred_region
      %s95 = ssub.s32 16, 16
      %96 = vsyncadd [#allocation12], %s95
      %s98 = sshll.u32 [#allocation13], 4
      %s99 = int_to_ptr.vmem [resolvable:$true] %s98
      %101 = dma.hbm_to_vmem [thread:$0]  %s6, 16, %s99, [#allocation12]
    $region29: #{tpu_custom_call.1} parent=1 // pred_fallthru
      _
    // Predicated region
    $region30: #{tpu_custom_call.1} parent=1 // pred_check
      _
    $region31: #{tpu_custom_call.1} parent=1 // pred_check_branch
      %103 = sbr.rel (0) target = $region33
    $region32: #{tpu_custom_call.1} parent=1 // pred_region
      %s105 = ssub.s32 1024, 1024
      %106 = vsyncadd [#allocation15], %s105
      %s107 = sshll.u32 [#allocation14], 4
      %s108 = int_to_ptr.vmem [resolvable:$true] %s107
      %113 = dma.hbm_to_vmem [thread:$0]  %s7, 1024, %s108, [#allocation15], 64, 64, 4
    $region33: #{tpu_custom_call.1} parent=1 // pred_fallthru
      _
    // Predicated region
    $region34: #{tpu_custom_call.1} parent=1 // pred_check
      _
    $region35: #{tpu_custom_call.1} parent=1 // pred_check_branch
      %115 = sbr.rel (0) target = $region37
    $region36: #{tpu_custom_call.1} parent=1 // pred_region
      %s117 = ssub.s32 64, 64
      %118 = vsyncadd [#allocation15], %s117
      %s119 = sshll.u32 [#allocation16], 4
      %s120 = int_to_ptr.vmem [resolvable:$true] %s119
      %125 = dma.hbm_to_vmem [thread:$0]  %s8, 64, %s120, [#allocation15], 16, 16, 1
    $region37: #{tpu_custom_call.1} parent=1 // pred_fallthru
      _
    // Predicated region
    $region38: #{tpu_custom_call.1} parent=1 // pred_check
      _
    $region39: #{tpu_custom_call.1} parent=1 // pred_check_branch
      %127 = sbr.rel (0) target = $region41
    $region40: #{tpu_custom_call.1} parent=1 // pred_region
      %s129 = ssub.s32 1024, 1024
      %130 = vsyncadd [#allocation18], %s129
      %s131 = sshll.u32 [#allocation17], 4
      %s132 = int_to_ptr.vmem [resolvable:$true] %s131
      %137 = dma.hbm_to_vmem [thread:$0]  %s9, 1024, %s132, [#allocation18], 64, 64, 4
    $region41: #{tpu_custom_call.1} parent=1 // pred_fallthru
      _
    // Predicated region
    $region42: #{tpu_custom_call.1} parent=1 // pred_check
      _
    $region43: #{tpu_custom_call.1} parent=1 // pred_check_branch
      %139 = sbr.rel (0) target = $region45
    $region44: #{tpu_custom_call.1} parent=1 // pred_region
      %s141 = ssub.s32 64, 64
      %142 = vsyncadd [#allocation18], %s141
      %s143 = sshll.u32 [#allocation19], 4
      %s144 = int_to_ptr.vmem [resolvable:$true] %s143
      %149 = dma.hbm_to_vmem [thread:$0]  %s10, 64, %s144, [#allocation18], 16, 16, 1
    $region45: #{tpu_custom_call.1} parent=1 // pred_fallthru
      _
    // Predicated region
    $region46: #{tpu_custom_call.1} parent=1 // pred_check
      _
    $region47: #{tpu_custom_call.1} parent=1 // pred_check_branch
      %151 = sbr.rel (0) target = $region49
    $region48: #{tpu_custom_call.1} parent=1 // pred_region
      %s153 = ssub.s32 64, 64
      %154 = vsyncadd [#allocation21], %s153
      %s155 = sshll.u32 [#allocation20], 4
      %s156 = int_to_ptr.vmem [resolvable:$true] %s155
      %161 = dma.hbm_to_vmem [thread:$0]  %s11, 64, %s156, [#allocation21], 16, 16, 1
    $region49: #{tpu_custom_call.1} parent=1 // pred_fallthru
      _
    // Predicated region
    $region50: #{tpu_custom_call.1} parent=1 // pred_check
      _
    $region51: #{tpu_custom_call.1} parent=1 // pred_check_branch
      %163 = sbr.rel (0) target = $region53
    $region52: #{tpu_custom_call.1} parent=1 // pred_region
      %s165 = ssub.s32 64, 64
      %166 = vsyncadd [#allocation21], %s165
      %s167 = sshll.u32 [#allocation22], 4
      %s168 = int_to_ptr.vmem [resolvable:$true] %s167
      %173 = dma.hbm_to_vmem [thread:$0]  %s12, 64, %s168, [#allocation21], 16, 16, 1
    $region53: #{tpu_custom_call.1} parent=1 // pred_fallthru
      _
    // Predicated region
    $region54: #{tpu_custom_call.1} parent=1 // pred_check
      _
    $region55: #{tpu_custom_call.1} parent=1 // pred_check_branch
      %175 = sbr.rel (0) target = $region57
    $region56: #{tpu_custom_call.1} parent=1 // pred_region
      %176 = dma.done [#allocation3], 512
    $region57: #{tpu_custom_call.1} parent=1 // pred_fallthru
      _
    // Predicated region
    $region58: #{tpu_custom_call.1} parent=1 // pred_check
      _
    $region59: #{tpu_custom_call.1} parent=1 // pred_check_branch
      %178 = sbr.rel (0) target = $region61
    $region60: #{tpu_custom_call.1} parent=1 // pred_region
      %179 = dma.done [#allocation6], 256
    $region61: #{tpu_custom_call.1} parent=1 // pred_fallthru
      _
    // Predicated region
    $region62: #{tpu_custom_call.1} parent=1 // pred_check
      _
    $region63: #{tpu_custom_call.1} parent=1 // pred_check_branch
      %181 = sbr.rel (0) target = $region65
    $region64: #{tpu_custom_call.1} parent=1 // pred_region
      %182 = dma.done [#allocation6], 256
    $region65: #{tpu_custom_call.1} parent=1 // pred_fallthru
      _
    // Predicated region
    $region66: #{tpu_custom_call.1} parent=1 // pred_check
      _
    $region67: #{tpu_custom_call.1} parent=1 // pred_check_branch
      %184 = sbr.rel (0) target = $region69
    $region68: #{tpu_custom_call.1} parent=1 // pred_region
      %185 = dma.done [#allocation9], 16
    $region69: #{tpu_custom_call.1} parent=1 // pred_fallthru
      _
    // Predicated region
    $region70: #{tpu_custom_call.1} parent=1 // pred_check
      _
    $region71: #{tpu_custom_call.1} parent=1 // pred_check_branch
      %187 = sbr.rel (0) target = $region73
    $region72: #{tpu_custom_call.1} parent=1 // pred_region
      %188 = dma.done [#allocation9], 16
    $region73: #{tpu_custom_call.1} parent=1 // pred_fallthru
      _
    // Predicated region
    $region74: #{tpu_custom_call.1} parent=1 // pred_check
      _
    $region75: #{tpu_custom_call.1} parent=1 // pred_check_branch
      %190 = sbr.rel (0) target = $region77
    $region76: #{tpu_custom_call.1} parent=1 // pred_region
      %191 = dma.done [#allocation12], 16
    $region77: #{tpu_custom_call.1} parent=1 // pred_fallthru
      _
    // Predicated region
    $region78: #{tpu_custom_call.1} parent=1 // pred_check
      _
    $region79: #{tpu_custom_call.1} parent=1 // pred_check_branch
      %193 = sbr.rel (0) target = $region81
    $region80: #{tpu_custom_call.1} parent=1 // pred_region
      %194 = dma.done [#allocation12], 16
    $region81: #{tpu_custom_call.1} parent=1 // pred_fallthru
      _
    // Predicated region
    $region82: #{tpu_custom_call.1} parent=1 // pred_check
      _
    $region83: #{tpu_custom_call.1} parent=1 // pred_check_branch
      %196 = sbr.rel (0) target = $region85
    $region84: #{tpu_custom_call.1} parent=1 // pred_region
      %197 = dma.done [#allocation15], 1024
    $region85: #{tpu_custom_call.1} parent=1 // pred_fallthru
      _
    // Predicated region
    $region86: #{tpu_custom_call.1} parent=1 // pred_check
      _
    $region87: #{tpu_custom_call.1} parent=1 // pred_check_branch
      %199 = sbr.rel (0) target = $region89
    $region88: #{tpu_custom_call.1} parent=1 // pred_region
      %200 = dma.done [#allocation15], 64
    $region89: #{tpu_custom_call.1} parent=1 // pred_fallthru
      _
    // Predicated region
    $region90: #{tpu_custom_call.1} parent=1 // pred_check
      _
    $region91: #{tpu_custom_call.1} parent=1 // pred_check_branch
      %202 = sbr.rel (0) target = $region93
    $region92: #{tpu_custom_call.1} parent=1 // pred_region
      %203 = dma.done [#allocation18], 1024
    $region93: #{tpu_custom_call.1} parent=1 // pred_fallthru
      _
    // Predicated region
    $region94: #{tpu_custom_call.1} parent=1 // pred_check
      _
    $region95: #{tpu_custom_call.1} parent=1 // pred_check_branch
      %205 = sbr.rel (0) target = $region97
    $region96: #{tpu_custom_call.1} parent=1 // pred_region
      %206 = dma.done [#allocation18], 64
    $region97: #{tpu_custom_call.1} parent=1 // pred_fallthru
      _
    // Predicated region
    $region98: #{tpu_custom_call.1} parent=1 // pred_check
      _
    $region99: #{tpu_custom_call.1} parent=1 // pred_check_branch
      %208 = sbr.rel (0) target = $region101
    $region100: #{tpu_custom_call.1} parent=1 // pred_region
      %209 = dma.done [#allocation21], 64
    $region101: #{tpu_custom_call.1} parent=1 // pred_fallthru
      _
    // Predicated region
    $region102: #{tpu_custom_call.1} parent=1 // pred_check
      _
    $region103: #{tpu_custom_call.1} parent=1 // pred_check_branch
      %211 = sbr.rel (0) target = $region105
    $region104: #{tpu_custom_call.1} parent=1 // pred_region
      %212 = dma.done [#allocation21], 64
    $region105: #{tpu_custom_call.1} parent=1 // pred_fallthru
      _
    %v214 = vld [vmem:[#allocation2] sm:$0xff]
    %v215 = vld [vmem:[#allocation2 + $0x8] sm:$0xff]
    %v216 = vld [vmem:[#allocation2 + $0x10] sm:$0xff]
    %v217 = vld [vmem:[#allocation2 + $0x18] sm:$0xff]
    %v218 = vld [vmem:[#allocation5] sm:$0xf]
    %v219 = vld [vmem:[#allocation5 + $0x4] sm:$0xf]
    %v220 = vld [vmem:[#allocation5 + $0x8] sm:$0xf]
    %v221 = vld [vmem:[#allocation5 + $0xc] sm:$0xf]
    %v222 = vpack.c.bf16 %v215, %v214
    %v223 = vpack.c.bf16 %v217, %v216
    %v228 = vunpack.c.l.b16 %v218
    %v229 = vunpack.c.l.b16 %v219
    %v230 = vunpack.c.l.b16 %v220
    %v231 = vunpack.c.l.b16 %v221
    %v232 = vpack.c.b16 %v229, %v228
    %v233 = vpack.c.b16 %v231, %v230
    %vm236 = vcmask 261120
    %v238 = vsel %vm236, %v222, 0
    %v241 = vsel %vm236, %v223, 0
    %243 = vmatprep.subr.bf16.mxu0 0
    %244 = vmatpush1.bf16.msra.mxu0 %v232
    %245 = vmatprep.subr.bf16.mxu0 0
    %246 = vmatpush1.bf16.msra.mxu0 %v233
    %247 = vmatprep.subr.bf16.mxu0 0
    %248 = vmatpush1.bf16.msra.mxu0 0
    %249 = vmatprep.subr.bf16.mxu0 0
    %250 = vmatpush1.bf16.msra.mxu0 0
    %251 = vmatprep.subr.bf16.mxu0 0
    %252 = vmatpush1.bf16.msra.mxu0 0
    %253 = vmatprep.subr.bf16.mxu0 0
    %254 = vmatpush1.bf16.msra.mxu0 0
    %255 = vmatprep.subr.bf16.mxu0 0
    %256 = vmatpush1.bf16.msra.mxu0 0
    %257 = vmatprep.subr.bf16.mxu0 0
    %258 = vmatpush1.bf16.msra.mxu0 0
    %259 = vmatprep.subr.bf16.mxu0 0
    %260 = vmatpush1.bf16.msra.mxu0 0
    %261 = vmatprep.subr.bf16.mxu0 0
    %262 = vmatpush1.bf16.msra.mxu0 0
    %263 = vmatprep.subr.bf16.mxu0 0
    %264 = vmatpush1.bf16.msra.mxu0 0
    %265 = vmatprep.subr.bf16.mxu0 0
    %266 = vmatpush1.bf16.msra.mxu0 0
    %267 = vmatprep.subr.bf16.mxu0 0
    %268 = vmatpush1.bf16.msra.mxu0 0
    %269 = vmatprep.subr.bf16.mxu0 0
    %270 = vmatpush1.bf16.msra.mxu0 0
    %271 = vmatprep.subr.bf16.mxu0 0
    %272 = vmatpush1.bf16.msra.mxu0 0
    %273 = vmatprep.subr.bf16.mxu0 0
    %274 = vmatpush1.bf16.msra.mxu0 0
    %275 = vmatprep.mubr.bf16.mxu0 0
    %276 = vmatmul.mubr.bf16.gmra.mrb[0].mxu0 %v238
    %v277 = vpop.f32.mrb[0].mxu0
    %v278 = vadd.f32 0.0, %v277
    %v279 = vpop.f32.mrb[0].mxu0
    %v280 = vpop.f32.mrb[0].mxu0
    %v281 = vadd.f32 0.0, %v280
    %v282 = vpop.f32.mrb[0].mxu0
    %283 = vmatprep.mubr.bf16.mxu0 0
    %284 = vmatmul.mubr.bf16.gmra.mrb[0].mxu0 %v241
    %v285 = vpop.f32.mrb[0].mxu0
    %v286 = vadd.f32 0.0, %v285
    %v287 = vpop.f32.mrb[0].mxu0
    %v288 = vpop.f32.mrb[0].mxu0
    %v289 = vadd.f32 0.0, %v288
    %v290 = vpop.f32.mrb[0].mxu0
    %291 = vdwg.mxu0
    %v292 = vld [vmem:[#allocation8] sm:$0x1]
    %v293 = vld [vmem:[#allocation10] sm:$0x1]
    %v294 = vsel %vm236, %v278, 0.0
    %v295 = vsel %vm236, %v281, 0.0
    %v296 = vadd.f32 %v294, %v295
    %v297 = vsel %vm236, %v286, 0.0
    %v298 = vadd.f32 %v296, %v297
    %v299 = vsel %vm236, %v289, 0.0
    %v300 = vadd.f32 %v298, %v299
    %v301 = vrot.slane %v300, 4
    %v302 = vadd.f32 %v300, %v301
    %v303 = vrot.slane %v302, 2
    %v304 = vadd.f32 %v302, %v303
    %v305 = vrot.slane %v304, 1
    %v306 = vadd.f32 %v304, %v305
    %v307 = vrcp.pop 32.0
    %v308 = vmul.f32 %v306, %v307
    %v309 = vmul.f32 %v278, %v278
    %v310 = vmul.f32 %v281, %v281
    %v311 = vmul.f32 %v286, %v286
    %v312 = vmul.f32 %v289, %v289
    %v313 = vsel %vm236, %v309, 0.0
    %v314 = vsel %vm236, %v310, 0.0
    %v315 = vadd.f32 %v313, %v314
    %v316 = vsel %vm236, %v311, 0.0
    %v317 = vadd.f32 %v315, %v316
    %v318 = vsel %vm236, %v312, 0.0
    %v319 = vadd.f32 %v317, %v318
    %v320 = vrot.slane %v319, 4
    %v321 = vadd.f32 %v319, %v320
    %v322 = vrot.slane %v321, 2
    %v323 = vadd.f32 %v321, %v322
    %v324 = vrot.slane %v323, 1
    %v325 = vadd.f32 %v323, %v324
    %v326 = vmul.f32 %v325, %v307
    %v327 = vmul.f32 %v308, %v308
    %v328 = vsub.f32 %v326, %v327
    %v329 = vadd.f32 %v328, 1e-05
    %v330 = vrsqrt.pop %v329
    %v331 = vmul.f32 %v292, %v330
    %v332 = vmul.f32 %v308, %v331
    %v333 = vsub.f32 %v293, %v332
    %v335 = vlaneseq
    %v336 = vshrl.u32 %v335, 7
    %v337 = vsub.s32 0, %v336
    %v338 = vrot.slane %v331, %v337
    %v340 = vmul.f32 %v278, %v338
    %v341 = vmul.f32 %v281, %v338
    %v342 = vmul.f32 %v286, %v338
    %v343 = vmul.f32 %v289, %v338
    %v345 = vlaneseq
    %v346 = vshrl.u32 %v345, 7
    %v347 = vsub.s32 0, %v346
    %v348 = vrot.slane %v333, %v347
    %v350 = vadd.f32 %v340, %v348
    %v351 = vadd.f32 %v341, %v348
    %v352 = vadd.f32 %v342, %v348
    %v353 = vadd.f32 %v343, %v348
    %v354 = vmax.f32 %v350, 0.0
    %v355 = vmax.f32 %v351, 0.0
    %v356 = vmax.f32 %v352, 0.0
    %v357 = vmax.f32 %v353, 0.0
    %v358 = vld [vmem:[#allocation7] sm:$0xf]
    %v359 = vld [vmem:[#allocation7 + $0x4] sm:$0xf]
    %v360 = vld [vmem:[#allocation7 + $0x8] sm:$0xf]
    %v361 = vld [vmem:[#allocation7 + $0xc] sm:$0xf]
    %v362 = vpack.c.bf16 %v355, %v354
    %v363 = vpack.c.bf16 %v357, %v356
    %v368 = vunpack.c.l.b16 %v358
    %v369 = vunpack.c.l.b16 %v359
    %v370 = vunpack.c.l.b16 %v360
    %v371 = vunpack.c.l.b16 %v361
    %v372 = vpack.c.b16 %v369, %v368
    %v373 = vpack.c.b16 %v371, %v370
    %v377 = vsel %vm236, %v362, 0
    %v380 = vsel %vm236, %v363, 0
    %382 = vmatprep.subr.bf16.mxu0 0
    %383 = vmatpush1.bf16.msra.mxu0 %v372
    %384 = vmatprep.subr.bf16.mxu0 0
    %385 = vmatpush1.bf16.msra.mxu0 %v373
    %386 = vmatprep.subr.bf16.mxu0 0
    %387 = vmatpush1.bf16.msra.mxu0 0
    %388 = vmatprep.subr.bf16.mxu0 0
    %389 = vmatpush1.bf16.msra.mxu0 0
    %390 = vmatprep.subr.bf16.mxu0 0
    %391 = vmatpush1.bf16.msra.mxu0 0
    %392 = vmatprep.subr.bf16.mxu0 0
    %393 = vmatpush1.bf16.msra.mxu0 0
    %394 = vmatprep.subr.bf16.mxu0 0
    %395 = vmatpush1.bf16.msra.mxu0 0
    %396 = vmatprep.subr.bf16.mxu0 0
    %397 = vmatpush1.bf16.msra.mxu0 0
    %398 = vmatprep.subr.bf16.mxu0 0
    %399 = vmatpush1.bf16.msra.mxu0 0
    %400 = vmatprep.subr.bf16.mxu0 0
    %401 = vmatpush1.bf16.msra.mxu0 0
    %402 = vmatprep.subr.bf16.mxu0 0
    %403 = vmatpush1.bf16.msra.mxu0 0
    %404 = vmatprep.subr.bf16.mxu0 0
    %405 = vmatpush1.bf16.msra.mxu0 0
    %406 = vmatprep.subr.bf16.mxu0 0
    %407 = vmatpush1.bf16.msra.mxu0 0
    %408 = vmatprep.subr.bf16.mxu0 0
    %409 = vmatpush1.bf16.msra.mxu0 0
    %410 = vmatprep.subr.bf16.mxu0 0
    %411 = vmatpush1.bf16.msra.mxu0 0
    %412 = vmatprep.subr.bf16.mxu0 0
    %413 = vmatpush1.bf16.msra.mxu0 0
    %414 = vmatprep.mubr.bf16.mxu0 0
    %415 = vmatmul.mubr.bf16.gmra.mrb[0].mxu0 %v377
    %v416 = vpop.f32.mrb[0].mxu0
    %v417 = vadd.f32 0.0, %v416
    %v418 = vpop.f32.mrb[0].mxu0
    %v419 = vpop.f32.mrb[0].mxu0
    %v420 = vadd.f32 0.0, %v419
    %v421 = vpop.f32.mrb[0].mxu0
    %422 = vmatprep.mubr.bf16.mxu0 0
    %423 = vmatmul.mubr.bf16.gmra.mrb[0].mxu0 %v380
    %v424 = vpop.f32.mrb[0].mxu0
    %v425 = vadd.f32 0.0, %v424
    %v426 = vpop.f32.mrb[0].mxu0
    %v427 = vpop.f32.mrb[0].mxu0
    %v428 = vadd.f32 0.0, %v427
    %v429 = vpop.f32.mrb[0].mxu0
    %430 = vdwg.mxu0
    %v431 = vld [vmem:[#allocation11] sm:$0x1]
    %v432 = vld [vmem:[#allocation13] sm:$0x1]
    %v433 = vsel %vm236, %v417, 0.0
    %v434 = vsel %vm236, %v420, 0.0
    %v435 = vadd.f32 %v433, %v434
    %v436 = vsel %vm236, %v425, 0.0
    %v437 = vadd.f32 %v435, %v436
    %v438 = vsel %vm236, %v428, 0.0
    %v439 = vadd.f32 %v437, %v438
    %v440 = vrot.slane %v439, 4
    %v441 = vadd.f32 %v439, %v440
    %v442 = vrot.slane %v441, 2
    %v443 = vadd.f32 %v441, %v442
    %v444 = vrot.slane %v443, 1
    %v445 = vadd.f32 %v443, %v444
    %v446 = vmul.f32 %v445, %v307
    %v447 = vmul.f32 %v417, %v417
    %v448 = vmul.f32 %v420, %v420
    %v449 = vmul.f32 %v425, %v425
    %v450 = vmul.f32 %v428, %v428
    %v451 = vsel %vm236, %v447, 0.0
    %v452 = vsel %vm236, %v448, 0.0
    %v453 = vadd.f32 %v451, %v452
    %v454 = vsel %vm236, %v449, 0.0
    %v455 = vadd.f32 %v453, %v454
    %v456 = vsel %vm236, %v450, 0.0
    %v457 = vadd.f32 %v455, %v456
    %v458 = vrot.slane %v457, 4
    %v459 = vadd.f32 %v457, %v458
    %v460 = vrot.slane %v459, 2
    %v461 = vadd.f32 %v459, %v460
    %v462 = vrot.slane %v461, 1
    %v463 = vadd.f32 %v461, %v462
    %v464 = vmul.f32 %v463, %v307
    %v465 = vmul.f32 %v446, %v446
    %v466 = vsub.f32 %v464, %v465
    %v467 = vadd.f32 %v466, 1e-05
    %v468 = vrsqrt.pop %v467
    %v469 = vmul.f32 %v431, %v468
    %v470 = vmul.f32 %v446, %v469
    %v471 = vsub.f32 %v432, %v470
    %v473 = vlaneseq
    %v474 = vshrl.u32 %v473, 7
    %v475 = vsub.s32 0, %v474
    %v476 = vrot.slane %v469, %v475
    %v478 = vmul.f32 %v417, %v476
    %v479 = vmul.f32 %v420, %v476
    %v480 = vmul.f32 %v425, %v476
    %v481 = vmul.f32 %v428, %v476
    %v483 = vlaneseq
    %v484 = vshrl.u32 %v483, 7
    %v485 = vsub.s32 0, %v484
    %v486 = vrot.slane %v471, %v485
    %v488 = vadd.f32 %v478, %v486
    %v489 = vadd.f32 %v479, %v486
    %v490 = vadd.f32 %v480, %v486
    %v491 = vadd.f32 %v481, %v486
    %v492 = vmax.f32 %v488, 0.0
    %v493 = vmax.f32 %v489, 0.0
    %v494 = vmax.f32 %v490, 0.0
    %v495 = vmax.f32 %v491, 0.0
    %v496 = vld [vmem:[#allocation14] sm:$0xf]
    %v497 = vld [vmem:[#allocation14 + $0x4] sm:$0xf]
    %v498 = vld [vmem:[#allocation14 + $0x8] sm:$0xf]
    %v499 = vld [vmem:[#allocation14 + $0xc] sm:$0xf]
    %v500 = vpack.c.bf16 %v493, %v492
    %v501 = vpack.c.bf16 %v495, %v494
    %v506 = vunpack.c.l.b16 %v496
    %v507 = vunpack.c.l.b16 %v497
    %v508 = vunpack.c.l.b16 %v498
    %v509 = vunpack.c.l.b16 %v499
    %v510 = vpack.c.b16 %v507, %v506
    %v511 = vpack.c.b16 %v509, %v508
    %v515 = vsel %vm236, %v500, 0
    %v518 = vsel %vm236, %v501, 0
    %520 = vmatprep.subr.bf16.mxu0 0
    %521 = vmatpush1.bf16.msra.mxu0 %v510
    %522 = vmatprep.subr.bf16.mxu0 0
    %523 = vmatpush1.bf16.msra.mxu0 %v511
    %524 = vmatprep.subr.bf16.mxu0 0
    %525 = vmatpush1.bf16.msra.mxu0 0
    %526 = vmatprep.subr.bf16.mxu0 0
    %527 = vmatpush1.bf16.msra.mxu0 0
    %528 = vmatprep.subr.bf16.mxu0 0
    %529 = vmatpush1.bf16.msra.mxu0 0
    %530 = vmatprep.subr.bf16.mxu0 0
    %531 = vmatpush1.bf16.msra.mxu0 0
    %532 = vmatprep.subr.bf16.mxu0 0
    %533 = vmatpush1.bf16.msra.mxu0 0
    %534 = vmatprep.subr.bf16.mxu0 0
    %535 = vmatpush1.bf16.msra.mxu0 0
    %536 = vmatprep.subr.bf16.mxu0 0
    %537 = vmatpush1.bf16.msra.mxu0 0
    %538 = vmatprep.subr.bf16.mxu0 0
    %539 = vmatpush1.bf16.msra.mxu0 0
    %540 = vmatprep.subr.bf16.mxu0 0
    %541 = vmatpush1.bf16.msra.mxu0 0
    %542 = vmatprep.subr.bf16.mxu0 0
    %543 = vmatpush1.bf16.msra.mxu0 0
    %544 = vmatprep.subr.bf16.mxu0 0
    %545 = vmatpush1.bf16.msra.mxu0 0
    %546 = vmatprep.subr.bf16.mxu0 0
    %547 = vmatpush1.bf16.msra.mxu0 0
    %548 = vmatprep.subr.bf16.mxu0 0
    %549 = vmatpush1.bf16.msra.mxu0 0
    %550 = vmatprep.subr.bf16.mxu0 0
    %551 = vmatpush1.bf16.msra.mxu0 0
    %552 = vmatprep.mubr.bf16.mxu0 0
    %553 = vmatmul.mubr.bf16.gmra.mrb[0].mxu0 %v515
    %v554 = vpop.f32.mrb[0].mxu0
    %v555 = vadd.f32 0.0, %v554
    %v556 = vpop.f32.mrb[0].mxu0
    %v557 = vpop.f32.mrb[0].mxu0
    %v558 = vadd.f32 0.0, %v557
    %v559 = vpop.f32.mrb[0].mxu0
    %560 = vmatprep.mubr.bf16.mxu0 0
    %561 = vmatmul.mubr.bf16.gmra.mrb[0].mxu0 %v518
    %v562 = vpop.f32.mrb[0].mxu0
    %v563 = vadd.f32 0.0, %v562
    %v564 = vpop.f32.mrb[0].mxu0
    %v565 = vpop.f32.mrb[0].mxu0
    %v566 = vadd.f32 0.0, %v565
    %v567 = vpop.f32.mrb[0].mxu0
    %568 = vdwg.mxu0
    %v569 = vld [vmem:[#allocation16] sm:$0x1]
    %v571 = vlaneseq
    %v572 = vshrl.u32 %v571, 7
    %v573 = vsub.s32 0, %v572
    %v574 = vrot.slane %v569, %v573
    %v576 = vadd.f32 %v555, %v574
    %v577 = vadd.f32 %v558, %v574
    %v578 = vadd.f32 %v563, %v574
    %v579 = vadd.f32 %v566, %v574
    %v580 = vpack.c.bf16 %v558, %v555
    %v581 = vpack.c.bf16 %v566, %v563
    %583 = vrot.lane.b32.xlu0 %v580, 96
    %v584 = vpop.permute.xlu0 %583
    %vm585 = vcmask 64512
    %v587 = vsel %vm585, %v584, 0
    %589 = vmatprep.subr.bf16.mxu0 0
    %590 = vmatpush1.bf16.xpose.msra.mxu0 %v587
    %591 = vmatprep.subr.bf16.mxu0 0
    %592 = vmatpush1.bf16.xpose.msra.mxu0 0
    %593 = vmatprep.subr.bf16.mxu0 0
    %594 = vmatpush1.bf16.xpose.msra.mxu0 0
    %595 = vmatprep.subr.bf16.mxu0 0
    %596 = vmatpush1.bf16.xpose.msra.mxu0 0
    %597 = vmatprep.subr.bf16.mxu0 0
    %598 = vmatpush1.bf16.xpose.msra.mxu0 0
    %599 = vmatprep.subr.bf16.mxu0 0
    %600 = vmatpush1.bf16.xpose.msra.mxu0 0
    %601 = vmatprep.subr.bf16.mxu0 0
    %602 = vmatpush1.bf16.xpose.msra.mxu0 0
    %603 = vmatprep.subr.bf16.mxu0 0
    %604 = vmatpush1.bf16.xpose.msra.mxu0 0
    %605 = vmatprep.subr.bf16.mxu0 0
    %606 = vmatpush1.bf16.xpose.msra.mxu0 0
    %607 = vmatprep.subr.bf16.mxu0 0
    %608 = vmatpush1.bf16.xpose.msra.mxu0 0
    %609 = vmatprep.subr.bf16.mxu0 0
    %610 = vmatpush1.bf16.xpose.msra.mxu0 0
    %611 = vmatprep.subr.bf16.mxu0 0
    %612 = vmatpush1.bf16.xpose.msra.mxu0 0
    %613 = vmatprep.subr.bf16.mxu0 0
    %614 = vmatpush1.bf16.xpose.msra.mxu0 0
    %615 = vmatprep.subr.bf16.mxu0 0
    %616 = vmatpush1.bf16.xpose.msra.mxu0 0
    %617 = vmatprep.subr.bf16.mxu0 0
    %618 = vmatpush1.bf16.xpose.msra.mxu0 0
    %619 = vmatprep.subr.bf16.mxu0 0
    %620 = vmatpush1.bf16.xpose.msra.mxu0 0
    %621 = vmatprep.mubr.bf16.mxu0 0
    %622 = vmatmul.mubr.bf16.gmra.mrb[0].mxu0 %v587
    %v623 = vpop.f32.mrb[0].mxu0
    %v624 = vadd.f32 0.0, %v623
    %v625 = vpop.f32.mrb[0].mxu0
    %v626 = vpop.f32.mrb[0].mxu0
    %v627 = vadd.f32 0.0, %v626
    %v628 = vpop.f32.mrb[0].mxu0
    %629 = vdwg.mxu0
    %631 = vrot.lane.b32.xlu0 %v581, 96
    %v632 = vpop.permute.xlu0 %631
    %v634 = vsel %vm585, %v632, 0
    %636 = vmatprep.subr.bf16.mxu0 0
    %637 = vmatpush1.bf16.xpose.msra.mxu0 %v634
    %638 = vmatprep.subr.bf16.mxu0 0
    %639 = vmatpush1.bf16.xpose.msra.mxu0 0
    %640 = vmatprep.subr.bf16.mxu0 0
    %641 = vmatpush1.bf16.xpose.msra.mxu0 0
    %642 = vmatprep.subr.bf16.mxu0 0
    %643 = vmatpush1.bf16.xpose.msra.mxu0 0
    %644 = vmatprep.subr.bf16.mxu0 0
    %645 = vmatpush1.bf16.xpose.msra.mxu0 0
    %646 = vmatprep.subr.bf16.mxu0 0
    %647 = vmatpush1.bf16.xpose.msra.mxu0 0
    %648 = vmatprep.subr.bf16.mxu0 0
    %649 = vmatpush1.bf16.xpose.msra.mxu0 0
    %650 = vmatprep.subr.bf16.mxu0 0
    %651 = vmatpush1.bf16.xpose.msra.mxu0 0
    %652 = vmatprep.subr.bf16.mxu0 0
    %653 = vmatpush1.bf16.xpose.msra.mxu0 0
    %654 = vmatprep.subr.bf16.mxu0 0
    %655 = vmatpush1.bf16.xpose.msra.mxu0 0
    %656 = vmatprep.subr.bf16.mxu0 0
    %657 = vmatpush1.bf16.xpose.msra.mxu0 0
    %658 = vmatprep.subr.bf16.mxu0 0
    %659 = vmatpush1.bf16.xpose.msra.mxu0 0
    %660 = vmatprep.subr.bf16.mxu0 0
    %661 = vmatpush1.bf16.xpose.msra.mxu0 0
    %662 = vmatprep.subr.bf16.mxu0 0
    %663 = vmatpush1.bf16.xpose.msra.mxu0 0
    %664 = vmatprep.subr.bf16.mxu0 0
    %665 = vmatpush1.bf16.xpose.msra.mxu0 0
    %666 = vmatprep.subr.bf16.mxu0 0
    %667 = vmatpush1.bf16.xpose.msra.mxu0 0
    %668 = vmatprep.mubr.bf16.mxu0 0
    %669 = vmatmul.mubr.bf16.gmra.mrb[0].mxu0 %v634
    %v670 = vpop.f32.mrb[0].mxu0
    %v671 = vadd.f32 0.0, %v670
    %v672 = vpop.f32.mrb[0].mxu0
    %v673 = vpop.f32.mrb[0].mxu0
    %v674 = vadd.f32 0.0, %v673
    %v675 = vpop.f32.mrb[0].mxu0
    %676 = vdwg.mxu0
    %vm677 = vcmask 130048
    %v678 = vsel %vm677, %v624, -inf
    %679 = vmax.xlane.f32.xlu0 %v678
    %v680 = vpop.xlane.xlu0 %679
    %v681 = vsel %vm677, %v627, -inf
    %682 = vmax.xlane.f32.xlu0 %v681
    %v683 = vpop.xlane.xlu0 %682
    %v684 = vsel %vm677, %v671, -inf
    %685 = vmax.xlane.f32.xlu0 %v684
    %v686 = vpop.xlane.xlu0 %685
    %v687 = vsel %vm677, %v674, -inf
    %688 = vmax.xlane.f32.xlu0 %v687
    %v689 = vpop.xlane.xlu0 %688
    %v690 = vmax.f32 %v680, %v683
    %v691 = vrot.slane %v690, 4
    %v692 = vmax.f32 %v690, %v691
    %v693 = vrot.slane %v692, 2
    %v694 = vmax.f32 %v692, %v693
    %v695 = vrot.slane %v694, 1
    %v696 = vmax.f32 %v694, %v695
    %v697 = vmax.f32 %v686, %v689
    %v698 = vrot.slane %v697, 4
    %v699 = vmax.f32 %v697, %v698
    %v700 = vrot.slane %v699, 2
    %v701 = vmax.f32 %v699, %v700
    %v702 = vrot.slane %v701, 1
    %v703 = vmax.f32 %v701, %v702
    %v704 = vsub.f32 %v624, %v696
    %v705 = vsub.f32 %v627, %v696
    %v706 = vsub.f32 %v671, %v703
    %v707 = vsub.f32 %v674, %v703
    %v708 = vmul.f32 %v704, 1.442695
    %v709 = vpow.pop %v708
    %v710 = vmul.f32 %v705, 1.442695
    %v711 = vpow.pop %v710
    %v712 = vmul.f32 %v706, 1.442695
    %v713 = vpow.pop %v712
    %v714 = vmul.f32 %v707, 1.442695
    %v715 = vpow.pop %v714
    %v716 = vsel %vm677, %v709, 0.0
    %717 = vadd.xlane.f32.xlu0 %v716
    %v718 = vpop.xlane.xlu0 %717
    %v719 = vsel %vm677, %v711, 0.0
    %720 = vadd.xlane.f32.xlu0 %v719
    %v721 = vpop.xlane.xlu0 %720
    %v722 = vsel %vm677, %v713, 0.0
    %723 = vadd.xlane.f32.xlu0 %v722
    %v724 = vpop.xlane.xlu0 %723
    %v725 = vsel %vm677, %v715, 0.0
    %726 = vadd.xlane.f32.xlu0 %v725
    %v727 = vpop.xlane.xlu0 %726
    %v728 = vadd.f32 %v716, %v719
    %v729 = vrot.slane %v728, 4
    %v730 = vadd.f32 %v728, %v729
    %v731 = vrot.slane %v730, 2
    %v732 = vadd.f32 %v730, %v731
    %v733 = vrot.slane %v732, 1
    %v734 = vadd.f32 %v732, %v733
    %v735 = vadd.f32 %v722, %v725
    %v736 = vrot.slane %v735, 4
    %v737 = vadd.f32 %v735, %v736
    %v738 = vrot.slane %v737, 2
    %v739 = vadd.f32 %v737, %v738
    %v740 = vrot.slane %v739, 1
    %v741 = vadd.f32 %v739, %v740
    %v742 = vrcp.pop %v718
    %v743 = vrcp.pop %v721
    %v744 = vrcp.pop %v724
    %v745 = vrcp.pop %v727
    %v746 = vrcp.pop %v734
    %v747 = vrcp.pop %v741
    %v748 = vmul.f32 %v576, %v742
    %v749 = vmul.f32 %v577, %v743
    %v750 = vmul.f32 %v578, %v744
    %v751 = vmul.f32 %v579, %v745
    %v752 = vpack.c.bf16 %v749, %v748
    %v753 = vpack.c.bf16 %v751, %v750
    %v754 = vpack.c.bf16 %v711, %v709
    %v755 = vpack.c.bf16 %v715, %v713
    %v757 = vsel %vm677, %v754, 0
    %759 = vmatprep.subr.bf16.mxu0 0
    %760 = vmatpush1.bf16.msra.mxu0 %v752
    %761 = vmatprep.subr.bf16.mxu0 0
    %762 = vmatpush1.bf16.msra.mxu0 0
    %763 = vmatprep.subr.bf16.mxu0 0
    %764 = vmatpush1.bf16.msra.mxu0 0
    %765 = vmatprep.subr.bf16.mxu0 0
    %766 = vmatpush1.bf16.msra.mxu0 0
    %767 = vmatprep.subr.bf16.mxu0 0
    %768 = vmatpush1.bf16.msra.mxu0 0
    %769 = vmatprep.subr.bf16.mxu0 0
    %770 = vmatpush1.bf16.msra.mxu0 0
    %771 = vmatprep.subr.bf16.mxu0 0
    %772 = vmatpush1.bf16.msra.mxu0 0
    %773 = vmatprep.subr.bf16.mxu0 0
    %774 = vmatpush1.bf16.msra.mxu0 0
    %775 = vmatprep.subr.bf16.mxu0 0
    %776 = vmatpush1.bf16.msra.mxu0 0
    %777 = vmatprep.subr.bf16.mxu0 0
    %778 = vmatpush1.bf16.msra.mxu0 0
    %779 = vmatprep.subr.bf16.mxu0 0
    %780 = vmatpush1.bf16.msra.mxu0 0
    %781 = vmatprep.subr.bf16.mxu0 0
    %782 = vmatpush1.bf16.msra.mxu0 0
    %783 = vmatprep.subr.bf16.mxu0 0
    %784 = vmatpush1.bf16.msra.mxu0 0
    %785 = vmatprep.subr.bf16.mxu0 0
    %786 = vmatpush1.bf16.msra.mxu0 0
    %787 = vmatprep.subr.bf16.mxu0 0
    %788 = vmatpush1.bf16.msra.mxu0 0
    %789 = vmatprep.subr.bf16.mxu0 0
    %790 = vmatpush1.bf16.msra.mxu0 0
    %791 = vmatprep.mubr.bf16.mxu0 0
    %792 = vmatmul.mubr.bf16.gmra.mrb[0].mxu0 %v757
    %v793 = vpop.f32.mrb[0].mxu0
    %v794 = vadd.f32 0.0, %v793
    %v795 = vpop.f32.mrb[0].mxu0
    %v796 = vpop.f32.mrb[0].mxu0
    %v797 = vadd.f32 0.0, %v796
    %v798 = vpop.f32.mrb[0].mxu0
    %799 = vdwg.mxu0
    %v801 = vsel %vm677, %v755, 0
    %803 = vmatprep.subr.bf16.mxu0 0
    %804 = vmatpush1.bf16.msra.mxu0 %v753
    %805 = vmatprep.subr.bf16.mxu0 0
    %806 = vmatpush1.bf16.msra.mxu0 0
    %807 = vmatprep.subr.bf16.mxu0 0
    %808 = vmatpush1.bf16.msra.mxu0 0
    %809 = vmatprep.subr.bf16.mxu0 0
    %810 = vmatpush1.bf16.msra.mxu0 0
    %811 = vmatprep.subr.bf16.mxu0 0
    %812 = vmatpush1.bf16.msra.mxu0 0
    %813 = vmatprep.subr.bf16.mxu0 0
    %814 = vmatpush1.bf16.msra.mxu0 0
    %815 = vmatprep.subr.bf16.mxu0 0
    %816 = vmatpush1.bf16.msra.mxu0 0
    %817 = vmatprep.subr.bf16.mxu0 0
    %818 = vmatpush1.bf16.msra.mxu0 0
    %819 = vmatprep.subr.bf16.mxu0 0
    %820 = vmatpush1.bf16.msra.mxu0 0
    %821 = vmatprep.subr.bf16.mxu0 0
    %822 = vmatpush1.bf16.msra.mxu0 0
    %823 = vmatprep.subr.bf16.mxu0 0
    %824 = vmatpush1.bf16.msra.mxu0 0
    %825 = vmatprep.subr.bf16.mxu0 0
    %826 = vmatpush1.bf16.msra.mxu0 0
    %827 = vmatprep.subr.bf16.mxu0 0
    %828 = vmatpush1.bf16.msra.mxu0 0
    %829 = vmatprep.subr.bf16.mxu0 0
    %830 = vmatpush1.bf16.msra.mxu0 0
    %831 = vmatprep.subr.bf16.mxu0 0
    %832 = vmatpush1.bf16.msra.mxu0 0
    %833 = vmatprep.subr.bf16.mxu0 0
    %834 = vmatpush1.bf16.msra.mxu0 0
    %835 = vmatprep.mubr.bf16.mxu0 0
    %836 = vmatmul.mubr.bf16.gmra.mrb[0].mxu0 %v801
    %v837 = vpop.f32.mrb[0].mxu0
    %v838 = vadd.f32 0.0, %v837
    %v839 = vpop.f32.mrb[0].mxu0
    %v840 = vpop.f32.mrb[0].mxu0
    %v841 = vadd.f32 0.0, %v840
    %v842 = vpop.f32.mrb[0].mxu0
    %843 = vdwg.mxu0
    %v844 = vmul.f32 %v709, %v746
    %v845 = vmul.f32 %v711, %v746
    %v846 = vmul.f32 %v713, %v747
    %v847 = vmul.f32 %v715, %v747
    %v848 = vsel %vm677, %v844, 0.0
    %849 = vadd.xlane.f32.xlu0 %v848
    %v850 = vpop.xlane.xlu0 %849
    %v851 = vsel %vm677, %v845, 0.0
    %852 = vadd.xlane.f32.xlu0 %v851
    %v853 = vpop.xlane.xlu0 %852
    %v854 = vsel %vm677, %v846, 0.0
    %855 = vadd.xlane.f32.xlu0 %v854
    %v856 = vpop.xlane.xlu0 %855
    %v857 = vsel %vm677, %v847, 0.0
    %858 = vadd.xlane.f32.xlu0 %v857
    %v859 = vpop.xlane.xlu0 %858
    %v860 = vadd.f32 %v850, 1e-09
    %v861 = vadd.f32 %v853, 1e-09
    %v862 = vadd.f32 %v856, 1e-09
    %v863 = vadd.f32 %v859, 1e-09
    %v864 = vrcp.pop %v860
    %v865 = vrcp.pop %v861
    %v866 = vrcp.pop %v862
    %v867 = vrcp.pop %v863
    %v868 = vmul.f32 %v794, %v864
    %v869 = vmul.f32 %v797, %v865
    %v870 = vmul.f32 %v838, %v866
    %v871 = vmul.f32 %v841, %v867
    %v872 = vsub.f32 %v492, %v868
    %v873 = vsub.f32 %v493, %v869
    %v874 = vsub.f32 %v494, %v870
    %v875 = vsub.f32 %v495, %v871
    %v876 = vld [vmem:[#allocation17] sm:$0xf]
    %v877 = vld [vmem:[#allocation17 + $0x4] sm:$0xf]
    %v878 = vld [vmem:[#allocation17 + $0x8] sm:$0xf]
    %v879 = vld [vmem:[#allocation17 + $0xc] sm:$0xf]
    %v880 = vpack.c.bf16 %v873, %v872
    %v881 = vpack.c.bf16 %v875, %v874
    %v882 = vld [vmem:[#allocation19] sm:$0x1]
    %v884 = vlaneseq
    %v885 = vshrl.u32 %v884, 7
    %v886 = vsub.s32 0, %v885
    %v887 = vrot.slane %v882, %v886
    %v893 = vunpack.c.l.b16 %v876
    %v894 = vunpack.c.l.b16 %v877
    %v895 = vunpack.c.l.b16 %v878
    %v896 = vunpack.c.l.b16 %v879
    %v897 = vpack.c.b16 %v894, %v893
    %v898 = vpack.c.b16 %v896, %v895
    %v902 = vsel %vm236, %v880, 0
    %v905 = vsel %vm236, %v881, 0
    %907 = vmatprep.subr.bf16.mxu0 0
    %908 = vmatpush1.bf16.msra.mxu0 %v897
    %909 = vmatprep.subr.bf16.mxu0 0
    %910 = vmatpush1.bf16.msra.mxu0 %v898
    %911 = vmatprep.subr.bf16.mxu0 0
    %912 = vmatpush1.bf16.msra.mxu0 0
    %913 = vmatprep.subr.bf16.mxu0 0
    %914 = vmatpush1.bf16.msra.mxu0 0
    %915 = vmatprep.subr.bf16.mxu0 0
    %916 = vmatpush1.bf16.msra.mxu0 0
    %917 = vmatprep.subr.bf16.mxu0 0
    %918 = vmatpush1.bf16.msra.mxu0 0
    %919 = vmatprep.subr.bf16.mxu0 0
    %920 = vmatpush1.bf16.msra.mxu0 0
    %921 = vmatprep.subr.bf16.mxu0 0
    %922 = vmatpush1.bf16.msra.mxu0 0
    %923 = vmatprep.subr.bf16.mxu0 0
    %924 = vmatpush1.bf16.msra.mxu0 0
    %925 = vmatprep.subr.bf16.mxu0 0
    %926 = vmatpush1.bf16.msra.mxu0 0
    %927 = vmatprep.subr.bf16.mxu0 0
    %928 = vmatpush1.bf16.msra.mxu0 0
    %929 = vmatprep.subr.bf16.mxu0 0
    %930 = vmatpush1.bf16.msra.mxu0 0
    %931 = vmatprep.subr.bf16.mxu0 0
    %932 = vmatpush1.bf16.msra.mxu0 0
    %933 = vmatprep.subr.bf16.mxu0 0
    %934 = vmatpush1.bf16.msra.mxu0 0
    %935 = vmatprep.subr.bf16.mxu0 0
    %936 = vmatpush1.bf16.msra.mxu0 0
    %937 = vmatprep.subr.bf16.mxu0 0
    %938 = vmatpush1.bf16.msra.mxu0 0
    %939 = vmatprep.mubr.bf16.mxu0 0
    %940 = vmatmul.mubr.bf16.gmra.mrb[0].mxu0 %v902
    %v941 = vpop.f32.mrb[0].mxu0
    %v942 = vadd.f32 %v887, %v941
    %v943 = vpop.f32.mrb[0].mxu0
    %v944 = vpop.f32.mrb[0].mxu0
    %v945 = vadd.f32 %v887, %v944
    %v946 = vpop.f32.mrb[0].mxu0
    %947 = vmatprep.mubr.bf16.mxu0 0
    %948 = vmatmul.mubr.bf16.gmra.mrb[0].mxu0 %v905
    %v949 = vpop.f32.mrb[0].mxu0
    %v950 = vadd.f32 %v887, %v949
    %v951 = vpop.f32.mrb[0].mxu0
    %v952 = vpop.f32.mrb[0].mxu0
    %v953 = vadd.f32 %v887, %v952
    %v954 = vpop.f32.mrb[0].mxu0
    %955 = vdwg.mxu0
    %v956 = vld [vmem:[#allocation20] sm:$0x1]
    %v957 = vld [vmem:[#allocation22] sm:$0x1]
    %v958 = vsel %vm236, %v942, 0.0
    %v959 = vsel %vm236, %v945, 0.0
    %v960 = vadd.f32 %v958, %v959
    %v961 = vsel %vm236, %v950, 0.0
    %v962 = vadd.f32 %v960, %v961
    %v963 = vsel %vm236, %v953, 0.0
    %v964 = vadd.f32 %v962, %v963
    %v965 = vrot.slane %v964, 4
    %v966 = vadd.f32 %v964, %v965
    %v967 = vrot.slane %v966, 2
    %v968 = vadd.f32 %v966, %v967
    %v969 = vrot.slane %v968, 1
    %v970 = vadd.f32 %v968, %v969
    %v971 = vmul.f32 %v970, %v307
    %v972 = vmul.f32 %v942, %v942
    %v973 = vmul.f32 %v945, %v945
    %v974 = vmul.f32 %v950, %v950
    %v975 = vmul.f32 %v953, %v953
    %v976 = vsel %vm236, %v972, 0.0
    %v977 = vsel %vm236, %v973, 0.0
    %v978 = vadd.f32 %v976, %v977
    %v979 = vsel %vm236, %v974, 0.0
    %v980 = vadd.f32 %v978, %v979
    %v981 = vsel %vm236, %v975, 0.0
    %v982 = vadd.f32 %v980, %v981
    %v983 = vrot.slane %v982, 4
    %v984 = vadd.f32 %v982, %v983
    %v985 = vrot.slane %v984, 2
    %v986 = vadd.f32 %v984, %v985
    %v987 = vrot.slane %v986, 1
    %v988 = vadd.f32 %v986, %v987
    %v989 = vmul.f32 %v988, %v307
    %v990 = vmul.f32 %v971, %v971
    %v991 = vsub.f32 %v989, %v990
    %v992 = vadd.f32 %v991, 1e-05
    %v993 = vrsqrt.pop %v992
    %v994 = vmul.f32 %v956, %v993
    %v995 = vmul.f32 %v971, %v994
    %v996 = vsub.f32 %v957, %v995
    %v998 = vlaneseq
    %v999 = vshrl.u32 %v998, 7
    %v1000 = vsub.s32 0, %v999
    %v1001 = vrot.slane %v994, %v1000
    %v1003 = vmul.f32 %v942, %v1001
    %v1004 = vmul.f32 %v945, %v1001
    %v1005 = vmul.f32 %v950, %v1001
    %v1006 = vmul.f32 %v953, %v1001
    %v1008 = vlaneseq
    %v1009 = vshrl.u32 %v1008, 7
    %v1010 = vsub.s32 0, %v1009
    %v1011 = vrot.slane %v996, %v1010
    %v1013 = vadd.f32 %v1003, %v1011
    %v1014 = vadd.f32 %v1004, %v1011
    %v1015 = vadd.f32 %v1005, %v1011
    %v1016 = vadd.f32 %v1006, %v1011
    %v1017 = vmax.f32 %v1013, 0.0
    %v1018 = vmax.f32 %v1014, 0.0
    %v1019 = vmax.f32 %v1015, 0.0
    %v1020 = vmax.f32 %v1016, 0.0
    %v1021 = vadd.f32 %v492, %v1017
    %v1022 = vadd.f32 %v493, %v1018
    %v1023 = vadd.f32 %v494, %v1019
    %v1024 = vadd.f32 %v495, %v1020
    %s1025 = scalar_lea.vmem [#allocation14], 16
    %v1026 = vld [vmem:[%s1025] sm:$0xf]
    %v1027 = vld [vmem:[%s1025 + $0x4] sm:$0xf]
    %v1028 = vld [vmem:[%s1025 + $0x8] sm:$0xf]
    %v1029 = vld [vmem:[%s1025 + $0xc] sm:$0xf]
    %v1030 = vpack.c.bf16 %v1022, %v1021
    %v1031 = vpack.c.bf16 %v1024, %v1023
    %v1036 = vunpack.c.l.b16 %v1026
    %v1037 = vunpack.c.l.b16 %v1027
    %v1038 = vunpack.c.l.b16 %v1028
    %v1039 = vunpack.c.l.b16 %v1029
    %v1040 = vpack.c.b16 %v1037, %v1036
    %v1041 = vpack.c.b16 %v1039, %v1038
    %v1045 = vsel %vm236, %v1030, 0
    %v1048 = vsel %vm236, %v1031, 0
    %1050 = vmatprep.subr.bf16.mxu0 0
    %1051 = vmatpush1.bf16.msra.mxu0 %v1040
    %1052 = vmatprep.subr.bf16.mxu0 0
    %1053 = vmatpush1.bf16.msra.mxu0 %v1041
    %1054 = vmatprep.subr.bf16.mxu0 0
    %1055 = vmatpush1.bf16.msra.mxu0 0
    %1056 = vmatprep.subr.bf16.mxu0 0
    %1057 = vmatpush1.bf16.msra.mxu0 0
    %1058 = vmatprep.subr.bf16.mxu0 0
    %1059 = vmatpush1.bf16.msra.mxu0 0
    %1060 = vmatprep.subr.bf16.mxu0 0
    %1061 = vmatpush1.bf16.msra.mxu0 0
    %1062 = vmatprep.subr.bf16.mxu0 0
    %1063 = vmatpush1.bf16.msra.mxu0 0
    %1064 = vmatprep.subr.bf16.mxu0 0
    %1065 = vmatpush1.bf16.msra.mxu0 0
    %1066 = vmatprep.subr.bf16.mxu0 0
    %1067 = vmatpush1.bf16.msra.mxu0 0
    %1068 = vmatprep.subr.bf16.mxu0 0
    %1069 = vmatpush1.bf16.msra.mxu0 0
    %1070 = vmatprep.subr.bf16.mxu0 0
    %1071 = vmatpush1.bf16.msra.mxu0 0
    %1072 = vmatprep.subr.bf16.mxu0 0
    %1073 = vmatpush1.bf16.msra.mxu0 0
    %1074 = vmatprep.subr.bf16.mxu0 0
    %1075 = vmatpush1.bf16.msra.mxu0 0
    %1076 = vmatprep.subr.bf16.mxu0 0
    %1077 = vmatpush1.bf16.msra.mxu0 0
    %1078 = vmatprep.subr.bf16.mxu0 0
    %1079 = vmatpush1.bf16.msra.mxu0 0
    %1080 = vmatprep.subr.bf16.mxu0 0
    %1081 = vmatpush1.bf16.msra.mxu0 0
    %1082 = vmatprep.mubr.bf16.mxu0 0
    %1083 = vmatmul.mubr.bf16.gmra.mrb[0].mxu0 %v1045
    %v1084 = vpop.f32.mrb[0].mxu0
    %v1085 = vadd.f32 0.0, %v1084
    %v1086 = vpop.f32.mrb[0].mxu0
    %v1087 = vpop.f32.mrb[0].mxu0
    %v1088 = vadd.f32 0.0, %v1087
    %v1089 = vpop.f32.mrb[0].mxu0
    %1090 = vmatprep.mubr.bf16.mxu0 0
    %1091 = vmatmul.mubr.bf16.gmra.mrb[0].mxu0 %v1048
    %v1092 = vpop.f32.mrb[0].mxu0
    %v1093 = vadd.f32 0.0, %v1092
    %v1094 = vpop.f32.mrb[0].mxu0
    %v1095 = vpop.f32.mrb[0].mxu0
    %v1096 = vadd.f32 0.0, %v1095
    %v1097 = vpop.f32.mrb[0].mxu0
    %1098 = vdwg.mxu0
    %s1099 = scalar_lea.vmem [#allocation16], 1
    %v1100 = vld [vmem:[%s1099] sm:$0x1]
    %v1102 = vlaneseq
    %v1103 = vshrl.u32 %v1102, 7
    %v1104 = vsub.s32 0, %v1103
    %v1105 = vrot.slane %v1100, %v1104
    %v1107 = vadd.f32 %v1085, %v1105
    %v1108 = vadd.f32 %v1088, %v1105
    %v1109 = vadd.f32 %v1093, %v1105
    %v1110 = vadd.f32 %v1096, %v1105
    %v1111 = vpack.c.bf16 %v1088, %v1085
    %v1112 = vpack.c.bf16 %v1096, %v1093
    %1114 = vrot.lane.b32.xlu0 %v1111, 96
    %v1115 = vpop.permute.xlu0 %1114
    %v1117 = vsel %vm585, %v1115, 0
    %1119 = vmatprep.subr.bf16.mxu0 0
    %1120 = vmatpush1.bf16.xpose.msra.mxu0 %v1117
    %1121 = vmatprep.subr.bf16.mxu0 0
    %1122 = vmatpush1.bf16.xpose.msra.mxu0 0
    %1123 = vmatprep.subr.bf16.mxu0 0
    %1124 = vmatpush1.bf16.xpose.msra.mxu0 0
    %1125 = vmatprep.subr.bf16.mxu0 0
    %1126 = vmatpush1.bf16.xpose.msra.mxu0 0
    %1127 = vmatprep.subr.bf16.mxu0 0
    %1128 = vmatpush1.bf16.xpose.msra.mxu0 0
    %1129 = vmatprep.subr.bf16.mxu0 0
    %1130 = vmatpush1.bf16.xpose.msra.mxu0 0
    %1131 = vmatprep.subr.bf16.mxu0 0
    %1132 = vmatpush1.bf16.xpose.msra.mxu0 0
    %1133 = vmatprep.subr.bf16.mxu0 0
    %1134 = vmatpush1.bf16.xpose.msra.mxu0 0
    %1135 = vmatprep.subr.bf16.mxu0 0
    %1136 = vmatpush1.bf16.xpose.msra.mxu0 0
    %1137 = vmatprep.subr.bf16.mxu0 0
    %1138 = vmatpush1.bf16.xpose.msra.mxu0 0
    %1139 = vmatprep.subr.bf16.mxu0 0
    %1140 = vmatpush1.bf16.xpose.msra.mxu0 0
    %1141 = vmatprep.subr.bf16.mxu0 0
    %1142 = vmatpush1.bf16.xpose.msra.mxu0 0
    %1143 = vmatprep.subr.bf16.mxu0 0
    %1144 = vmatpush1.bf16.xpose.msra.mxu0 0
    %1145 = vmatprep.subr.bf16.mxu0 0
    %1146 = vmatpush1.bf16.xpose.msra.mxu0 0
    %1147 = vmatprep.subr.bf16.mxu0 0
    %1148 = vmatpush1.bf16.xpose.msra.mxu0 0
    %1149 = vmatprep.subr.bf16.mxu0 0
    %1150 = vmatpush1.bf16.xpose.msra.mxu0 0
    %1151 = vmatprep.mubr.bf16.mxu0 0
    %1152 = vmatmul.mubr.bf16.gmra.mrb[0].mxu0 %v1117
    %v1153 = vpop.f32.mrb[0].mxu0
    %v1154 = vadd.f32 0.0, %v1153
    %v1155 = vpop.f32.mrb[0].mxu0
    %v1156 = vpop.f32.mrb[0].mxu0
    %v1157 = vadd.f32 0.0, %v1156
    %v1158 = vpop.f32.mrb[0].mxu0
    %1159 = vdwg.mxu0
    %1161 = vrot.lane.b32.xlu0 %v1112, 96
    %v1162 = vpop.permute.xlu0 %1161
    %v1164 = vsel %vm585, %v1162, 0
    %1166 = vmatprep.subr.bf16.mxu0 0
    %1167 = vmatpush1.bf16.xpose.msra.mxu0 %v1164
    %1168 = vmatprep.subr.bf16.mxu0 0
    %1169 = vmatpush1.bf16.xpose.msra.mxu0 0
    %1170 = vmatprep.subr.bf16.mxu0 0
    %1171 = vmatpush1.bf16.xpose.msra.mxu0 0
    %1172 = vmatprep.subr.bf16.mxu0 0
    %1173 = vmatpush1.bf16.xpose.msra.mxu0 0
    %1174 = vmatprep.subr.bf16.mxu0 0
    %1175 = vmatpush1.bf16.xpose.msra.mxu0 0
    %1176 = vmatprep.subr.bf16.mxu0 0
    %1177 = vmatpush1.bf16.xpose.msra.mxu0 0
    %1178 = vmatprep.subr.bf16.mxu0 0
    %1179 = vmatpush1.bf16.xpose.msra.mxu0 0
    %1180 = vmatprep.subr.bf16.mxu0 0
    %1181 = vmatpush1.bf16.xpose.msra.mxu0 0
    %1182 = vmatprep.subr.bf16.mxu0 0
    %1183 = vmatpush1.bf16.xpose.msra.mxu0 0
    %1184 = vmatprep.subr.bf16.mxu0 0
    %1185 = vmatpush1.bf16.xpose.msra.mxu0 0
    %1186 = vmatprep.subr.bf16.mxu0 0
    %1187 = vmatpush1.bf16.xpose.msra.mxu0 0
    %1188 = vmatprep.subr.bf16.mxu0 0
    %1189 = vmatpush1.bf16.xpose.msra.mxu0 0
    %1190 = vmatprep.subr.bf16.mxu0 0
    %1191 = vmatpush1.bf16.xpose.msra.mxu0 0
    %1192 = vmatprep.subr.bf16.mxu0 0
    %1193 = vmatpush1.bf16.xpose.msra.mxu0 0
    %1194 = vmatprep.subr.bf16.mxu0 0
    %1195 = vmatpush1.bf16.xpose.msra.mxu0 0
    %1196 = vmatprep.subr.bf16.mxu0 0
    %1197 = vmatpush1.bf16.xpose.msra.mxu0 0
    %1198 = vmatprep.mubr.bf16.mxu0 0
    %1199 = vmatmul.mubr.bf16.gmra.mrb[0].mxu0 %v1164
    %v1200 = vpop.f32.mrb[0].mxu0
    %v1201 = vadd.f32 0.0, %v1200
    %v1202 = vpop.f32.mrb[0].mxu0
    %v1203 = vpop.f32.mrb[0].mxu0
    %v1204 = vadd.f32 0.0, %v1203
    %v1205 = vpop.f32.mrb[0].mxu0
    %1206 = vdwg.mxu0
    %v1207 = vsel %vm677, %v1154, -inf
    %1208 = vmax.xlane.f32.xlu0 %v1207
    %v1209 = vpop.xlane.xlu0 %1208
    %v1210 = vsel %vm677, %v1157, -inf
    %1211 = vmax.xlane.f32.xlu0 %v1210
    %v1212 = vpop.xlane.xlu0 %1211
    %v1213 = vsel %vm677, %v1201, -inf
    %1214 = vmax.xlane.f32.xlu0 %v1213
    %v1215 = vpop.xlane.xlu0 %1214
    %v1216 = vsel %vm677, %v1204, -inf
    %1217 = vmax.xlane.f32.xlu0 %v1216
    %v1218 = vpop.xlane.xlu0 %1217
    %v1219 = vmax.f32 %v1209, %v1212
    %v1220 = vrot.slane %v1219, 4
    %v1221 = vmax.f32 %v1219, %v1220
    %v1222 = vrot.slane %v1221, 2
    %v1223 = vmax.f32 %v1221, %v1222
    %v1224 = vrot.slane %v1223, 1
    %v1225 = vmax.f32 %v1223, %v1224
    %v1226 = vmax.f32 %v1215, %v1218
    %v1227 = vrot.slane %v1226, 4
    %v1228 = vmax.f32 %v1226, %v1227
    %v1229 = vrot.slane %v1228, 2
    %v1230 = vmax.f32 %v1228, %v1229
    %v1231 = vrot.slane %v1230, 1
    %v1232 = vmax.f32 %v1230, %v1231
    %v1233 = vsub.f32 %v1154, %v1225
    %v1234 = vsub.f32 %v1157, %v1225
    %v1235 = vsub.f32 %v1201, %v1232
    %v1236 = vsub.f32 %v1204, %v1232
    %v1237 = vmul.f32 %v1233, 1.442695
    %v1238 = vpow.pop %v1237
    %v1239 = vmul.f32 %v1234, 1.442695
    %v1240 = vpow.pop %v1239
    %v1241 = vmul.f32 %v1235, 1.442695
    %v1242 = vpow.pop %v1241
    %v1243 = vmul.f32 %v1236, 1.442695
    %v1244 = vpow.pop %v1243
    %v1245 = vsel %vm677, %v1238, 0.0
    %1246 = vadd.xlane.f32.xlu0 %v1245
    %v1247 = vpop.xlane.xlu0 %1246
    %v1248 = vsel %vm677, %v1240, 0.0
    %1249 = vadd.xlane.f32.xlu0 %v1248
    %v1250 = vpop.xlane.xlu0 %1249
    %v1251 = vsel %vm677, %v1242, 0.0
    %1252 = vadd.xlane.f32.xlu0 %v1251
    %v1253 = vpop.xlane.xlu0 %1252
    %v1254 = vsel %vm677, %v1244, 0.0
    %1255 = vadd.xlane.f32.xlu0 %v1254
    %v1256 = vpop.xlane.xlu0 %1255
    %v1257 = vadd.f32 %v1245, %v1248
    %v1258 = vrot.slane %v1257, 4
    %v1259 = vadd.f32 %v1257, %v1258
    %v1260 = vrot.slane %v1259, 2
    %v1261 = vadd.f32 %v1259, %v1260
    %v1262 = vrot.slane %v1261, 1
    %v1263 = vadd.f32 %v1261, %v1262
    %v1264 = vadd.f32 %v1251, %v1254
    %v1265 = vrot.slane %v1264, 4
    %v1266 = vadd.f32 %v1264, %v1265
    %v1267 = vrot.slane %v1266, 2
    %v1268 = vadd.f32 %v1266, %v1267
    %v1269 = vrot.slane %v1268, 1
    %v1270 = vadd.f32 %v1268, %v1269
    %v1271 = vrcp.pop %v1247
    %v1272 = vrcp.pop %v1250
    %v1273 = vrcp.pop %v1253
    %v1274 = vrcp.pop %v1256
    %v1275 = vrcp.pop %v1263
    %v1276 = vrcp.pop %v1270
    %v1277 = vmul.f32 %v1107, %v1271
    %v1278 = vmul.f32 %v1108, %v1272
    %v1279 = vmul.f32 %v1109, %v1273
    %v1280 = vmul.f32 %v1110, %v1274
    %v1281 = vpack.c.bf16 %v1278, %v1277
    %v1282 = vpack.c.bf16 %v1280, %v1279
    %v1283 = vpack.c.bf16 %v1240, %v1238
    %v1284 = vpack.c.bf16 %v1244, %v1242
    %v1286 = vsel %vm677, %v1283, 0
    %1288 = vmatprep.subr.bf16.mxu0 0
    %1289 = vmatpush1.bf16.msra.mxu0 %v1281
    %1290 = vmatprep.subr.bf16.mxu0 0
    %1291 = vmatpush1.bf16.msra.mxu0 0
    %1292 = vmatprep.subr.bf16.mxu0 0
    %1293 = vmatpush1.bf16.msra.mxu0 0
    %1294 = vmatprep.subr.bf16.mxu0 0
    %1295 = vmatpush1.bf16.msra.mxu0 0
    %1296 = vmatprep.subr.bf16.mxu0 0
    %1297 = vmatpush1.bf16.msra.mxu0 0
    %1298 = vmatprep.subr.bf16.mxu0 0
    %1299 = vmatpush1.bf16.msra.mxu0 0
    %1300 = vmatprep.subr.bf16.mxu0 0
    %1301 = vmatpush1.bf16.msra.mxu0 0
    %1302 = vmatprep.subr.bf16.mxu0 0
    %1303 = vmatpush1.bf16.msra.mxu0 0
    %1304 = vmatprep.subr.bf16.mxu0 0
    %1305 = vmatpush1.bf16.msra.mxu0 0
    %1306 = vmatprep.subr.bf16.mxu0 0
    %1307 = vmatpush1.bf16.msra.mxu0 0
    %1308 = vmatprep.subr.bf16.mxu0 0
    %1309 = vmatpush1.bf16.msra.mxu0 0
    %1310 = vmatprep.subr.bf16.mxu0 0
    %1311 = vmatpush1.bf16.msra.mxu0 0
    %1312 = vmatprep.subr.bf16.mxu0 0
    %1313 = vmatpush1.bf16.msra.mxu0 0
    %1314 = vmatprep.subr.bf16.mxu0 0
    %1315 = vmatpush1.bf16.msra.mxu0 0
    %1316 = vmatprep.subr.bf16.mxu0 0
    %1317 = vmatpush1.bf16.msra.mxu0 0
    %1318 = vmatprep.subr.bf16.mxu0 0
    %1319 = vmatpush1.bf16.msra.mxu0 0
    %1320 = vmatprep.mubr.bf16.mxu0 0
    %1321 = vmatmul.mubr.bf16.gmra.mrb[0].mxu0 %v1286
    %v1322 = vpop.f32.mrb[0].mxu0
    %v1323 = vadd.f32 0.0, %v1322
    %v1324 = vpop.f32.mrb[0].mxu0
    %v1325 = vpop.f32.mrb[0].mxu0
    %v1326 = vadd.f32 0.0, %v1325
    %v1327 = vpop.f32.mrb[0].mxu0
    %1328 = vdwg.mxu0
    %v1330 = vsel %vm677, %v1284, 0
    %1332 = vmatprep.subr.bf16.mxu0 0
    %1333 = vmatpush1.bf16.msra.mxu0 %v1282
    %1334 = vmatprep.subr.bf16.mxu0 0
    %1335 = vmatpush1.bf16.msra.mxu0 0
    %1336 = vmatprep.subr.bf16.mxu0 0
    %1337 = vmatpush1.bf16.msra.mxu0 0
    %1338 = vmatprep.subr.bf16.mxu0 0
    %1339 = vmatpush1.bf16.msra.mxu0 0
    %1340 = vmatprep.subr.bf16.mxu0 0
    %1341 = vmatpush1.bf16.msra.mxu0 0
    %1342 = vmatprep.subr.bf16.mxu0 0
    %1343 = vmatpush1.bf16.msra.mxu0 0
    %1344 = vmatprep.subr.bf16.mxu0 0
    %1345 = vmatpush1.bf16.msra.mxu0 0
    %1346 = vmatprep.subr.bf16.mxu0 0
    %1347 = vmatpush1.bf16.msra.mxu0 0
    %1348 = vmatprep.subr.bf16.mxu0 0
    %1349 = vmatpush1.bf16.msra.mxu0 0
    %1350 = vmatprep.subr.bf16.mxu0 0
    %1351 = vmatpush1.bf16.msra.mxu0 0
    %1352 = vmatprep.subr.bf16.mxu0 0
    %1353 = vmatpush1.bf16.msra.mxu0 0
    %1354 = vmatprep.subr.bf16.mxu0 0
    %1355 = vmatpush1.bf16.msra.mxu0 0
    %1356 = vmatprep.subr.bf16.mxu0 0
    %1357 = vmatpush1.bf16.msra.mxu0 0
    %1358 = vmatprep.subr.bf16.mxu0 0
    %1359 = vmatpush1.bf16.msra.mxu0 0
    %1360 = vmatprep.subr.bf16.mxu0 0
    %1361 = vmatpush1.bf16.msra.mxu0 0
    %1362 = vmatprep.subr.bf16.mxu0 0
    %1363 = vmatpush1.bf16.msra.mxu0 0
    %1364 = vmatprep.mubr.bf16.mxu0 0
    %1365 = vmatmul.mubr.bf16.gmra.mrb[0].mxu0 %v1330
    %v1366 = vpop.f32.mrb[0].mxu0
    %v1367 = vadd.f32 0.0, %v1366
    %v1368 = vpop.f32.mrb[0].mxu0
    %v1369 = vpop.f32.mrb[0].mxu0
    %v1370 = vadd.f32 0.0, %v1369
    %v1371 = vpop.f32.mrb[0].mxu0
    %1372 = vdwg.mxu0
    %v1373 = vmul.f32 %v1238, %v1275
    %v1374 = vmul.f32 %v1240, %v1275
    %v1375 = vmul.f32 %v1242, %v1276
    %v1376 = vmul.f32 %v1244, %v1276
    %v1377 = vsel %vm677, %v1373, 0.0
    %1378 = vadd.xlane.f32.xlu0 %v1377
    %v1379 = vpop.xlane.xlu0 %1378
    %v1380 = vsel %vm677, %v1374, 0.0
    %1381 = vadd.xlane.f32.xlu0 %v1380
    %v1382 = vpop.xlane.xlu0 %1381
    %v1383 = vsel %vm677, %v1375, 0.0
    %1384 = vadd.xlane.f32.xlu0 %v1383
    %v1385 = vpop.xlane.xlu0 %1384
    %v1386 = vsel %vm677, %v1376, 0.0
    %1387 = vadd.xlane.f32.xlu0 %v1386
    %v1388 = vpop.xlane.xlu0 %1387
    %v1389 = vadd.f32 %v1379, 1e-09
    %v1390 = vadd.f32 %v1382, 1e-09
    %v1391 = vadd.f32 %v1385, 1e-09
    %v1392 = vadd.f32 %v1388, 1e-09
    %v1393 = vrcp.pop %v1389
    %v1394 = vrcp.pop %v1390
    %v1395 = vrcp.pop %v1391
    %v1396 = vrcp.pop %v1392
    %v1397 = vmul.f32 %v1323, %v1393
    %v1398 = vmul.f32 %v1326, %v1394
    %v1399 = vmul.f32 %v1367, %v1395
    %v1400 = vmul.f32 %v1370, %v1396
    %v1401 = vsub.f32 %v1021, %v1397
    %v1402 = vsub.f32 %v1022, %v1398
    %v1403 = vsub.f32 %v1023, %v1399
    %v1404 = vsub.f32 %v1024, %v1400
    %s1405 = scalar_lea.vmem [#allocation17], 16
    %v1406 = vld [vmem:[%s1405] sm:$0xf]
    %v1407 = vld [vmem:[%s1405 + $0x4] sm:$0xf]
    %v1408 = vld [vmem:[%s1405 + $0x8] sm:$0xf]
    %v1409 = vld [vmem:[%s1405 + $0xc] sm:$0xf]
    %v1410 = vpack.c.bf16 %v1402, %v1401
    %v1411 = vpack.c.bf16 %v1404, %v1403
    %s1412 = scalar_lea.vmem [#allocation19], 1
    %v1413 = vld [vmem:[%s1412] sm:$0x1]
    %v1415 = vlaneseq
    %v1416 = vshrl.u32 %v1415, 7
    %v1417 = vsub.s32 0, %v1416
    %v1418 = vrot.slane %v1413, %v1417
    %v1424 = vunpack.c.l.b16 %v1406
    %v1425 = vunpack.c.l.b16 %v1407
    %v1426 = vunpack.c.l.b16 %v1408
    %v1427 = vunpack.c.l.b16 %v1409
    %v1428 = vpack.c.b16 %v1425, %v1424
    %v1429 = vpack.c.b16 %v1427, %v1426
    %v1433 = vsel %vm236, %v1410, 0
    %v1436 = vsel %vm236, %v1411, 0
    %1438 = vmatprep.subr.bf16.mxu0 0
    %1439 = vmatpush1.bf16.msra.mxu0 %v1428
    %1440 = vmatprep.subr.bf16.mxu0 0
    %1441 = vmatpush1.bf16.msra.mxu0 %v1429
    %1442 = vmatprep.subr.bf16.mxu0 0
    %1443 = vmatpush1.bf16.msra.mxu0 0
    %1444 = vmatprep.subr.bf16.mxu0 0
    %1445 = vmatpush1.bf16.msra.mxu0 0
    %1446 = vmatprep.subr.bf16.mxu0 0
    %1447 = vmatpush1.bf16.msra.mxu0 0
    %1448 = vmatprep.subr.bf16.mxu0 0
    %1449 = vmatpush1.bf16.msra.mxu0 0
    %1450 = vmatprep.subr.bf16.mxu0 0
    %1451 = vmatpush1.bf16.msra.mxu0 0
    %1452 = vmatprep.subr.bf16.mxu0 0
    %1453 = vmatpush1.bf16.msra.mxu0 0
    %1454 = vmatprep.subr.bf16.mxu0 0
    %1455 = vmatpush1.bf16.msra.mxu0 0
    %1456 = vmatprep.subr.bf16.mxu0 0
    %1457 = vmatpush1.bf16.msra.mxu0 0
    %1458 = vmatprep.subr.bf16.mxu0 0
    %1459 = vmatpush1.bf16.msra.mxu0 0
    %1460 = vmatprep.subr.bf16.mxu0 0
    %1461 = vmatpush1.bf16.msra.mxu0 0
    %1462 = vmatprep.subr.bf16.mxu0 0
    %1463 = vmatpush1.bf16.msra.mxu0 0
    %1464 = vmatprep.subr.bf16.mxu0 0
    %1465 = vmatpush1.bf16.msra.mxu0 0
    %1466 = vmatprep.subr.bf16.mxu0 0
    %1467 = vmatpush1.bf16.msra.mxu0 0
    %1468 = vmatprep.subr.bf16.mxu0 0
    %1469 = vmatpush1.bf16.msra.mxu0 0
    %1470 = vmatprep.mubr.bf16.mxu0 0
    %1471 = vmatmul.mubr.bf16.gmra.mrb[0].mxu0 %v1433
    %v1472 = vpop.f32.mrb[0].mxu0
    %v1473 = vadd.f32 %v1418, %v1472
    %v1474 = vpop.f32.mrb[0].mxu0
    %v1475 = vpop.f32.mrb[0].mxu0
    %v1476 = vadd.f32 %v1418, %v1475
    %v1477 = vpop.f32.mrb[0].mxu0
    %1478 = vmatprep.mubr.bf16.mxu0 0
    %1479 = vmatmul.mubr.bf16.gmra.mrb[0].mxu0 %v1436
    %v1480 = vpop.f32.mrb[0].mxu0
    %v1481 = vadd.f32 %v1418, %v1480
    %v1482 = vpop.f32.mrb[0].mxu0
    %v1483 = vpop.f32.mrb[0].mxu0
    %v1484 = vadd.f32 %v1418, %v1483
    %v1485 = vpop.f32.mrb[0].mxu0
    %1486 = vdwg.mxu0
    %s1487 = scalar_lea.vmem [#allocation20], 1
    %v1488 = vld [vmem:[%s1487] sm:$0x1]
    %s1489 = scalar_lea.vmem [#allocation22], 1
    %v1490 = vld [vmem:[%s1489] sm:$0x1]
    %v1491 = vsel %vm236, %v1473, 0.0
    %v1492 = vsel %vm236, %v1476, 0.0
    %v1493 = vadd.f32 %v1491, %v1492
    %v1494 = vsel %vm236, %v1481, 0.0
    %v1495 = vadd.f32 %v1493, %v1494
    %v1496 = vsel %vm236, %v1484, 0.0
    %v1497 = vadd.f32 %v1495, %v1496
    %v1498 = vrot.slane %v1497, 4
    %v1499 = vadd.f32 %v1497, %v1498
    %v1500 = vrot.slane %v1499, 2
    %v1501 = vadd.f32 %v1499, %v1500
    %v1502 = vrot.slane %v1501, 1
    %v1503 = vadd.f32 %v1501, %v1502
    %v1504 = vmul.f32 %v1503, %v307
    %v1505 = vmul.f32 %v1473, %v1473
    %v1506 = vmul.f32 %v1476, %v1476
    %v1507 = vmul.f32 %v1481, %v1481
    %v1508 = vmul.f32 %v1484, %v1484
    %v1509 = vsel %vm236, %v1505, 0.0
    %v1510 = vsel %vm236, %v1506, 0.0
    %v1511 = vadd.f32 %v1509, %v1510
    %v1512 = vsel %vm236, %v1507, 0.0
    %v1513 = vadd.f32 %v1511, %v1512
    %v1514 = vsel %vm236, %v1508, 0.0
    %v1515 = vadd.f32 %v1513, %v1514
    %v1516 = vrot.slane %v1515, 4
    %v1517 = vadd.f32 %v1515, %v1516
    %v1518 = vrot.slane %v1517, 2
    %v1519 = vadd.f32 %v1517, %v1518
    %v1520 = vrot.slane %v1519, 1
    %v1521 = vadd.f32 %v1519, %v1520
    %v1522 = vmul.f32 %v1521, %v307
    %v1523 = vmul.f32 %v1504, %v1504
    %v1524 = vsub.f32 %v1522, %v1523
    %v1525 = vadd.f32 %v1524, 1e-05
    %v1526 = vrsqrt.pop %v1525
    %v1527 = vmul.f32 %v1488, %v1526
    %v1528 = vmul.f32 %v1504, %v1527
    %v1529 = vsub.f32 %v1490, %v1528
    %v1531 = vlaneseq
    %v1532 = vshrl.u32 %v1531, 7
    %v1533 = vsub.s32 0, %v1532
    %v1534 = vrot.slane %v1527, %v1533
    %v1536 = vmul.f32 %v1473, %v1534
    %v1537 = vmul.f32 %v1476, %v1534
    %v1538 = vmul.f32 %v1481, %v1534
    %v1539 = vmul.f32 %v1484, %v1534
    %v1541 = vlaneseq
    %v1542 = vshrl.u32 %v1541, 7
    %v1543 = vsub.s32 0, %v1542
    %v1544 = vrot.slane %v1529, %v1543
    %v1546 = vadd.f32 %v1536, %v1544
    %v1547 = vadd.f32 %v1537, %v1544
    %v1548 = vadd.f32 %v1538, %v1544
    %v1549 = vadd.f32 %v1539, %v1544
    %v1550 = vmax.f32 %v1546, 0.0
    %v1551 = vmax.f32 %v1547, 0.0
    %v1552 = vmax.f32 %v1548, 0.0
    %v1553 = vmax.f32 %v1549, 0.0
    %v1554 = vadd.f32 %v1021, %v1550
    %v1555 = vadd.f32 %v1022, %v1551
    %v1556 = vadd.f32 %v1023, %v1552
    %v1557 = vadd.f32 %v1024, %v1553
    %s1558 = scalar_lea.vmem [#allocation14], 32
    %v1559 = vld [vmem:[%s1558] sm:$0xf]
    %v1560 = vld [vmem:[%s1558 + $0x4] sm:$0xf]
    %v1561 = vld [vmem:[%s1558 + $0x8] sm:$0xf]
    %v1562 = vld [vmem:[%s1558 + $0xc] sm:$0xf]
    %v1563 = vpack.c.bf16 %v1555, %v1554
    %v1564 = vpack.c.bf16 %v1557, %v1556
    %v1569 = vunpack.c.l.b16 %v1559
    %v1570 = vunpack.c.l.b16 %v1560
    %v1571 = vunpack.c.l.b16 %v1561
    %v1572 = vunpack.c.l.b16 %v1562
    %v1573 = vpack.c.b16 %v1570, %v1569
    %v1574 = vpack.c.b16 %v1572, %v1571
    %v1578 = vsel %vm236, %v1563, 0
    %v1581 = vsel %vm236, %v1564, 0
    %1583 = vmatprep.subr.bf16.mxu0 0
    %1584 = vmatpush1.bf16.msra.mxu0 %v1573
    %1585 = vmatprep.subr.bf16.mxu0 0
    %1586 = vmatpush1.bf16.msra.mxu0 %v1574
    %1587 = vmatprep.subr.bf16.mxu0 0
    %1588 = vmatpush1.bf16.msra.mxu0 0
    %1589 = vmatprep.subr.bf16.mxu0 0
    %1590 = vmatpush1.bf16.msra.mxu0 0
    %1591 = vmatprep.subr.bf16.mxu0 0
    %1592 = vmatpush1.bf16.msra.mxu0 0
    %1593 = vmatprep.subr.bf16.mxu0 0
    %1594 = vmatpush1.bf16.msra.mxu0 0
    %1595 = vmatprep.subr.bf16.mxu0 0
    %1596 = vmatpush1.bf16.msra.mxu0 0
    %1597 = vmatprep.subr.bf16.mxu0 0
    %1598 = vmatpush1.bf16.msra.mxu0 0
    %1599 = vmatprep.subr.bf16.mxu0 0
    %1600 = vmatpush1.bf16.msra.mxu0 0
    %1601 = vmatprep.subr.bf16.mxu0 0
    %1602 = vmatpush1.bf16.msra.mxu0 0
    %1603 = vmatprep.subr.bf16.mxu0 0
    %1604 = vmatpush1.bf16.msra.mxu0 0
    %1605 = vmatprep.subr.bf16.mxu0 0
    %1606 = vmatpush1.bf16.msra.mxu0 0
    %1607 = vmatprep.subr.bf16.mxu0 0
    %1608 = vmatpush1.bf16.msra.mxu0 0
    %1609 = vmatprep.subr.bf16.mxu0 0
    %1610 = vmatpush1.bf16.msra.mxu0 0
    %1611 = vmatprep.subr.bf16.mxu0 0
    %1612 = vmatpush1.bf16.msra.mxu0 0
    %1613 = vmatprep.subr.bf16.mxu0 0
    %1614 = vmatpush1.bf16.msra.mxu0 0
    %1615 = vmatprep.mubr.bf16.mxu0 0
    %1616 = vmatmul.mubr.bf16.gmra.mrb[0].mxu0 %v1578
    %v1617 = vpop.f32.mrb[0].mxu0
    %v1618 = vadd.f32 0.0, %v1617
    %v1619 = vpop.f32.mrb[0].mxu0
    %v1620 = vpop.f32.mrb[0].mxu0
    %v1621 = vadd.f32 0.0, %v1620
    %v1622 = vpop.f32.mrb[0].mxu0
    %1623 = vmatprep.mubr.bf16.mxu0 0
    %1624 = vmatmul.mubr.bf16.gmra.mrb[0].mxu0 %v1581
    %v1625 = vpop.f32.mrb[0].mxu0
    %v1626 = vadd.f32 0.0, %v1625
    %v1627 = vpop.f32.mrb[0].mxu0
    %v1628 = vpop.f32.mrb[0].mxu0
    %v1629 = vadd.f32 0.0, %v1628
    %v1630 = vpop.f32.mrb[0].mxu0
    %1631 = vdwg.mxu0
    %s1632 = scalar_lea.vmem [#allocation16], 2
    %v1633 = vld [vmem:[%s1632] sm:$0x1]
    %v1635 = vlaneseq
    %v1636 = vshrl.u32 %v1635, 7
    %v1637 = vsub.s32 0, %v1636
    %v1638 = vrot.slane %v1633, %v1637
    %v1640 = vadd.f32 %v1618, %v1638
    %v1641 = vadd.f32 %v1621, %v1638
    %v1642 = vadd.f32 %v1626, %v1638
    %v1643 = vadd.f32 %v1629, %v1638
    %v1644 = vpack.c.bf16 %v1621, %v1618
    %v1645 = vpack.c.bf16 %v1629, %v1626
    %1647 = vrot.lane.b32.xlu0 %v1644, 96
    %v1648 = vpop.permute.xlu0 %1647
    %v1650 = vsel %vm585, %v1648, 0
    %1652 = vmatprep.subr.bf16.mxu0 0
    %1653 = vmatpush1.bf16.xpose.msra.mxu0 %v1650
    %1654 = vmatprep.subr.bf16.mxu0 0
    %1655 = vmatpush1.bf16.xpose.msra.mxu0 0
    %1656 = vmatprep.subr.bf16.mxu0 0
    %1657 = vmatpush1.bf16.xpose.msra.mxu0 0
    %1658 = vmatprep.subr.bf16.mxu0 0
    %1659 = vmatpush1.bf16.xpose.msra.mxu0 0
    %1660 = vmatprep.subr.bf16.mxu0 0
    %1661 = vmatpush1.bf16.xpose.msra.mxu0 0
    %1662 = vmatprep.subr.bf16.mxu0 0
    %1663 = vmatpush1.bf16.xpose.msra.mxu0 0
    %1664 = vmatprep.subr.bf16.mxu0 0
    %1665 = vmatpush1.bf16.xpose.msra.mxu0 0
    %1666 = vmatprep.subr.bf16.mxu0 0
    %1667 = vmatpush1.bf16.xpose.msra.mxu0 0
    %1668 = vmatprep.subr.bf16.mxu0 0
    %1669 = vmatpush1.bf16.xpose.msra.mxu0 0
    %1670 = vmatprep.subr.bf16.mxu0 0
    %1671 = vmatpush1.bf16.xpose.msra.mxu0 0
    %1672 = vmatprep.subr.bf16.mxu0 0
    %1673 = vmatpush1.bf16.xpose.msra.mxu0 0
    %1674 = vmatprep.subr.bf16.mxu0 0
    %1675 = vmatpush1.bf16.xpose.msra.mxu0 0
    %1676 = vmatprep.subr.bf16.mxu0 0
    %1677 = vmatpush1.bf16.xpose.msra.mxu0 0
    %1678 = vmatprep.subr.bf16.mxu0 0
    %1679 = vmatpush1.bf16.xpose.msra.mxu0 0
    %1680 = vmatprep.subr.bf16.mxu0 0
    %1681 = vmatpush1.bf16.xpose.msra.mxu0 0
    %1682 = vmatprep.subr.bf16.mxu0 0
    %1683 = vmatpush1.bf16.xpose.msra.mxu0 0
    %1684 = vmatprep.mubr.bf16.mxu0 0
    %1685 = vmatmul.mubr.bf16.gmra.mrb[0].mxu0 %v1650
    %v1686 = vpop.f32.mrb[0].mxu0
    %v1687 = vadd.f32 0.0, %v1686
    %v1688 = vpop.f32.mrb[0].mxu0
    %v1689 = vpop.f32.mrb[0].mxu0
    %v1690 = vadd.f32 0.0, %v1689
    %v1691 = vpop.f32.mrb[0].mxu0
    %1692 = vdwg.mxu0
    %1694 = vrot.lane.b32.xlu0 %v1645, 96
    %v1695 = vpop.permute.xlu0 %1694
    %v1697 = vsel %vm585, %v1695, 0
    %1699 = vmatprep.subr.bf16.mxu0 0
    %1700 = vmatpush1.bf16.xpose.msra.mxu0 %v1697
    %1701 = vmatprep.subr.bf16.mxu0 0
    %1702 = vmatpush1.bf16.xpose.msra.mxu0 0
    %1703 = vmatprep.subr.bf16.mxu0 0
    %1704 = vmatpush1.bf16.xpose.msra.mxu0 0
    %1705 = vmatprep.subr.bf16.mxu0 0
    %1706 = vmatpush1.bf16.xpose.msra.mxu0 0
    %1707 = vmatprep.subr.bf16.mxu0 0
    %1708 = vmatpush1.bf16.xpose.msra.mxu0 0
    %1709 = vmatprep.subr.bf16.mxu0 0
    %1710 = vmatpush1.bf16.xpose.msra.mxu0 0
    %1711 = vmatprep.subr.bf16.mxu0 0
    %1712 = vmatpush1.bf16.xpose.msra.mxu0 0
    %1713 = vmatprep.subr.bf16.mxu0 0
    %1714 = vmatpush1.bf16.xpose.msra.mxu0 0
    %1715 = vmatprep.subr.bf16.mxu0 0
    %1716 = vmatpush1.bf16.xpose.msra.mxu0 0
    %1717 = vmatprep.subr.bf16.mxu0 0
    %1718 = vmatpush1.bf16.xpose.msra.mxu0 0
    %1719 = vmatprep.subr.bf16.mxu0 0
    %1720 = vmatpush1.bf16.xpose.msra.mxu0 0
    %1721 = vmatprep.subr.bf16.mxu0 0
    %1722 = vmatpush1.bf16.xpose.msra.mxu0 0
    %1723 = vmatprep.subr.bf16.mxu0 0
    %1724 = vmatpush1.bf16.xpose.msra.mxu0 0
    %1725 = vmatprep.subr.bf16.mxu0 0
    %1726 = vmatpush1.bf16.xpose.msra.mxu0 0
    %1727 = vmatprep.subr.bf16.mxu0 0
    %1728 = vmatpush1.bf16.xpose.msra.mxu0 0
    %1729 = vmatprep.subr.bf16.mxu0 0
    %1730 = vmatpush1.bf16.xpose.msra.mxu0 0
    %1731 = vmatprep.mubr.bf16.mxu0 0
    %1732 = vmatmul.mubr.bf16.gmra.mrb[0].mxu0 %v1697
    %v1733 = vpop.f32.mrb[0].mxu0
    %v1734 = vadd.f32 0.0, %v1733
    %v1735 = vpop.f32.mrb[0].mxu0
    %v1736 = vpop.f32.mrb[0].mxu0
    %v1737 = vadd.f32 0.0, %v1736
    %v1738 = vpop.f32.mrb[0].mxu0
    %1739 = vdwg.mxu0
    %v1740 = vsel %vm677, %v1687, -inf
    %1741 = vmax.xlane.f32.xlu0 %v1740
    %v1742 = vpop.xlane.xlu0 %1741
    %v1743 = vsel %vm677, %v1690, -inf
    %1744 = vmax.xlane.f32.xlu0 %v1743
    %v1745 = vpop.xlane.xlu0 %1744
    %v1746 = vsel %vm677, %v1734, -inf
    %1747 = vmax.xlane.f32.xlu0 %v1746
    %v1748 = vpop.xlane.xlu0 %1747
    %v1749 = vsel %vm677, %v1737, -inf
    %1750 = vmax.xlane.f32.xlu0 %v1749
    %v1751 = vpop.xlane.xlu0 %1750
    %v1752 = vmax.f32 %v1742, %v1745
    %v1753 = vrot.slane %v1752, 4
    %v1754 = vmax.f32 %v1752, %v1753
    %v1755 = vrot.slane %v1754, 2
    %v1756 = vmax.f32 %v1754, %v1755
    %v1757 = vrot.slane %v1756, 1
    %v1758 = vmax.f32 %v1756, %v1757
    %v1759 = vmax.f32 %v1748, %v1751
    %v1760 = vrot.slane %v1759, 4
    %v1761 = vmax.f32 %v1759, %v1760
    %v1762 = vrot.slane %v1761, 2
    %v1763 = vmax.f32 %v1761, %v1762
    %v1764 = vrot.slane %v1763, 1
    %v1765 = vmax.f32 %v1763, %v1764
    %v1766 = vsub.f32 %v1687, %v1758
    %v1767 = vsub.f32 %v1690, %v1758
    %v1768 = vsub.f32 %v1734, %v1765
    %v1769 = vsub.f32 %v1737, %v1765
    %v1770 = vmul.f32 %v1766, 1.442695
    %v1771 = vpow.pop %v1770
    %v1772 = vmul.f32 %v1767, 1.442695
    %v1773 = vpow.pop %v1772
    %v1774 = vmul.f32 %v1768, 1.442695
    %v1775 = vpow.pop %v1774
    %v1776 = vmul.f32 %v1769, 1.442695
    %v1777 = vpow.pop %v1776
    %v1778 = vsel %vm677, %v1771, 0.0
    %1779 = vadd.xlane.f32.xlu0 %v1778
    %v1780 = vpop.xlane.xlu0 %1779
    %v1781 = vsel %vm677, %v1773, 0.0
    %1782 = vadd.xlane.f32.xlu0 %v1781
    %v1783 = vpop.xlane.xlu0 %1782
    %v1784 = vsel %vm677, %v1775, 0.0
    %1785 = vadd.xlane.f32.xlu0 %v1784
    %v1786 = vpop.xlane.xlu0 %1785
    %v1787 = vsel %vm677, %v1777, 0.0
    %1788 = vadd.xlane.f32.xlu0 %v1787
    %v1789 = vpop.xlane.xlu0 %1788
    %v1790 = vadd.f32 %v1778, %v1781
    %v1791 = vrot.slane %v1790, 4
    %v1792 = vadd.f32 %v1790, %v1791
    %v1793 = vrot.slane %v1792, 2
    %v1794 = vadd.f32 %v1792, %v1793
    %v1795 = vrot.slane %v1794, 1
    %v1796 = vadd.f32 %v1794, %v1795
    %v1797 = vadd.f32 %v1784, %v1787
    %v1798 = vrot.slane %v1797, 4
    %v1799 = vadd.f32 %v1797, %v1798
    %v1800 = vrot.slane %v1799, 2
    %v1801 = vadd.f32 %v1799, %v1800
    %v1802 = vrot.slane %v1801, 1
    %v1803 = vadd.f32 %v1801, %v1802
    %v1804 = vrcp.pop %v1780
    %v1805 = vrcp.pop %v1783
    %v1806 = vrcp.pop %v1786
    %v1807 = vrcp.pop %v1789
    %v1808 = vrcp.pop %v1796
    %v1809 = vrcp.pop %v1803
    %v1810 = vmul.f32 %v1640, %v1804
    %v1811 = vmul.f32 %v1641, %v1805
    %v1812 = vmul.f32 %v1642, %v1806
    %v1813 = vmul.f32 %v1643, %v1807
    %v1814 = vpack.c.bf16 %v1811, %v1810
    %v1815 = vpack.c.bf16 %v1813, %v1812
    %v1816 = vpack.c.bf16 %v1773, %v1771
    %v1817 = vpack.c.bf16 %v1777, %v1775
    %v1819 = vsel %vm677, %v1816, 0
    %1821 = vmatprep.subr.bf16.mxu0 0
    %1822 = vmatpush1.bf16.msra.mxu0 %v1814
    %1823 = vmatprep.subr.bf16.mxu0 0
    %1824 = vmatpush1.bf16.msra.mxu0 0
    %1825 = vmatprep.subr.bf16.mxu0 0
    %1826 = vmatpush1.bf16.msra.mxu0 0
    %1827 = vmatprep.subr.bf16.mxu0 0
    %1828 = vmatpush1.bf16.msra.mxu0 0
    %1829 = vmatprep.subr.bf16.mxu0 0
    %1830 = vmatpush1.bf16.msra.mxu0 0
    %1831 = vmatprep.subr.bf16.mxu0 0
    %1832 = vmatpush1.bf16.msra.mxu0 0
    %1833 = vmatprep.subr.bf16.mxu0 0
    %1834 = vmatpush1.bf16.msra.mxu0 0
    %1835 = vmatprep.subr.bf16.mxu0 0
    %1836 = vmatpush1.bf16.msra.mxu0 0
    %1837 = vmatprep.subr.bf16.mxu0 0
    %1838 = vmatpush1.bf16.msra.mxu0 0
    %1839 = vmatprep.subr.bf16.mxu0 0
    %1840 = vmatpush1.bf16.msra.mxu0 0
    %1841 = vmatprep.subr.bf16.mxu0 0
    %1842 = vmatpush1.bf16.msra.mxu0 0
    %1843 = vmatprep.subr.bf16.mxu0 0
    %1844 = vmatpush1.bf16.msra.mxu0 0
    %1845 = vmatprep.subr.bf16.mxu0 0
    %1846 = vmatpush1.bf16.msra.mxu0 0
    %1847 = vmatprep.subr.bf16.mxu0 0
    %1848 = vmatpush1.bf16.msra.mxu0 0
    %1849 = vmatprep.subr.bf16.mxu0 0
    %1850 = vmatpush1.bf16.msra.mxu0 0
    %1851 = vmatprep.subr.bf16.mxu0 0
    %1852 = vmatpush1.bf16.msra.mxu0 0
    %1853 = vmatprep.mubr.bf16.mxu0 0
    %1854 = vmatmul.mubr.bf16.gmra.mrb[0].mxu0 %v1819
    %v1855 = vpop.f32.mrb[0].mxu0
    %v1856 = vadd.f32 0.0, %v1855
    %v1857 = vpop.f32.mrb[0].mxu0
    %v1858 = vpop.f32.mrb[0].mxu0
    %v1859 = vadd.f32 0.0, %v1858
    %v1860 = vpop.f32.mrb[0].mxu0
    %1861 = vdwg.mxu0
    %v1863 = vsel %vm677, %v1817, 0
    %1865 = vmatprep.subr.bf16.mxu0 0
    %1866 = vmatpush1.bf16.msra.mxu0 %v1815
    %1867 = vmatprep.subr.bf16.mxu0 0
    %1868 = vmatpush1.bf16.msra.mxu0 0
    %1869 = vmatprep.subr.bf16.mxu0 0
    %1870 = vmatpush1.bf16.msra.mxu0 0
    %1871 = vmatprep.subr.bf16.mxu0 0
    %1872 = vmatpush1.bf16.msra.mxu0 0
    %1873 = vmatprep.subr.bf16.mxu0 0
    %1874 = vmatpush1.bf16.msra.mxu0 0
    %1875 = vmatprep.subr.bf16.mxu0 0
    %1876 = vmatpush1.bf16.msra.mxu0 0
    %1877 = vmatprep.subr.bf16.mxu0 0
    %1878 = vmatpush1.bf16.msra.mxu0 0
    %1879 = vmatprep.subr.bf16.mxu0 0
    %1880 = vmatpush1.bf16.msra.mxu0 0
    %1881 = vmatprep.subr.bf16.mxu0 0
    %1882 = vmatpush1.bf16.msra.mxu0 0
    %1883 = vmatprep.subr.bf16.mxu0 0
    %1884 = vmatpush1.bf16.msra.mxu0 0
    %1885 = vmatprep.subr.bf16.mxu0 0
    %1886 = vmatpush1.bf16.msra.mxu0 0
    %1887 = vmatprep.subr.bf16.mxu0 0
    %1888 = vmatpush1.bf16.msra.mxu0 0
    %1889 = vmatprep.subr.bf16.mxu0 0
    %1890 = vmatpush1.bf16.msra.mxu0 0
    %1891 = vmatprep.subr.bf16.mxu0 0
    %1892 = vmatpush1.bf16.msra.mxu0 0
    %1893 = vmatprep.subr.bf16.mxu0 0
    %1894 = vmatpush1.bf16.msra.mxu0 0
    %1895 = vmatprep.subr.bf16.mxu0 0
    %1896 = vmatpush1.bf16.msra.mxu0 0
    %1897 = vmatprep.mubr.bf16.mxu0 0
    %1898 = vmatmul.mubr.bf16.gmra.mrb[0].mxu0 %v1863
    %v1899 = vpop.f32.mrb[0].mxu0
    %v1900 = vadd.f32 0.0, %v1899
    %v1901 = vpop.f32.mrb[0].mxu0
    %v1902 = vpop.f32.mrb[0].mxu0
    %v1903 = vadd.f32 0.0, %v1902
    %v1904 = vpop.f32.mrb[0].mxu0
    %1905 = vdwg.mxu0
    %v1906 = vmul.f32 %v1771, %v1808
    %v1907 = vmul.f32 %v1773, %v1808
    %v1908 = vmul.f32 %v1775, %v1809
    %v1909 = vmul.f32 %v1777, %v1809
    %v1910 = vsel %vm677, %v1906, 0.0
    %1911 = vadd.xlane.f32.xlu0 %v1910
    %v1912 = vpop.xlane.xlu0 %1911
    %v1913 = vsel %vm677, %v1907, 0.0
    %1914 = vadd.xlane.f32.xlu0 %v1913
    %v1915 = vpop.xlane.xlu0 %1914
    %v1916 = vsel %vm677, %v1908, 0.0
    %1917 = vadd.xlane.f32.xlu0 %v1916
    %v1918 = vpop.xlane.xlu0 %1917
    %v1919 = vsel %vm677, %v1909, 0.0
    %1920 = vadd.xlane.f32.xlu0 %v1919
    %v1921 = vpop.xlane.xlu0 %1920
    %v1922 = vadd.f32 %v1912, 1e-09
    %v1923 = vadd.f32 %v1915, 1e-09
    %v1924 = vadd.f32 %v1918, 1e-09
    %v1925 = vadd.f32 %v1921, 1e-09
    %v1926 = vrcp.pop %v1922
    %v1927 = vrcp.pop %v1923
    %v1928 = vrcp.pop %v1924
    %v1929 = vrcp.pop %v1925
    %v1930 = vmul.f32 %v1856, %v1926
    %v1931 = vmul.f32 %v1859, %v1927
    %v1932 = vmul.f32 %v1900, %v1928
    %v1933 = vmul.f32 %v1903, %v1929
    %v1934 = vsub.f32 %v1554, %v1930
    %v1935 = vsub.f32 %v1555, %v1931
    %v1936 = vsub.f32 %v1556, %v1932
    %v1937 = vsub.f32 %v1557, %v1933
    %s1938 = scalar_lea.vmem [#allocation17], 32
    %v1939 = vld [vmem:[%s1938] sm:$0xf]
    %v1940 = vld [vmem:[%s1938 + $0x4] sm:$0xf]
    %v1941 = vld [vmem:[%s1938 + $0x8] sm:$0xf]
    %v1942 = vld [vmem:[%s1938 + $0xc] sm:$0xf]
    %v1943 = vpack.c.bf16 %v1935, %v1934
    %v1944 = vpack.c.bf16 %v1937, %v1936
    %s1945 = scalar_lea.vmem [#allocation19], 2
    %v1946 = vld [vmem:[%s1945] sm:$0x1]
    %v1948 = vlaneseq
    %v1949 = vshrl.u32 %v1948, 7
    %v1950 = vsub.s32 0, %v1949
    %v1951 = vrot.slane %v1946, %v1950
    %v1957 = vunpack.c.l.b16 %v1939
    %v1958 = vunpack.c.l.b16 %v1940
    %v1959 = vunpack.c.l.b16 %v1941
    %v1960 = vunpack.c.l.b16 %v1942
    %v1961 = vpack.c.b16 %v1958, %v1957
    %v1962 = vpack.c.b16 %v1960, %v1959
    %v1966 = vsel %vm236, %v1943, 0
    %v1969 = vsel %vm236, %v1944, 0
    %1971 = vmatprep.subr.bf16.mxu0 0
    %1972 = vmatpush1.bf16.msra.mxu0 %v1961
    %1973 = vmatprep.subr.bf16.mxu0 0
    %1974 = vmatpush1.bf16.msra.mxu0 %v1962
    %1975 = vmatprep.subr.bf16.mxu0 0
    %1976 = vmatpush1.bf16.msra.mxu0 0
    %1977 = vmatprep.subr.bf16.mxu0 0
    %1978 = vmatpush1.bf16.msra.mxu0 0
    %1979 = vmatprep.subr.bf16.mxu0 0
    %1980 = vmatpush1.bf16.msra.mxu0 0
    %1981 = vmatprep.subr.bf16.mxu0 0
    %1982 = vmatpush1.bf16.msra.mxu0 0
    %1983 = vmatprep.subr.bf16.mxu0 0
    %1984 = vmatpush1.bf16.msra.mxu0 0
    %1985 = vmatprep.subr.bf16.mxu0 0
    %1986 = vmatpush1.bf16.msra.mxu0 0
    %1987 = vmatprep.subr.bf16.mxu0 0
    %1988 = vmatpush1.bf16.msra.mxu0 0
    %1989 = vmatprep.subr.bf16.mxu0 0
    %1990 = vmatpush1.bf16.msra.mxu0 0
    %1991 = vmatprep.subr.bf16.mxu0 0
    %1992 = vmatpush1.bf16.msra.mxu0 0
    %1993 = vmatprep.subr.bf16.mxu0 0
    %1994 = vmatpush1.bf16.msra.mxu0 0
    %1995 = vmatprep.subr.bf16.mxu0 0
    %1996 = vmatpush1.bf16.msra.mxu0 0
    %1997 = vmatprep.subr.bf16.mxu0 0
    %1998 = vmatpush1.bf16.msra.mxu0 0
    %1999 = vmatprep.subr.bf16.mxu0 0
    %2000 = vmatpush1.bf16.msra.mxu0 0
    %2001 = vmatprep.subr.bf16.mxu0 0
    %2002 = vmatpush1.bf16.msra.mxu0 0
    %2003 = vmatprep.mubr.bf16.mxu0 0
    %2004 = vmatmul.mubr.bf16.gmra.mrb[0].mxu0 %v1966
    %v2005 = vpop.f32.mrb[0].mxu0
    %v2006 = vadd.f32 %v1951, %v2005
    %v2007 = vpop.f32.mrb[0].mxu0
    %v2008 = vpop.f32.mrb[0].mxu0
    %v2009 = vadd.f32 %v1951, %v2008
    %v2010 = vpop.f32.mrb[0].mxu0
    %2011 = vmatprep.mubr.bf16.mxu0 0
    %2012 = vmatmul.mubr.bf16.gmra.mrb[0].mxu0 %v1969
    %v2013 = vpop.f32.mrb[0].mxu0
    %v2014 = vadd.f32 %v1951, %v2013
    %v2015 = vpop.f32.mrb[0].mxu0
    %v2016 = vpop.f32.mrb[0].mxu0
    %v2017 = vadd.f32 %v1951, %v2016
    %v2018 = vpop.f32.mrb[0].mxu0
    %2019 = vdwg.mxu0
    %s2020 = scalar_lea.vmem [#allocation20], 2
    %v2021 = vld [vmem:[%s2020] sm:$0x1]
    %s2022 = scalar_lea.vmem [#allocation22], 2
    %v2023 = vld [vmem:[%s2022] sm:$0x1]
    %v2024 = vsel %vm236, %v2006, 0.0
    %v2025 = vsel %vm236, %v2009, 0.0
    %v2026 = vadd.f32 %v2024, %v2025
    %v2027 = vsel %vm236, %v2014, 0.0
    %v2028 = vadd.f32 %v2026, %v2027
    %v2029 = vsel %vm236, %v2017, 0.0
    %v2030 = vadd.f32 %v2028, %v2029
    %v2031 = vrot.slane %v2030, 4
    %v2032 = vadd.f32 %v2030, %v2031
    %v2033 = vrot.slane %v2032, 2
    %v2034 = vadd.f32 %v2032, %v2033
    %v2035 = vrot.slane %v2034, 1
    %v2036 = vadd.f32 %v2034, %v2035
    %v2037 = vmul.f32 %v2036, %v307
    %v2038 = vmul.f32 %v2006, %v2006
    %v2039 = vmul.f32 %v2009, %v2009
    %v2040 = vmul.f32 %v2014, %v2014
    %v2041 = vmul.f32 %v2017, %v2017
    %v2042 = vsel %vm236, %v2038, 0.0
    %v2043 = vsel %vm236, %v2039, 0.0
    %v2044 = vadd.f32 %v2042, %v2043
    %v2045 = vsel %vm236, %v2040, 0.0
    %v2046 = vadd.f32 %v2044, %v2045
    %v2047 = vsel %vm236, %v2041, 0.0
    %v2048 = vadd.f32 %v2046, %v2047
    %v2049 = vrot.slane %v2048, 4
    %v2050 = vadd.f32 %v2048, %v2049
    %v2051 = vrot.slane %v2050, 2
    %v2052 = vadd.f32 %v2050, %v2051
    %v2053 = vrot.slane %v2052, 1
    %v2054 = vadd.f32 %v2052, %v2053
    %v2055 = vmul.f32 %v2054, %v307
    %v2056 = vmul.f32 %v2037, %v2037
    %v2057 = vsub.f32 %v2055, %v2056
    %v2058 = vadd.f32 %v2057, 1e-05
    %v2059 = vrsqrt.pop %v2058
    %v2060 = vmul.f32 %v2021, %v2059
    %v2061 = vmul.f32 %v2037, %v2060
    %v2062 = vsub.f32 %v2023, %v2061
    %v2064 = vlaneseq
    %v2065 = vshrl.u32 %v2064, 7
    %v2066 = vsub.s32 0, %v2065
    %v2067 = vrot.slane %v2060, %v2066
    %v2069 = vmul.f32 %v2006, %v2067
    %v2070 = vmul.f32 %v2009, %v2067
    %v2071 = vmul.f32 %v2014, %v2067
    %v2072 = vmul.f32 %v2017, %v2067
    %v2074 = vlaneseq
    %v2075 = vshrl.u32 %v2074, 7
    %v2076 = vsub.s32 0, %v2075
    %v2077 = vrot.slane %v2062, %v2076
    %v2079 = vadd.f32 %v2069, %v2077
    %v2080 = vadd.f32 %v2070, %v2077
    %v2081 = vadd.f32 %v2071, %v2077
    %v2082 = vadd.f32 %v2072, %v2077
    %v2083 = vmax.f32 %v2079, 0.0
    %v2084 = vmax.f32 %v2080, 0.0
    %v2085 = vmax.f32 %v2081, 0.0
    %v2086 = vmax.f32 %v2082, 0.0
    %v2087 = vadd.f32 %v1554, %v2083
    %v2088 = vadd.f32 %v1555, %v2084
    %v2089 = vadd.f32 %v1556, %v2085
    %v2090 = vadd.f32 %v1557, %v2086
    %s2091 = scalar_lea.vmem [#allocation14], 48
    %v2092 = vld [vmem:[%s2091] sm:$0xf]
    %v2093 = vld [vmem:[%s2091 + $0x4] sm:$0xf]
    %v2094 = vld [vmem:[%s2091 + $0x8] sm:$0xf]
    %v2095 = vld [vmem:[%s2091 + $0xc] sm:$0xf]
    %v2096 = vpack.c.bf16 %v2088, %v2087
    %v2097 = vpack.c.bf16 %v2090, %v2089
    %v2102 = vunpack.c.l.b16 %v2092
    %v2103 = vunpack.c.l.b16 %v2093
    %v2104 = vunpack.c.l.b16 %v2094
    %v2105 = vunpack.c.l.b16 %v2095
    %v2106 = vpack.c.b16 %v2103, %v2102
    %v2107 = vpack.c.b16 %v2105, %v2104
    %v2111 = vsel %vm236, %v2096, 0
    %v2114 = vsel %vm236, %v2097, 0
    %2116 = vmatprep.subr.bf16.mxu0 0
    %2117 = vmatpush1.bf16.msra.mxu0 %v2106
    %2118 = vmatprep.subr.bf16.mxu0 0
    %2119 = vmatpush1.bf16.msra.mxu0 %v2107
    %2120 = vmatprep.subr.bf16.mxu0 0
    %2121 = vmatpush1.bf16.msra.mxu0 0
    %2122 = vmatprep.subr.bf16.mxu0 0
    %2123 = vmatpush1.bf16.msra.mxu0 0
    %2124 = vmatprep.subr.bf16.mxu0 0
    %2125 = vmatpush1.bf16.msra.mxu0 0
    %2126 = vmatprep.subr.bf16.mxu0 0
    %2127 = vmatpush1.bf16.msra.mxu0 0
    %2128 = vmatprep.subr.bf16.mxu0 0
    %2129 = vmatpush1.bf16.msra.mxu0 0
    %2130 = vmatprep.subr.bf16.mxu0 0
    %2131 = vmatpush1.bf16.msra.mxu0 0
    %2132 = vmatprep.subr.bf16.mxu0 0
    %2133 = vmatpush1.bf16.msra.mxu0 0
    %2134 = vmatprep.subr.bf16.mxu0 0
    %2135 = vmatpush1.bf16.msra.mxu0 0
    %2136 = vmatprep.subr.bf16.mxu0 0
    %2137 = vmatpush1.bf16.msra.mxu0 0
    %2138 = vmatprep.subr.bf16.mxu0 0
    %2139 = vmatpush1.bf16.msra.mxu0 0
    %2140 = vmatprep.subr.bf16.mxu0 0
    %2141 = vmatpush1.bf16.msra.mxu0 0
    %2142 = vmatprep.subr.bf16.mxu0 0
    %2143 = vmatpush1.bf16.msra.mxu0 0
    %2144 = vmatprep.subr.bf16.mxu0 0
    %2145 = vmatpush1.bf16.msra.mxu0 0
    %2146 = vmatprep.subr.bf16.mxu0 0
    %2147 = vmatpush1.bf16.msra.mxu0 0
    %2148 = vmatprep.mubr.bf16.mxu0 0
    %2149 = vmatmul.mubr.bf16.gmra.mrb[0].mxu0 %v2111
    %v2150 = vpop.f32.mrb[0].mxu0
    %v2151 = vadd.f32 0.0, %v2150
    %v2152 = vpop.f32.mrb[0].mxu0
    %v2153 = vpop.f32.mrb[0].mxu0
    %v2154 = vadd.f32 0.0, %v2153
    %v2155 = vpop.f32.mrb[0].mxu0
    %2156 = vmatprep.mubr.bf16.mxu0 0
    %2157 = vmatmul.mubr.bf16.gmra.mrb[0].mxu0 %v2114
    %v2158 = vpop.f32.mrb[0].mxu0
    %v2159 = vadd.f32 0.0, %v2158
    %v2160 = vpop.f32.mrb[0].mxu0
    %v2161 = vpop.f32.mrb[0].mxu0
    %v2162 = vadd.f32 0.0, %v2161
    %v2163 = vpop.f32.mrb[0].mxu0
    %2164 = vdwg.mxu0
    %s2165 = scalar_lea.vmem [#allocation16], 3
    %v2166 = vld [vmem:[%s2165] sm:$0x1]
    %v2168 = vlaneseq
    %v2169 = vshrl.u32 %v2168, 7
    %v2170 = vsub.s32 0, %v2169
    %v2171 = vrot.slane %v2166, %v2170
    %v2173 = vadd.f32 %v2151, %v2171
    %v2174 = vadd.f32 %v2154, %v2171
    %v2175 = vadd.f32 %v2159, %v2171
    %v2176 = vadd.f32 %v2162, %v2171
    %v2177 = vpack.c.bf16 %v2154, %v2151
    %v2178 = vpack.c.bf16 %v2162, %v2159
    %2180 = vrot.lane.b32.xlu0 %v2177, 96
    %v2181 = vpop.permute.xlu0 %2180
    %v2183 = vsel %vm585, %v2181, 0
    %2185 = vmatprep.subr.bf16.mxu0 0
    %2186 = vmatpush1.bf16.xpose.msra.mxu0 %v2183
    %2187 = vmatprep.subr.bf16.mxu0 0
    %2188 = vmatpush1.bf16.xpose.msra.mxu0 0
    %2189 = vmatprep.subr.bf16.mxu0 0
    %2190 = vmatpush1.bf16.xpose.msra.mxu0 0
    %2191 = vmatprep.subr.bf16.mxu0 0
    %2192 = vmatpush1.bf16.xpose.msra.mxu0 0
    %2193 = vmatprep.subr.bf16.mxu0 0
    %2194 = vmatpush1.bf16.xpose.msra.mxu0 0
    %2195 = vmatprep.subr.bf16.mxu0 0
    %2196 = vmatpush1.bf16.xpose.msra.mxu0 0
    %2197 = vmatprep.subr.bf16.mxu0 0
    %2198 = vmatpush1.bf16.xpose.msra.mxu0 0
    %2199 = vmatprep.subr.bf16.mxu0 0
    %2200 = vmatpush1.bf16.xpose.msra.mxu0 0
    %2201 = vmatprep.subr.bf16.mxu0 0
    %2202 = vmatpush1.bf16.xpose.msra.mxu0 0
    %2203 = vmatprep.subr.bf16.mxu0 0
    %2204 = vmatpush1.bf16.xpose.msra.mxu0 0
    %2205 = vmatprep.subr.bf16.mxu0 0
    %2206 = vmatpush1.bf16.xpose.msra.mxu0 0
    %2207 = vmatprep.subr.bf16.mxu0 0
    %2208 = vmatpush1.bf16.xpose.msra.mxu0 0
    %2209 = vmatprep.subr.bf16.mxu0 0
    %2210 = vmatpush1.bf16.xpose.msra.mxu0 0
    %2211 = vmatprep.subr.bf16.mxu0 0
    %2212 = vmatpush1.bf16.xpose.msra.mxu0 0
    %2213 = vmatprep.subr.bf16.mxu0 0
    %2214 = vmatpush1.bf16.xpose.msra.mxu0 0
    %2215 = vmatprep.subr.bf16.mxu0 0
    %2216 = vmatpush1.bf16.xpose.msra.mxu0 0
    %2217 = vmatprep.mubr.bf16.mxu0 0
    %2218 = vmatmul.mubr.bf16.gmra.mrb[0].mxu0 %v2183
    %v2219 = vpop.f32.mrb[0].mxu0
    %v2220 = vadd.f32 0.0, %v2219
    %v2221 = vpop.f32.mrb[0].mxu0
    %v2222 = vpop.f32.mrb[0].mxu0
    %v2223 = vadd.f32 0.0, %v2222
    %v2224 = vpop.f32.mrb[0].mxu0
    %2225 = vdwg.mxu0
    %2227 = vrot.lane.b32.xlu0 %v2178, 96
    %v2228 = vpop.permute.xlu0 %2227
    %v2230 = vsel %vm585, %v2228, 0
    %2232 = vmatprep.subr.bf16.mxu0 0
    %2233 = vmatpush1.bf16.xpose.msra.mxu0 %v2230
    %2234 = vmatprep.subr.bf16.mxu0 0
    %2235 = vmatpush1.bf16.xpose.msra.mxu0 0
    %2236 = vmatprep.subr.bf16.mxu0 0
    %2237 = vmatpush1.bf16.xpose.msra.mxu0 0
    %2238 = vmatprep.subr.bf16.mxu0 0
    %2239 = vmatpush1.bf16.xpose.msra.mxu0 0
    %2240 = vmatprep.subr.bf16.mxu0 0
    %2241 = vmatpush1.bf16.xpose.msra.mxu0 0
    %2242 = vmatprep.subr.bf16.mxu0 0
    %2243 = vmatpush1.bf16.xpose.msra.mxu0 0
    %2244 = vmatprep.subr.bf16.mxu0 0
    %2245 = vmatpush1.bf16.xpose.msra.mxu0 0
    %2246 = vmatprep.subr.bf16.mxu0 0
    %2247 = vmatpush1.bf16.xpose.msra.mxu0 0
    %2248 = vmatprep.subr.bf16.mxu0 0
    %2249 = vmatpush1.bf16.xpose.msra.mxu0 0
    %2250 = vmatprep.subr.bf16.mxu0 0
    %2251 = vmatpush1.bf16.xpose.msra.mxu0 0
    %2252 = vmatprep.subr.bf16.mxu0 0
    %2253 = vmatpush1.bf16.xpose.msra.mxu0 0
    %2254 = vmatprep.subr.bf16.mxu0 0
    %2255 = vmatpush1.bf16.xpose.msra.mxu0 0
    %2256 = vmatprep.subr.bf16.mxu0 0
    %2257 = vmatpush1.bf16.xpose.msra.mxu0 0
    %2258 = vmatprep.subr.bf16.mxu0 0
    %2259 = vmatpush1.bf16.xpose.msra.mxu0 0
    %2260 = vmatprep.subr.bf16.mxu0 0
    %2261 = vmatpush1.bf16.xpose.msra.mxu0 0
    %2262 = vmatprep.subr.bf16.mxu0 0
    %2263 = vmatpush1.bf16.xpose.msra.mxu0 0
    %2264 = vmatprep.mubr.bf16.mxu0 0
    %2265 = vmatmul.mubr.bf16.gmra.mrb[0].mxu0 %v2230
    %v2266 = vpop.f32.mrb[0].mxu0
    %v2267 = vadd.f32 0.0, %v2266
    %v2268 = vpop.f32.mrb[0].mxu0
    %v2269 = vpop.f32.mrb[0].mxu0
    %v2270 = vadd.f32 0.0, %v2269
    %v2271 = vpop.f32.mrb[0].mxu0
    %2272 = vdwg.mxu0
    %v2273 = vsel %vm677, %v2220, -inf
    %2274 = vmax.xlane.f32.xlu0 %v2273
    %v2275 = vpop.xlane.xlu0 %2274
    %v2276 = vsel %vm677, %v2223, -inf
    %2277 = vmax.xlane.f32.xlu0 %v2276
    %v2278 = vpop.xlane.xlu0 %2277
    %v2279 = vsel %vm677, %v2267, -inf
    %2280 = vmax.xlane.f32.xlu0 %v2279
    %v2281 = vpop.xlane.xlu0 %2280
    %v2282 = vsel %vm677, %v2270, -inf
    %2283 = vmax.xlane.f32.xlu0 %v2282
    %v2284 = vpop.xlane.xlu0 %2283
    %v2285 = vmax.f32 %v2275, %v2278
    %v2286 = vrot.slane %v2285, 4
    %v2287 = vmax.f32 %v2285, %v2286
    %v2288 = vrot.slane %v2287, 2
    %v2289 = vmax.f32 %v2287, %v2288
    %v2290 = vrot.slane %v2289, 1
    %v2291 = vmax.f32 %v2289, %v2290
    %v2292 = vmax.f32 %v2281, %v2284
    %v2293 = vrot.slane %v2292, 4
    %v2294 = vmax.f32 %v2292, %v2293
    %v2295 = vrot.slane %v2294, 2
    %v2296 = vmax.f32 %v2294, %v2295
    %v2297 = vrot.slane %v2296, 1
    %v2298 = vmax.f32 %v2296, %v2297
    %v2299 = vsub.f32 %v2220, %v2291
    %v2300 = vsub.f32 %v2223, %v2291
    %v2301 = vsub.f32 %v2267, %v2298
    %v2302 = vsub.f32 %v2270, %v2298
    %v2303 = vmul.f32 %v2299, 1.442695
    %v2304 = vpow.pop %v2303
    %v2305 = vmul.f32 %v2300, 1.442695
    %v2306 = vpow.pop %v2305
    %v2307 = vmul.f32 %v2301, 1.442695
    %v2308 = vpow.pop %v2307
    %v2309 = vmul.f32 %v2302, 1.442695
    %v2310 = vpow.pop %v2309
    %v2311 = vsel %vm677, %v2304, 0.0
    %2312 = vadd.xlane.f32.xlu0 %v2311
    %v2313 = vpop.xlane.xlu0 %2312
    %v2314 = vsel %vm677, %v2306, 0.0
    %2315 = vadd.xlane.f32.xlu0 %v2314
    %v2316 = vpop.xlane.xlu0 %2315
    %v2317 = vsel %vm677, %v2308, 0.0
    %2318 = vadd.xlane.f32.xlu0 %v2317
    %v2319 = vpop.xlane.xlu0 %2318
    %v2320 = vsel %vm677, %v2310, 0.0
    %2321 = vadd.xlane.f32.xlu0 %v2320
    %v2322 = vpop.xlane.xlu0 %2321
    %v2323 = vadd.f32 %v2311, %v2314
    %v2324 = vrot.slane %v2323, 4
    %v2325 = vadd.f32 %v2323, %v2324
    %v2326 = vrot.slane %v2325, 2
    %v2327 = vadd.f32 %v2325, %v2326
    %v2328 = vrot.slane %v2327, 1
    %v2329 = vadd.f32 %v2327, %v2328
    %v2330 = vadd.f32 %v2317, %v2320
    %v2331 = vrot.slane %v2330, 4
    %v2332 = vadd.f32 %v2330, %v2331
    %v2333 = vrot.slane %v2332, 2
    %v2334 = vadd.f32 %v2332, %v2333
    %v2335 = vrot.slane %v2334, 1
    %v2336 = vadd.f32 %v2334, %v2335
    %v2337 = vrcp.pop %v2313
    %v2338 = vrcp.pop %v2316
    %v2339 = vrcp.pop %v2319
    %v2340 = vrcp.pop %v2322
    %v2341 = vrcp.pop %v2329
    %v2342 = vrcp.pop %v2336
    %v2343 = vmul.f32 %v2173, %v2337
    %v2344 = vmul.f32 %v2174, %v2338
    %v2345 = vmul.f32 %v2175, %v2339
    %v2346 = vmul.f32 %v2176, %v2340
    %v2347 = vpack.c.bf16 %v2344, %v2343
    %v2348 = vpack.c.bf16 %v2346, %v2345
    %v2349 = vpack.c.bf16 %v2306, %v2304
    %v2350 = vpack.c.bf16 %v2310, %v2308
    %v2352 = vsel %vm677, %v2349, 0
    %2354 = vmatprep.subr.bf16.mxu0 0
    %2355 = vmatpush1.bf16.msra.mxu0 %v2347
    %2356 = vmatprep.subr.bf16.mxu0 0
    %2357 = vmatpush1.bf16.msra.mxu0 0
    %2358 = vmatprep.subr.bf16.mxu0 0
    %2359 = vmatpush1.bf16.msra.mxu0 0
    %2360 = vmatprep.subr.bf16.mxu0 0
    %2361 = vmatpush1.bf16.msra.mxu0 0
    %2362 = vmatprep.subr.bf16.mxu0 0
    %2363 = vmatpush1.bf16.msra.mxu0 0
    %2364 = vmatprep.subr.bf16.mxu0 0
    %2365 = vmatpush1.bf16.msra.mxu0 0
    %2366 = vmatprep.subr.bf16.mxu0 0
    %2367 = vmatpush1.bf16.msra.mxu0 0
    %2368 = vmatprep.subr.bf16.mxu0 0
    %2369 = vmatpush1.bf16.msra.mxu0 0
    %2370 = vmatprep.subr.bf16.mxu0 0
    %2371 = vmatpush1.bf16.msra.mxu0 0
    %2372 = vmatprep.subr.bf16.mxu0 0
    %2373 = vmatpush1.bf16.msra.mxu0 0
    %2374 = vmatprep.subr.bf16.mxu0 0
    %2375 = vmatpush1.bf16.msra.mxu0 0
    %2376 = vmatprep.subr.bf16.mxu0 0
    %2377 = vmatpush1.bf16.msra.mxu0 0
    %2378 = vmatprep.subr.bf16.mxu0 0
    %2379 = vmatpush1.bf16.msra.mxu0 0
    %2380 = vmatprep.subr.bf16.mxu0 0
    %2381 = vmatpush1.bf16.msra.mxu0 0
    %2382 = vmatprep.subr.bf16.mxu0 0
    %2383 = vmatpush1.bf16.msra.mxu0 0
    %2384 = vmatprep.subr.bf16.mxu0 0
    %2385 = vmatpush1.bf16.msra.mxu0 0
    %2386 = vmatprep.mubr.bf16.mxu0 0
    %2387 = vmatmul.mubr.bf16.gmra.mrb[0].mxu0 %v2352
    %v2388 = vpop.f32.mrb[0].mxu0
    %v2389 = vadd.f32 0.0, %v2388
    %v2390 = vpop.f32.mrb[0].mxu0
    %v2391 = vpop.f32.mrb[0].mxu0
    %v2392 = vadd.f32 0.0, %v2391
    %v2393 = vpop.f32.mrb[0].mxu0
    %2394 = vdwg.mxu0
    %v2396 = vsel %vm677, %v2350, 0
    %2398 = vmatprep.subr.bf16.mxu0 0
    %2399 = vmatpush1.bf16.msra.mxu0 %v2348
    %2400 = vmatprep.subr.bf16.mxu0 0
    %2401 = vmatpush1.bf16.msra.mxu0 0
    %2402 = vmatprep.subr.bf16.mxu0 0
    %2403 = vmatpush1.bf16.msra.mxu0 0
    %2404 = vmatprep.subr.bf16.mxu0 0
    %2405 = vmatpush1.bf16.msra.mxu0 0
    %2406 = vmatprep.subr.bf16.mxu0 0
    %2407 = vmatpush1.bf16.msra.mxu0 0
    %2408 = vmatprep.subr.bf16.mxu0 0
    %2409 = vmatpush1.bf16.msra.mxu0 0
    %2410 = vmatprep.subr.bf16.mxu0 0
    %2411 = vmatpush1.bf16.msra.mxu0 0
    %2412 = vmatprep.subr.bf16.mxu0 0
    %2413 = vmatpush1.bf16.msra.mxu0 0
    %2414 = vmatprep.subr.bf16.mxu0 0
    %2415 = vmatpush1.bf16.msra.mxu0 0
    %2416 = vmatprep.subr.bf16.mxu0 0
    %2417 = vmatpush1.bf16.msra.mxu0 0
    %2418 = vmatprep.subr.bf16.mxu0 0
    %2419 = vmatpush1.bf16.msra.mxu0 0
    %2420 = vmatprep.subr.bf16.mxu0 0
    %2421 = vmatpush1.bf16.msra.mxu0 0
    %2422 = vmatprep.subr.bf16.mxu0 0
    %2423 = vmatpush1.bf16.msra.mxu0 0
    %2424 = vmatprep.subr.bf16.mxu0 0
    %2425 = vmatpush1.bf16.msra.mxu0 0
    %2426 = vmatprep.subr.bf16.mxu0 0
    %2427 = vmatpush1.bf16.msra.mxu0 0
    %2428 = vmatprep.subr.bf16.mxu0 0
    %2429 = vmatpush1.bf16.msra.mxu0 0
    %2430 = vmatprep.mubr.bf16.mxu0 0
    %2431 = vmatmul.mubr.bf16.gmra.mrb[0].mxu0 %v2396
    %v2432 = vpop.f32.mrb[0].mxu0
    %v2433 = vadd.f32 0.0, %v2432
    %v2434 = vpop.f32.mrb[0].mxu0
    %v2435 = vpop.f32.mrb[0].mxu0
    %v2436 = vadd.f32 0.0, %v2435
    %v2437 = vpop.f32.mrb[0].mxu0
    %2438 = vdwg.mxu0
    %v2439 = vmul.f32 %v2304, %v2341
    %v2440 = vmul.f32 %v2306, %v2341
    %v2441 = vmul.f32 %v2308, %v2342
    %v2442 = vmul.f32 %v2310, %v2342
    %v2443 = vsel %vm677, %v2439, 0.0
    %2444 = vadd.xlane.f32.xlu0 %v2443
    %v2445 = vpop.xlane.xlu0 %2444
    %v2446 = vsel %vm677, %v2440, 0.0
    %2447 = vadd.xlane.f32.xlu0 %v2446
    %v2448 = vpop.xlane.xlu0 %2447
    %v2449 = vsel %vm677, %v2441, 0.0
    %2450 = vadd.xlane.f32.xlu0 %v2449
    %v2451 = vpop.xlane.xlu0 %2450
    %v2452 = vsel %vm677, %v2442, 0.0
    %2453 = vadd.xlane.f32.xlu0 %v2452
    %v2454 = vpop.xlane.xlu0 %2453
    %v2455 = vadd.f32 %v2445, 1e-09
    %v2456 = vadd.f32 %v2448, 1e-09
    %v2457 = vadd.f32 %v2451, 1e-09
    %v2458 = vadd.f32 %v2454, 1e-09
    %v2459 = vrcp.pop %v2455
    %v2460 = vrcp.pop %v2456
    %v2461 = vrcp.pop %v2457
    %v2462 = vrcp.pop %v2458
    %v2463 = vmul.f32 %v2389, %v2459
    %v2464 = vmul.f32 %v2392, %v2460
    %v2465 = vmul.f32 %v2433, %v2461
    %v2466 = vmul.f32 %v2436, %v2462
    %v2467 = vsub.f32 %v2087, %v2463
    %v2468 = vsub.f32 %v2088, %v2464
    %v2469 = vsub.f32 %v2089, %v2465
    %v2470 = vsub.f32 %v2090, %v2466
    %s2471 = scalar_lea.vmem [#allocation17], 48
    %v2472 = vld [vmem:[%s2471] sm:$0xf]
    %v2473 = vld [vmem:[%s2471 + $0x4] sm:$0xf]
    %v2474 = vld [vmem:[%s2471 + $0x8] sm:$0xf]
    %v2475 = vld [vmem:[%s2471 + $0xc] sm:$0xf]
    %v2476 = vpack.c.bf16 %v2468, %v2467
    %v2477 = vpack.c.bf16 %v2470, %v2469
    %s2478 = scalar_lea.vmem [#allocation19], 3
    %v2479 = vld [vmem:[%s2478] sm:$0x1]
    %v2481 = vlaneseq
    %v2482 = vshrl.u32 %v2481, 7
    %v2483 = vsub.s32 0, %v2482
    %v2484 = vrot.slane %v2479, %v2483
    %v2490 = vunpack.c.l.b16 %v2472
    %v2491 = vunpack.c.l.b16 %v2473
    %v2492 = vunpack.c.l.b16 %v2474
    %v2493 = vunpack.c.l.b16 %v2475
    %v2494 = vpack.c.b16 %v2491, %v2490
    %v2495 = vpack.c.b16 %v2493, %v2492
    %v2499 = vsel %vm236, %v2476, 0
    %v2502 = vsel %vm236, %v2477, 0
    %2504 = vmatprep.subr.bf16.mxu0 0
    %2505 = vmatpush1.bf16.msra.mxu0 %v2494
    %2506 = vmatprep.subr.bf16.mxu0 0
    %2507 = vmatpush1.bf16.msra.mxu0 %v2495
    %2508 = vmatprep.subr.bf16.mxu0 0
    %2509 = vmatpush1.bf16.msra.mxu0 0
    %2510 = vmatprep.subr.bf16.mxu0 0
    %2511 = vmatpush1.bf16.msra.mxu0 0
    %2512 = vmatprep.subr.bf16.mxu0 0
    %2513 = vmatpush1.bf16.msra.mxu0 0
    %2514 = vmatprep.subr.bf16.mxu0 0
    %2515 = vmatpush1.bf16.msra.mxu0 0
    %2516 = vmatprep.subr.bf16.mxu0 0
    %2517 = vmatpush1.bf16.msra.mxu0 0
    %2518 = vmatprep.subr.bf16.mxu0 0
    %2519 = vmatpush1.bf16.msra.mxu0 0
    %2520 = vmatprep.subr.bf16.mxu0 0
    %2521 = vmatpush1.bf16.msra.mxu0 0
    %2522 = vmatprep.subr.bf16.mxu0 0
    %2523 = vmatpush1.bf16.msra.mxu0 0
    %2524 = vmatprep.subr.bf16.mxu0 0
    %2525 = vmatpush1.bf16.msra.mxu0 0
    %2526 = vmatprep.subr.bf16.mxu0 0
    %2527 = vmatpush1.bf16.msra.mxu0 0
    %2528 = vmatprep.subr.bf16.mxu0 0
    %2529 = vmatpush1.bf16.msra.mxu0 0
    %2530 = vmatprep.subr.bf16.mxu0 0
    %2531 = vmatpush1.bf16.msra.mxu0 0
    %2532 = vmatprep.subr.bf16.mxu0 0
    %2533 = vmatpush1.bf16.msra.mxu0 0
    %2534 = vmatprep.subr.bf16.mxu0 0
    %2535 = vmatpush1.bf16.msra.mxu0 0
    %2536 = vmatprep.mubr.bf16.mxu0 0
    %2537 = vmatmul.mubr.bf16.gmra.mrb[0].mxu0 %v2499
    %v2538 = vpop.f32.mrb[0].mxu0
    %v2539 = vadd.f32 %v2484, %v2538
    %v2540 = vpop.f32.mrb[0].mxu0
    %v2541 = vpop.f32.mrb[0].mxu0
    %v2542 = vadd.f32 %v2484, %v2541
    %v2543 = vpop.f32.mrb[0].mxu0
    %2544 = vmatprep.mubr.bf16.mxu0 0
    %2545 = vmatmul.mubr.bf16.gmra.mrb[0].mxu0 %v2502
    %v2546 = vpop.f32.mrb[0].mxu0
    %v2547 = vadd.f32 %v2484, %v2546
    %v2548 = vpop.f32.mrb[0].mxu0
    %v2549 = vpop.f32.mrb[0].mxu0
    %v2550 = vadd.f32 %v2484, %v2549
    %v2551 = vpop.f32.mrb[0].mxu0
    %2552 = vdwg.mxu0
    %s2553 = scalar_lea.vmem [#allocation20], 3
    %v2554 = vld [vmem:[%s2553] sm:$0x1]
    %s2555 = scalar_lea.vmem [#allocation22], 3
    %v2556 = vld [vmem:[%s2555] sm:$0x1]
    %v2557 = vsel %vm236, %v2539, 0.0
    %v2558 = vsel %vm236, %v2542, 0.0
    %v2559 = vadd.f32 %v2557, %v2558
    %v2560 = vsel %vm236, %v2547, 0.0
    %v2561 = vadd.f32 %v2559, %v2560
    %v2562 = vsel %vm236, %v2550, 0.0
    %v2563 = vadd.f32 %v2561, %v2562
    %v2564 = vrot.slane %v2563, 4
    %v2565 = vadd.f32 %v2563, %v2564
    %v2566 = vrot.slane %v2565, 2
    %v2567 = vadd.f32 %v2565, %v2566
    %v2568 = vrot.slane %v2567, 1
    %v2569 = vadd.f32 %v2567, %v2568
    %v2570 = vmul.f32 %v2569, %v307
    %v2571 = vmul.f32 %v2539, %v2539
    %v2572 = vmul.f32 %v2542, %v2542
    %v2573 = vmul.f32 %v2547, %v2547
    %v2574 = vmul.f32 %v2550, %v2550
    %v2575 = vsel %vm236, %v2571, 0.0
    %v2576 = vsel %vm236, %v2572, 0.0
    %v2577 = vadd.f32 %v2575, %v2576
    %v2578 = vsel %vm236, %v2573, 0.0
    %v2579 = vadd.f32 %v2577, %v2578
    %v2580 = vsel %vm236, %v2574, 0.0
    %v2581 = vadd.f32 %v2579, %v2580
    %v2582 = vrot.slane %v2581, 4
    %v2583 = vadd.f32 %v2581, %v2582
    %v2584 = vrot.slane %v2583, 2
    %v2585 = vadd.f32 %v2583, %v2584
    %v2586 = vrot.slane %v2585, 1
    %v2587 = vadd.f32 %v2585, %v2586
    %v2588 = vmul.f32 %v2587, %v307
    %v2589 = vmul.f32 %v2570, %v2570
    %v2590 = vsub.f32 %v2588, %v2589
    %v2591 = vadd.f32 %v2590, 1e-05
    %v2592 = vrsqrt.pop %v2591
    %v2593 = vmul.f32 %v2554, %v2592
    %v2594 = vmul.f32 %v2570, %v2593
    %v2595 = vsub.f32 %v2556, %v2594
    %v2597 = vlaneseq
    %v2598 = vshrl.u32 %v2597, 7
    %v2599 = vsub.s32 0, %v2598
    %v2600 = vrot.slane %v2593, %v2599
    %v2602 = vmul.f32 %v2539, %v2600
    %v2603 = vmul.f32 %v2542, %v2600
    %v2604 = vmul.f32 %v2547, %v2600
    %v2605 = vmul.f32 %v2550, %v2600
    %v2607 = vlaneseq
    %v2608 = vshrl.u32 %v2607, 7
    %v2609 = vsub.s32 0, %v2608
    %v2610 = vrot.slane %v2595, %v2609
    %v2612 = vadd.f32 %v2602, %v2610
    %v2613 = vadd.f32 %v2603, %v2610
    %v2614 = vadd.f32 %v2604, %v2610
    %v2615 = vadd.f32 %v2605, %v2610
    %v2616 = vmax.f32 %v2612, 0.0
    %v2617 = vmax.f32 %v2613, 0.0
    %v2618 = vmax.f32 %v2614, 0.0
    %v2619 = vmax.f32 %v2615, 0.0
    %v2620 = vadd.f32 %v2087, %v2616
    %v2621 = vadd.f32 %v2088, %v2617
    %v2622 = vadd.f32 %v2089, %v2618
    %v2623 = vadd.f32 %v2090, %v2619
    %2628 = vrot.lane.b32.xlu0 %v1554, 32
    %v2629 = vpop.permute.xlu0 %2628
    %2630 = vrot.lane.b32.xlu0 %v1555, 32
    %v2631 = vpop.permute.xlu0 %2630
    %2632 = vrot.lane.b32.xlu0 %v1556, 32
    %v2633 = vpop.permute.xlu0 %2632
    %2634 = vrot.lane.b32.xlu0 %v1557, 32
    %v2635 = vpop.permute.xlu0 %2634
    %2644 = vrot.lane.b32.xlu0 %v2087, 64
    %v2645 = vpop.permute.xlu0 %2644
    %2646 = vrot.lane.b32.xlu0 %v2088, 64
    %v2647 = vpop.permute.xlu0 %2646
    %2648 = vrot.lane.b32.xlu0 %v2089, 64
    %v2649 = vpop.permute.xlu0 %2648
    %2650 = vrot.lane.b32.xlu0 %v2090, 64
    %v2651 = vpop.permute.xlu0 %2650
    %2660 = vrot.lane.b32.xlu0 %v2620, 96
    %v2661 = vpop.permute.xlu0 %2660
    %2662 = vrot.lane.b32.xlu0 %v2621, 96
    %v2663 = vpop.permute.xlu0 %2662
    %2664 = vrot.lane.b32.xlu0 %v2622, 96
    %v2665 = vpop.permute.xlu0 %2664
    %2666 = vrot.lane.b32.xlu0 %v2623, 96
    %v2667 = vpop.permute.xlu0 %2666
    %v2672 = vsel %vm236, %v1021, %v2629
    %v2673 = vsel %vm236, %v1022, %v2631
    %v2674 = vsel %vm236, %v1023, %v2633
    %v2675 = vsel %vm236, %v1024, %v2635
    %vm2676 = vcmask 523264
    %v2677 = vsel %vm2676, %v2672, %v2645
    %v2678 = vsel %vm2676, %v2673, %v2647
    %v2679 = vsel %vm2676, %v2674, %v2649
    %v2680 = vsel %vm2676, %v2675, %v2651
    %vm2681 = vcmask 785408
    %v2682 = vsel %vm2681, %v2677, %v2661
    %v2683 = vsel %vm2681, %v2678, %v2663
    %v2684 = vsel %vm2681, %v2679, %v2665
    %v2685 = vsel %vm2681, %v2680, %v2667
    %2686 = vst [vmem:[#allocation23] sm:$0xff] %v2682
    %2687 = vst [vmem:[#allocation23 + $0x8] sm:$0xff] %v2683
    %2688 = vst [vmem:[#allocation23 + $0x10] sm:$0xff] %v2684
    %2689 = vst [vmem:[#allocation23 + $0x18] sm:$0xff] %v2685
    // Predicated region
    $region106: #{tpu_custom_call.1} parent=1 // pred_check
      _
    $region107: #{tpu_custom_call.1} parent=1 // pred_check_branch
      %2691 = sbr.rel (0) target = $region109
    $region108: #{tpu_custom_call.1} parent=1 // pred_region
      %s2693 = ssub.s32 512, 512
      %2694 = vsyncadd [#allocation4], %s2693
      %s2695 = sshll.u32 [#allocation23], 4
      %s2696 = int_to_ptr.vmem [resolvable:$true] %s2695
      %2701 = dma.vmem_to_hbm [thread:$0]  %s2696, 512, %s13, [#allocation4], 128, 128, 8
    $region109: #{tpu_custom_call.1} parent=1 // pred_fallthru
      _
    // Predicated region
    $region110: #{tpu_custom_call.1} parent=1 // pred_check
      _
    $region111: #{tpu_custom_call.1} parent=1 // pred_check_branch
      %2703 = sbr.rel (0) target = $region113
    $region112: #{tpu_custom_call.1} parent=1 // pred_region
      %2704 = dma.done [#allocation4], 512
    $region113: #{tpu_custom_call.1} parent=1 // pred_fallthru
      _
    %2705 = vsyncpa [#allocation3], 1
    %2706 = vsyncpa [#allocation6], 1
    %2707 = vsyncpa [#allocation9], 1
    %2708 = vsyncpa [#allocation12], 1
    %2709 = vsyncpa [#allocation15], 1
    %2710 = vsyncpa [#allocation18], 1
    %2711 = vsyncpa [#allocation21], 1
    %2712 = vsyncpa [#allocation4], 1

</llo_original>
